<compile_context>
chip_gen: v7x
topology: tpu7x:2x2x1
jax: 0.10.0
libtpu: 0.0.40
codegen_flags: <defaults>
</compile_context>

<pallas_src>
import jax
import jax.numpy as jnp
from jax import lax
from jax.experimental import pallas as pl
from jax.experimental.pallas import tpu as pltpu

KSIZE = 3
C1 = 32            # conv1 out channels
C2 = 64            # conv2 out channels
HIDDEN = 128       # fc hidden width
FC1_WEIGHT_DTYPE = jnp.float32   # set to jnp.bfloat16 to halve fc1 weight DMA


def _full_spec(a):
    """Whole-array block (block_shape == array shape, single grid step)."""
    nd = a.ndim
    return pl.BlockSpec(a.shape, lambda i, nd=nd: (0,) * nd)


def _merge_order(n):
    """Spatial-position order produced by the in-kernel halve-and-concat
    flatten.  Must mirror the kernel's merge loop exactly."""
    assert n > 0 and (n & (n - 1)) == 0, "grid_size**2 must be a power of two"
    order = [[p] for p in range(n)]
    while len(order) > 1:
        h = len(order) // 2
        order = [order[i] + order[i + h] for i in range(h)]
    return order[0]


# ------------------------------ fused kernel ---------------------------------

def _qnet_kernel(x_ref, w1_ref, b1_ref, w2_ref, b2_ref, w3_ref, b3_ref,
                 w4_ref, b4_ref, out_ref, xpad_ref, h1pad_ref):
    # x_ref   : (B, G, G, 1)     NHWC input (C_in == 1)
    # w1_ref  : (9, C1)          conv1 im2col weight
    # w2_ref  : (9*C1, C2)       conv2 im2col weight
    # w3_ref  : (G*G*C2, HIDDEN) fc1 weight (rows permuted to flatten order)
    # w4_ref  : (HIDDEN, A)      fc2 weight
    # out_ref : (B, A)
    # xpad_ref / h1pad_ref : zero-padded activation scratches (padding=1)
    B, G = x_ref.shape[0], x_ref.shape[1]
    P = G * G
    Gp = G + 2

    def pad_into(dst, val, c):
        # Write `val` (B, G, G, c) into the interior of the (B, G+2, G+2, c)
        # scratch; zero only the 1-wide halo strips (not the whole buffer).
        dst[:, 0:1, :, :] = jnp.zeros((B, 1, Gp, c), jnp.float32)
        dst[:, Gp - 1:Gp, :, :] = jnp.zeros((B, 1, Gp, c), jnp.float32)
        dst[:, 1:G + 1, 0:1, :] = jnp.zeros((B, G, 1, c), jnp.float32)
        dst[:, 1:G + 1, Gp - 1:Gp, :] = jnp.zeros((B, G, 1, c), jnp.float32)
        dst[:, 1:G + 1, 1:G + 1, :] = val

    def im2col(src, c):
        # (B, G+2, G+2, c) padded scratch -> (B*G*G, 9*c) patch matrix; taps
        # ordered (ky, kx) row-major, channels minor (matches weight packing).
        cols = []
        for ky in range(KSIZE):
            for kx in range(KSIZE):
                win = src[:, ky:ky + G, kx:kx + G, :]       # (B, G, G, c)
                cols.append(win.reshape(B * P, c))
        return jnp.concatenate(cols, axis=-1)               # (B*P, 9*c)

    # ---- conv1 (1 -> C1) + ReLU: one MXU matmul over the 9-tap im2col ----
    pad_into(xpad_ref, x_ref[...], 1)
    h1 = jnp.dot(im2col(xpad_ref, 1), w1_ref[...],
                 preferred_element_type=jnp.float32)
    h1 = jnp.maximum(h1 + b1_ref[...], 0.0)                 # (B*P, C1)

    # ---- conv2 (C1 -> C2) + ReLU: one MXU matmul, K = 9*C1 = 288 ----
    pad_into(h1pad_ref, h1.reshape(B, G, G, C1), C1)
    h2 = jnp.dot(im2col(h1pad_ref, C1), w2_ref[...],
                 preferred_element_type=jnp.float32)
    h2 = jnp.maximum(h2 + b2_ref[...], 0.0)                 # (B*P, C2)

    # ---- in-kernel flatten (B, P, C2) -> (B, P*C2) ----
    # halve-and-concat along lanes (log2(P) steps); the spatial permutation
    # this induces is folded into the fc1 weight by pack_for_pallas.
    t = h2.reshape(B, P, C2)
    while t.shape[1] > 1:
        n = t.shape[1]
        t = jnp.concatenate([t[:, :n // 2, :], t[:, n // 2:, :]], axis=-1)
    flat = t.reshape(B, P * C2)

    # ---- fc1 + ReLU, fc2 ----
    y = jnp.dot(flat.astype(w3_ref.dtype), w3_ref[...],
                preferred_element_type=jnp.float32)
    y = jnp.maximum(y + b3_ref[...], 0.0)                   # (B, HIDDEN)
    out_ref[...] = (jnp.dot(y, w4_ref[...], preferred_element_type=jnp.float32)
                    + b4_ref[...])


# --------------------------- pallas_call wrapper ------------------------------

@jax.jit
def pallas_forward(x_nchw, packed):
    """Forward pass; x_nchw is (B, 1, G, G) float32, exactly like the module."""
    w1, b1, w2, b2, w3, b3, w4, b4 = packed
    B, _, G, _ = x_nchw.shape
    A = w4.shape[1]
    # NCHW -> NHWC is a pure bitcast here because C_in == 1 (no transpose op);
    # the zero-padding happens inside the kernel.
    x = x_nchw.reshape(B, G, G, 1)
    return pl.pallas_call(
        _qnet_kernel,
        out_shape=jax.ShapeDtypeStruct((B, A), jnp.float32),
        grid=(1,),
        in_specs=[_full_spec(a) for a in (x, w1, b1, w2, b2, w3, b3, w4, b4)],
        out_specs=pl.BlockSpec((B, A), lambda i: (0, 0)),
        scratch_shapes=[
            pltpu.VMEM((B, G + 2, G + 2, 1), jnp.float32),
            pltpu.VMEM((B, G + 2, G + 2, C1), jnp.float32),
        ],
        compiler_params=pltpu.CompilerParams(
            dimension_semantics=("arbitrary",),
            vmem_limit_bytes=32 * 1024 * 1024),
    )(x, w1, b1, w2, b2, w3, b3, w4, b4)


# --------------------------- parameters (synthetic) ---------------------------

def init_params(key, grid_size, num_actions):
    """Deterministic synthetic params in torch layout (shapes from __init__)."""
    ks = jax.random.split(key, 8)
    conv_out = C2 * grid_size * grid_size
    return dict(
        w1=0.10 * jax.random.normal(ks[0], (C1, 1, KSIZE, KSIZE), jnp.float32),
        b1=0.10 * jax.random.normal(ks[1], (C1,), jnp.float32),
        w2=0.05 * jax.random.normal(ks[2], (C2, C1, KSIZE, KSIZE), jnp.float32),
        b2=0.10 * jax.random.normal(ks[3], (C2,), jnp.float32),
        w3=0.02 * jax.random.normal(ks[4], (HIDDEN, conv_out), jnp.float32),
        b3=0.10 * jax.random.normal(ks[5], (HIDDEN,), jnp.float32),
        w4=0.05 * jax.random.normal(ks[6], (num_actions, HIDDEN), jnp.float32),
        b4=0.10 * jax.random.normal(ks[7], (num_actions,), jnp.float32),
    )


def pack_for_pallas(p, grid_size):
    G = grid_size
    # Conv weights: torch (Cout, Cin, KH, KW) -> im2col (KH*KW*Cin, Cout).
    w1 = jnp.transpose(p["w1"], (2, 3, 1, 0)).reshape(KSIZE * KSIZE, C1)
    w2 = jnp.transpose(p["w2"], (2, 3, 1, 0)).reshape(KSIZE * KSIZE * C1, C2)
    # torch fc1: y = x @ W.T, in_features ordered (c, h, w) (NCHW flatten).
    # Re-order rows to (p, c) with the spatial index p permuted to the order
    # produced by the kernel's halve-and-concat flatten.
    perm = jnp.asarray(_merge_order(G * G), jnp.int32)
    w3 = (p["w3"].reshape(HIDDEN, C2, G * G)     # [out, c, p]
          .transpose(2, 1, 0)[perm]              # [p (merge order), c, out]
          .reshape(G * G * C2, HIDDEN)
          .astype(FC1_WEIGHT_DTYPE))
    w4 = p["w4"].T
    return (w1, p["b1"].reshape(1, C1),
            w2, p["b2"].reshape(1, C2),
            w3, p["b3"].reshape(1, HIDDEN),
            w4, p["b4"].reshape(1, -1))


# --------------------------- reference forward --------------------------------

def reference_forward(x, p):
    """Pure-JAX mirror of the torch module (NCHW), for correctness check."""
    dn = ("NCHW", "OIHW", "NCHW")
    y = lax.conv_general_dilated(x, p["w1"], (1, 1), "SAME", dimension_numbers=dn)
    y = jax.nn.relu(y + p["b1"][None, :, None, None])
    y = lax.conv_general_dilated(y, p["w2"], (1, 1), "SAME", dimension_numbers=dn)
    y = jax.nn.relu(y + p["b2"][None, :, None, None])
    y = y.reshape(y.shape[0], -1)                                  # NCHW flatten
    y = jax.nn.relu(y @ p["w3"].T + p["b3"])
    return y @ p["w4"].T + p["b4"]


if __name__ == "__main__":
    GRID_SIZE = 8
    NUM_ACTIONS = 4
    BATCH = 2

    key = jax.random.PRNGKey(0)
    k_x, k_p = jax.random.split(key)
    x = jax.random.normal(k_x, (BATCH, 1, GRID_SIZE, GRID_SIZE), jnp.float32)

    params = init_params(k_p, GRID_SIZE, NUM_ACTIONS)
    packed = pack_for_pallas(params, GRID_SIZE)

    out = jax.block_until_ready(pallas_forward(x, packed))
    ref = jax.block_until_ready(reference_forward(x, params))

    tol = 1e-4 if FC1_WEIGHT_DTYPE == jnp.float32 else 2e-2
    assert out.shape == (BATCH, NUM_ACTIONS), out.shape
    assert jnp.allclose(out, ref, atol=tol, rtol=tol), (out, ref)
    print("KERNEL_OK")
</pallas_src>

<mosaic_0001>
module attributes {stable_mosaic.version = 11 : i64} {
  func.func @_qnet_kernel(%arg0: i32, %arg1: memref<2x8x8x1xf32, #tpu.memory_space<vmem>>, %arg2: memref<9x32xf32, #tpu.memory_space<vmem>>, %arg3: memref<1x32xf32, #tpu.memory_space<vmem>>, %arg4: memref<288x64xf32, #tpu.memory_space<vmem>>, %arg5: memref<1x64xf32, #tpu.memory_space<vmem>>, %arg6: memref<4096x128xf32, #tpu.memory_space<vmem>>, %arg7: memref<1x128xf32, #tpu.memory_space<vmem>>, %arg8: memref<128x4xf32, #tpu.memory_space<vmem>>, %arg9: memref<1x4xf32, #tpu.memory_space<vmem>>, %arg10: memref<2x4xf32, #tpu.memory_space<vmem>>, %arg11: memref<2x10x10x1xf32, #tpu.memory_space<vmem>>, %arg12: memref<2x10x10x32xf32, #tpu.memory_space<vmem>>) attributes {dimension_semantics = [#tpu.dimension_semantics<arbitrary>], iteration_bounds = array<i64: 1>, scalar_prefetch = 0 : i64, scratch_operands = 2 : i64, tpu.core_type = #tpu.core_type<tc>, window_params = [{pipeline_mode = #tpu.pipeline_mode<synchronous>, transform_indices = @transform_0, window_bounds = array<i64: 2, 8, 8, 1>}, {pipeline_mode = #tpu.pipeline_mode<synchronous>, transform_indices = @transform_1, window_bounds = array<i64: 9, 32>}, {pipeline_mode = #tpu.pipeline_mode<synchronous>, transform_indices = @transform_2, window_bounds = array<i64: 1, 32>}, {pipeline_mode = #tpu.pipeline_mode<synchronous>, transform_indices = @transform_3, window_bounds = array<i64: 288, 64>}, {pipeline_mode = #tpu.pipeline_mode<synchronous>, transform_indices = @transform_4, window_bounds = array<i64: 1, 64>}, {pipeline_mode = #tpu.pipeline_mode<synchronous>, transform_indices = @transform_5, window_bounds = array<i64: 4096, 128>}, {pipeline_mode = #tpu.pipeline_mode<synchronous>, transform_indices = @transform_6, window_bounds = array<i64: 1, 128>}, {pipeline_mode = #tpu.pipeline_mode<synchronous>, transform_indices = @transform_7, window_bounds = array<i64: 128, 4>}, {pipeline_mode = #tpu.pipeline_mode<synchronous>, transform_indices = @transform_8, window_bounds = array<i64: 1, 4>}, {pipeline_mode = #tpu.pipeline_mode<synchronous>, transform_indices = @transform_9, window_bounds = array<i64: 2, 4>}]} {
    %c0 = arith.constant 0 : index
    %c0_0 = arith.constant 0 : index
    %c0_1 = arith.constant 0 : index
    %c0_2 = arith.constant 0 : index
    %0 = vector.load %arg1[%c0, %c0_0, %c0_1, %c0_2] : memref<2x8x8x1xf32, #tpu.memory_space<vmem>>, vector<2x8x8x1xf32>
    %cst = arith.constant 0.000000e+00 : f32
    %1 = vector.broadcast %cst : f32 to vector<2x1x10x1xf32>
    %c0_3 = arith.constant 0 : index
    %c0_4 = arith.constant 0 : index
    %c0_5 = arith.constant 0 : index
    %c0_6 = arith.constant 0 : index
    %2 = vector.load %arg11[%c0_3, %c0_4, %c0_5, %c0_6] : memref<2x10x10x1xf32, #tpu.memory_space<vmem>>, vector<2x1x10x1xf32>
    tpu.vector_store %arg11[%c0_3, %c0_4, %c0_5, %c0_6], %1 {strides = array<i32>} : memref<2x10x10x1xf32, #tpu.memory_space<vmem>>, vector<2x1x10x1xf32>,
    %cst_7 = arith.constant 0.000000e+00 : f32
    %3 = vector.broadcast %cst_7 : f32 to vector<2x1x10x1xf32>
    %c0_8 = arith.constant 0 : index
    %c9 = arith.constant 9 : index
    %c0_9 = arith.constant 0 : index
    %c0_10 = arith.constant 0 : index
    %4 = vector.load %arg11[%c0_8, %c9, %c0_9, %c0_10] : memref<2x10x10x1xf32, #tpu.memory_space<vmem>>, vector<2x1x10x1xf32>
    tpu.vector_store %arg11[%c0_8, %c9, %c0_9, %c0_10], %3 {strides = array<i32>} : memref<2x10x10x1xf32, #tpu.memory_space<vmem>>, vector<2x1x10x1xf32>,
    %cst_11 = arith.constant 0.000000e+00 : f32
    %5 = vector.broadcast %cst_11 : f32 to vector<2x8x1x1xf32>
    %c0_12 = arith.constant 0 : index
    %c1 = arith.constant 1 : index
    %c0_13 = arith.constant 0 : index
    %c0_14 = arith.constant 0 : index
    %6 = vector.load %arg11[%c0_12, %c1, %c0_13, %c0_14] : memref<2x10x10x1xf32, #tpu.memory_space<vmem>>, vector<2x8x1x1xf32>
    tpu.vector_store %arg11[%c0_12, %c1, %c0_13, %c0_14], %5 {strides = array<i32>} : memref<2x10x10x1xf32, #tpu.memory_space<vmem>>, vector<2x8x1x1xf32>,
    %cst_15 = arith.constant 0.000000e+00 : f32
    %7 = vector.broadcast %cst_15 : f32 to vector<2x8x1x1xf32>
    %c0_16 = arith.constant 0 : index
    %c1_17 = arith.constant 1 : index
    %c9_18 = arith.constant 9 : index
    %c0_19 = arith.constant 0 : index
    %8 = vector.load %arg11[%c0_16, %c1_17, %c9_18, %c0_19] : memref<2x10x10x1xf32, #tpu.memory_space<vmem>>, vector<2x8x1x1xf32>
    tpu.vector_store %arg11[%c0_16, %c1_17, %c9_18, %c0_19], %7 {strides = array<i32>} : memref<2x10x10x1xf32, #tpu.memory_space<vmem>>, vector<2x8x1x1xf32>,
    %c0_20 = arith.constant 0 : index
    %c1_21 = arith.constant 1 : index
    %c1_22 = arith.constant 1 : index
    %c0_23 = arith.constant 0 : index
    %9 = vector.load %arg11[%c0_20, %c1_21, %c1_22, %c0_23] : memref<2x10x10x1xf32, #tpu.memory_space<vmem>>, vector<2x8x8x1xf32>
    tpu.vector_store %arg11[%c0_20, %c1_21, %c1_22, %c0_23], %0 {strides = array<i32>} : memref<2x10x10x1xf32, #tpu.memory_space<vmem>>, vector<2x8x8x1xf32>,
    %c0_24 = arith.constant 0 : index
    %c0_25 = arith.constant 0 : index
    %c0_26 = arith.constant 0 : index
    %c0_27 = arith.constant 0 : index
    %10 = vector.load %arg11[%c0_24, %c0_25, %c0_26, %c0_27] : memref<2x10x10x1xf32, #tpu.memory_space<vmem>>, vector<2x8x8x1xf32>
    %11 = vector.shape_cast %10 : vector<2x8x8x1xf32> to vector<128x1xf32>
    %c0_28 = arith.constant 0 : index
    %c0_29 = arith.constant 0 : index
    %c1_30 = arith.constant 1 : index
    %c0_31 = arith.constant 0 : index
    %12 = vector.load %arg11[%c0_28, %c0_29, %c1_30, %c0_31] : memref<2x10x10x1xf32, #tpu.memory_space<vmem>>, vector<2x8x8x1xf32>
    %13 = vector.shape_cast %12 : vector<2x8x8x1xf32> to vector<128x1xf32>
    %c0_32 = arith.constant 0 : index
    %c0_33 = arith.constant 0 : index
    %c2 = arith.constant 2 : index
    %c0_34 = arith.constant 0 : index
    %14 = vector.load %arg11[%c0_32, %c0_33, %c2, %c0_34] : memref<2x10x10x1xf32, #tpu.memory_space<vmem>>, vector<2x8x8x1xf32>
    %15 = vector.shape_cast %14 : vector<2x8x8x1xf32> to vector<128x1xf32>
    %c0_35 = arith.constant 0 : index
    %c1_36 = arith.constant 1 : index
    %c0_37 = arith.constant 0 : index
    %c0_38 = arith.constant 0 : index
    %16 = vector.load %arg11[%c0_35, %c1_36, %c0_37, %c0_38] : memref<2x10x10x1xf32, #tpu.memory_space<vmem>>, vector<2x8x8x1xf32>
    %17 = vector.shape_cast %16 : vector<2x8x8x1xf32> to vector<128x1xf32>
    %c0_39 = arith.constant 0 : index
    %c1_40 = arith.constant 1 : index
    %c1_41 = arith.constant 1 : index
    %c0_42 = arith.constant 0 : index
    %18 = vector.load %arg11[%c0_39, %c1_40, %c1_41, %c0_42] : memref<2x10x10x1xf32, #tpu.memory_space<vmem>>, vector<2x8x8x1xf32>
    %19 = vector.shape_cast %18 : vector<2x8x8x1xf32> to vector<128x1xf32>
    %c0_43 = arith.constant 0 : index
    %c1_44 = arith.constant 1 : index
    %c2_45 = arith.constant 2 : index
    %c0_46 = arith.constant 0 : index
    %20 = vector.load %arg11[%c0_43, %c1_44, %c2_45, %c0_46] : memref<2x10x10x1xf32, #tpu.memory_space<vmem>>, vector<2x8x8x1xf32>
    %21 = vector.shape_cast %20 : vector<2x8x8x1xf32> to vector<128x1xf32>
    %c0_47 = arith.constant 0 : index
    %c2_48 = arith.constant 2 : index
    %c0_49 = arith.constant 0 : index
    %c0_50 = arith.constant 0 : index
    %22 = vector.load %arg11[%c0_47, %c2_48, %c0_49, %c0_50] : memref<2x10x10x1xf32, #tpu.memory_space<vmem>>, vector<2x8x8x1xf32>
    %23 = vector.shape_cast %22 : vector<2x8x8x1xf32> to vector<128x1xf32>
    %c0_51 = arith.constant 0 : index
    %c2_52 = arith.constant 2 : index
    %c1_53 = arith.constant 1 : index
    %c0_54 = arith.constant 0 : index
    %24 = vector.load %arg11[%c0_51, %c2_52, %c1_53, %c0_54] : memref<2x10x10x1xf32, #tpu.memory_space<vmem>>, vector<2x8x8x1xf32>
    %25 = vector.shape_cast %24 : vector<2x8x8x1xf32> to vector<128x1xf32>
    %c0_55 = arith.constant 0 : index
    %c2_56 = arith.constant 2 : index
    %c2_57 = arith.constant 2 : index
    %c0_58 = arith.constant 0 : index
    %26 = vector.load %arg11[%c0_55, %c2_56, %c2_57, %c0_58] : memref<2x10x10x1xf32, #tpu.memory_space<vmem>>, vector<2x8x8x1xf32>
    %27 = vector.shape_cast %26 : vector<2x8x8x1xf32> to vector<128x1xf32>
    %28 = tpu.concatenate %11, %13, %15, %17, %19, %21, %23, %25, %27 in 1 : vector<128x1xf32>, vector<128x1xf32>, vector<128x1xf32>, vector<128x1xf32>, vector<128x1xf32>, vector<128x1xf32>, vector<128x1xf32>, vector<128x1xf32>, vector<128x1xf32> -> vector<128x9xf32>
    %c0_59 = arith.constant 0 : index
    %c0_60 = arith.constant 0 : index
    %29 = vector.load %arg2[%c0_59, %c0_60] : memref<9x32xf32, #tpu.memory_space<vmem>>, vector<9x32xf32>
    %cst_61 = arith.constant dense<0.000000e+00> : vector<128x32xf32>
    %30 = tpu.matmul %28, %29, %cst_61 {dimension_numbers = #tpu.dot_dimension_numbers<[1], [0], [0], [1], [0, 0, 1, 1], [], []>} : vector<128x9xf32>, vector<9x32xf32>, vector<128x32xf32> -> vector<128x32xf32>
    %c0_62 = arith.constant 0 : index
    %c0_63 = arith.constant 0 : index
    %31 = vector.load %arg3[%c0_62, %c0_63] : memref<1x32xf32, #tpu.memory_space<vmem>>, vector<1x32xf32>
    %32 = vector.broadcast %31 : vector<1x32xf32> to vector<128x32xf32>
    %33 = arith.addf %30, %32 : vector<128x32xf32>
    %cst_64 = arith.constant 0.000000e+00 : f32
    %34 = vector.broadcast %cst_64 : f32 to vector<128x32xf32>
    %35 = arith.maximumf %33, %34 : vector<128x32xf32>
    %36 = vector.shape_cast %35 : vector<128x32xf32> to vector<2x8x8x32xf32>
    %cst_65 = arith.constant 0.000000e+00 : f32
    %37 = vector.broadcast %cst_65 : f32 to vector<2x1x10x32xf32>
    %c0_66 = arith.constant 0 : index
    %c0_67 = arith.constant 0 : index
    %c0_68 = arith.constant 0 : index
    %c0_69 = arith.constant 0 : index
    %38 = vector.load %arg12[%c0_66, %c0_67, %c0_68, %c0_69] : memref<2x10x10x32xf32, #tpu.memory_space<vmem>>, vector<2x1x10x32xf32>
    tpu.vector_store %arg12[%c0_66, %c0_67, %c0_68, %c0_69], %37 {strides = array<i32>} : memref<2x10x10x32xf32, #tpu.memory_space<vmem>>, vector<2x1x10x32xf32>,
    %cst_70 = arith.constant 0.000000e+00 : f32
    %39 = vector.broadcast %cst_70 : f32 to vector<2x1x10x32xf32>
    %c0_71 = arith.constant 0 : index
    %c9_72 = arith.constant 9 : index
    %c0_73 = arith.constant 0 : index
    %c0_74 = arith.constant 0 : index
    %40 = vector.load %arg12[%c0_71, %c9_72, %c0_73, %c0_74] : memref<2x10x10x32xf32, #tpu.memory_space<vmem>>, vector<2x1x10x32xf32>
    tpu.vector_store %arg12[%c0_71, %c9_72, %c0_73, %c0_74], %39 {strides = array<i32>} : memref<2x10x10x32xf32, #tpu.memory_space<vmem>>, vector<2x1x10x32xf32>,
    %cst_75 = arith.constant 0.000000e+00 : f32
    %41 = vector.broadcast %cst_75 : f32 to vector<2x8x1x32xf32>
    %c0_76 = arith.constant 0 : index
    %c1_77 = arith.constant 1 : index
    %c0_78 = arith.constant 0 : index
    %c0_79 = arith.constant 0 : index
    %42 = vector.load %arg12[%c0_76, %c1_77, %c0_78, %c0_79] : memref<2x10x10x32xf32, #tpu.memory_space<vmem>>, vector<2x8x1x32xf32>
    tpu.vector_store %arg12[%c0_76, %c1_77, %c0_78, %c0_79], %41 {strides = array<i32>} : memref<2x10x10x32xf32, #tpu.memory_space<vmem>>, vector<2x8x1x32xf32>,
    %cst_80 = arith.constant 0.000000e+00 : f32
    %43 = vector.broadcast %cst_80 : f32 to vector<2x8x1x32xf32>
    %c0_81 = arith.constant 0 : index
    %c1_82 = arith.constant 1 : index
    %c9_83 = arith.constant 9 : index
    %c0_84 = arith.constant 0 : index
    %44 = vector.load %arg12[%c0_81, %c1_82, %c9_83, %c0_84] : memref<2x10x10x32xf32, #tpu.memory_space<vmem>>, vector<2x8x1x32xf32>
    tpu.vector_store %arg12[%c0_81, %c1_82, %c9_83, %c0_84], %43 {strides = array<i32>} : memref<2x10x10x32xf32, #tpu.memory_space<vmem>>, vector<2x8x1x32xf32>,
    %c0_85 = arith.constant 0 : index
    %c1_86 = arith.constant 1 : index
    %c1_87 = arith.constant 1 : index
    %c0_88 = arith.constant 0 : index
    %45 = vector.load %arg12[%c0_85, %c1_86, %c1_87, %c0_88] : memref<2x10x10x32xf32, #tpu.memory_space<vmem>>, vector<2x8x8x32xf32>
    tpu.vector_store %arg12[%c0_85, %c1_86, %c1_87, %c0_88], %36 {strides = array<i32>} : memref<2x10x10x32xf32, #tpu.memory_space<vmem>>, vector<2x8x8x32xf32>,
    %c0_89 = arith.constant 0 : index
    %c0_90 = arith.constant 0 : index
    %c0_91 = arith.constant 0 : index
    %c0_92 = arith.constant 0 : index
    %46 = vector.load %arg12[%c0_89, %c0_90, %c0_91, %c0_92] : memref<2x10x10x32xf32, #tpu.memory_space<vmem>>, vector<2x8x8x32xf32>
    %47 = vector.shape_cast %46 : vector<2x8x8x32xf32> to vector<128x32xf32>
    %c0_93 = arith.constant 0 : index
    %c0_94 = arith.constant 0 : index
    %c1_95 = arith.constant 1 : index
    %c0_96 = arith.constant 0 : index
    %48 = vector.load %arg12[%c0_93, %c0_94, %c1_95, %c0_96] : memref<2x10x10x32xf32, #tpu.memory_space<vmem>>, vector<2x8x8x32xf32>
    %49 = vector.shape_cast %48 : vector<2x8x8x32xf32> to vector<128x32xf32>
    %c0_97 = arith.constant 0 : index
    %c0_98 = arith.constant 0 : index
    %c2_99 = arith.constant 2 : index
    %c0_100 = arith.constant 0 : index
    %50 = vector.load %arg12[%c0_97, %c0_98, %c2_99, %c0_100] : memref<2x10x10x32xf32, #tpu.memory_space<vmem>>, vector<2x8x8x32xf32>
    %51 = vector.shape_cast %50 : vector<2x8x8x32xf32> to vector<128x32xf32>
    %c0_101 = arith.constant 0 : index
    %c1_102 = arith.constant 1 : index
    %c0_103 = arith.constant 0 : index
    %c0_104 = arith.constant 0 : index
    %52 = vector.load %arg12[%c0_101, %c1_102, %c0_103, %c0_104] : memref<2x10x10x32xf32, #tpu.memory_space<vmem>>, vector<2x8x8x32xf32>
    %53 = vector.shape_cast %52 : vector<2x8x8x32xf32> to vector<128x32xf32>
    %c0_105 = arith.constant 0 : index
    %c1_106 = arith.constant 1 : index
    %c1_107 = arith.constant 1 : index
    %c0_108 = arith.constant 0 : index
    %54 = vector.load %arg12[%c0_105, %c1_106, %c1_107, %c0_108] : memref<2x10x10x32xf32, #tpu.memory_space<vmem>>, vector<2x8x8x32xf32>
    %55 = vector.shape_cast %54 : vector<2x8x8x32xf32> to vector<128x32xf32>
    %c0_109 = arith.constant 0 : index
    %c1_110 = arith.constant 1 : index
    %c2_111 = arith.constant 2 : index
    %c0_112 = arith.constant 0 : index
    %56 = vector.load %arg12[%c0_109, %c1_110, %c2_111, %c0_112] : memref<2x10x10x32xf32, #tpu.memory_space<vmem>>, vector<2x8x8x32xf32>
    %57 = vector.shape_cast %56 : vector<2x8x8x32xf32> to vector<128x32xf32>
    %c0_113 = arith.constant 0 : index
    %c2_114 = arith.constant 2 : index
    %c0_115 = arith.constant 0 : index
    %c0_116 = arith.constant 0 : index
    %58 = vector.load %arg12[%c0_113, %c2_114, %c0_115, %c0_116] : memref<2x10x10x32xf32, #tpu.memory_space<vmem>>, vector<2x8x8x32xf32>
    %59 = vector.shape_cast %58 : vector<2x8x8x32xf32> to vector<128x32xf32>
    %c0_117 = arith.constant 0 : index
    %c2_118 = arith.constant 2 : index
    %c1_119 = arith.constant 1 : index
    %c0_120 = arith.constant 0 : index
    %60 = vector.load %arg12[%c0_117, %c2_118, %c1_119, %c0_120] : memref<2x10x10x32xf32, #tpu.memory_space<vmem>>, vector<2x8x8x32xf32>
    %61 = vector.shape_cast %60 : vector<2x8x8x32xf32> to vector<128x32xf32>
    %c0_121 = arith.constant 0 : index
    %c2_122 = arith.constant 2 : index
    %c2_123 = arith.constant 2 : index
    %c0_124 = arith.constant 0 : index
    %62 = vector.load %arg12[%c0_121, %c2_122, %c2_123, %c0_124] : memref<2x10x10x32xf32, #tpu.memory_space<vmem>>, vector<2x8x8x32xf32>
    %63 = vector.shape_cast %62 : vector<2x8x8x32xf32> to vector<128x32xf32>
    %64 = tpu.concatenate %47, %49, %51, %53, %55, %57, %59, %61, %63 in 1 : vector<128x32xf32>, vector<128x32xf32>, vector<128x32xf32>, vector<128x32xf32>, vector<128x32xf32>, vector<128x32xf32>, vector<128x32xf32>, vector<128x32xf32>, vector<128x32xf32> -> vector<128x288xf32>
    %c0_125 = arith.constant 0 : index
    %c0_126 = arith.constant 0 : index
    %65 = vector.load %arg4[%c0_125, %c0_126] : memref<288x64xf32, #tpu.memory_space<vmem>>, vector<288x64xf32>
    %cst_127 = arith.constant dense<0.000000e+00> : vector<128x64xf32>
    %66 = tpu.matmul %64, %65, %cst_127 {dimension_numbers = #tpu.dot_dimension_numbers<[1], [0], [0], [1], [0, 0, 1, 1], [], []>} : vector<128x288xf32>, vector<288x64xf32>, vector<128x64xf32> -> vector<128x64xf32>
    %c0_128 = arith.constant 0 : index
    %c0_129 = arith.constant 0 : index
    %67 = vector.load %arg5[%c0_128, %c0_129] : memref<1x64xf32, #tpu.memory_space<vmem>>, vector<1x64xf32>
    %68 = vector.broadcast %67 : vector<1x64xf32> to vector<128x64xf32>
    %69 = arith.addf %66, %68 : vector<128x64xf32>
    %cst_130 = arith.constant 0.000000e+00 : f32
    %70 = vector.broadcast %cst_130 : f32 to vector<128x64xf32>
    %71 = arith.maximumf %69, %70 : vector<128x64xf32>
    %72 = vector.shape_cast %71 : vector<128x64xf32> to vector<2x64x64xf32>
    %73 = vector.extract_strided_slice %72 {offsets = [0, 0, 0], sizes = [2, 32, 64], strides = [1, 1, 1]} : vector<2x64x64xf32> to vector<2x32x64xf32>
    %74 = vector.extract_strided_slice %72 {offsets = [0, 32, 0], sizes = [2, 32, 64], strides = [1, 1, 1]} : vector<2x64x64xf32> to vector<2x32x64xf32>
    %75 = tpu.concatenate %73, %74 in 2 : vector<2x32x64xf32>, vector<2x32x64xf32> -> vector<2x32x128xf32>
    %76 = vector.extract_strided_slice %75 {offsets = [0, 0, 0], sizes = [2, 16, 128], strides = [1, 1, 1]} : vector<2x32x128xf32> to vector<2x16x128xf32>
    %77 = vector.extract_strided_slice %75 {offsets = [0, 16, 0], sizes = [2, 16, 128], strides = [1, 1, 1]} : vector<2x32x128xf32> to vector<2x16x128xf32>
    %78 = tpu.concatenate %76, %77 in 2 : vector<2x16x128xf32>, vector<2x16x128xf32> -> vector<2x16x256xf32>
    %79 = vector.extract_strided_slice %78 {offsets = [0, 0, 0], sizes = [2, 8, 256], strides = [1, 1, 1]} : vector<2x16x256xf32> to vector<2x8x256xf32>
    %80 = vector.extract_strided_slice %78 {offsets = [0, 8, 0], sizes = [2, 8, 256], strides = [1, 1, 1]} : vector<2x16x256xf32> to vector<2x8x256xf32>
    %81 = tpu.concatenate %79, %80 in 2 : vector<2x8x256xf32>, vector<2x8x256xf32> -> vector<2x8x512xf32>
    %82 = vector.extract_strided_slice %81 {offsets = [0, 0, 0], sizes = [2, 4, 512], strides = [1, 1, 1]} : vector<2x8x512xf32> to vector<2x4x512xf32>
    %83 = vector.extract_strided_slice %81 {offsets = [0, 4, 0], sizes = [2, 4, 512], strides = [1, 1, 1]} : vector<2x8x512xf32> to vector<2x4x512xf32>
    %84 = tpu.concatenate %82, %83 in 2 : vector<2x4x512xf32>, vector<2x4x512xf32> -> vector<2x4x1024xf32>
    %85 = vector.extract_strided_slice %84 {offsets = [0, 0, 0], sizes = [2, 2, 1024], strides = [1, 1, 1]} : vector<2x4x1024xf32> to vector<2x2x1024xf32>
    %86 = vector.extract_strided_slice %84 {offsets = [0, 2, 0], sizes = [2, 2, 1024], strides = [1, 1, 1]} : vector<2x4x1024xf32> to vector<2x2x1024xf32>
    %87 = tpu.concatenate %85, %86 in 2 : vector<2x2x1024xf32>, vector<2x2x1024xf32> -> vector<2x2x2048xf32>
    %88 = vector.extract_strided_slice %87 {offsets = [0, 0, 0], sizes = [2, 1, 2048], strides = [1, 1, 1]} : vector<2x2x2048xf32> to vector<2x1x2048xf32>
    %89 = vector.extract_strided_slice %87 {offsets = [0, 1, 0], sizes = [2, 1, 2048], strides = [1, 1, 1]} : vector<2x2x2048xf32> to vector<2x1x2048xf32>
    %90 = tpu.concatenate %88, %89 in 2 : vector<2x1x2048xf32>, vector<2x1x2048xf32> -> vector<2x1x4096xf32>
    %91 = vector.shape_cast %90 : vector<2x1x4096xf32> to vector<2x4096xf32>
    %c0_131 = arith.constant 0 : index
    %c0_132 = arith.constant 0 : index
    %92 = vector.load %arg6[%c0_131, %c0_132] : memref<4096x128xf32, #tpu.memory_space<vmem>>, vector<4096x128xf32>
    %cst_133 = arith.constant dense<0.000000e+00> : vector<2x128xf32>
    %93 = tpu.matmul %91, %92, %cst_133 {dimension_numbers = #tpu.dot_dimension_numbers<[1], [0], [0], [1], [0, 0, 1, 1], [], []>} : vector<2x4096xf32>, vector<4096x128xf32>, vector<2x128xf32> -> vector<2x128xf32>
    %c0_134 = arith.constant 0 : index
    %c0_135 = arith.constant 0 : index
    %94 = vector.load %arg7[%c0_134, %c0_135] : memref<1x128xf32, #tpu.memory_space<vmem>>, vector<1x128xf32>
    %95 = vector.broadcast %94 : vector<1x128xf32> to vector<2x128xf32>
    %96 = arith.addf %93, %95 : vector<2x128xf32>
    %cst_136 = arith.constant 0.000000e+00 : f32
    %97 = vector.broadcast %cst_136 : f32 to vector<2x128xf32>
    %98 = arith.maximumf %96, %97 : vector<2x128xf32>
    %c0_137 = arith.constant 0 : index
    %c0_138 = arith.constant 0 : index
    %99 = vector.load %arg8[%c0_137, %c0_138] : memref<128x4xf32, #tpu.memory_space<vmem>>, vector<128x4xf32>
    %cst_139 = arith.constant dense<0.000000e+00> : vector<2x4xf32>
    %100 = tpu.matmul %98, %99, %cst_139 {dimension_numbers = #tpu.dot_dimension_numbers<[1], [0], [0], [1], [0, 0, 1, 1], [], []>} : vector<2x128xf32>, vector<128x4xf32>, vector<2x4xf32> -> vector<2x4xf32>
    %c0_140 = arith.constant 0 : index
    %c0_141 = arith.constant 0 : index
    %101 = vector.load %arg9[%c0_140, %c0_141] : memref<1x4xf32, #tpu.memory_space<vmem>>, vector<1x4xf32>
    %102 = vector.broadcast %101 : vector<1x4xf32> to vector<2x4xf32>
    %103 = arith.addf %100, %102 : vector<2x4xf32>
    %c0_142 = arith.constant 0 : index
    %c0_143 = arith.constant 0 : index
    %104 = vector.load %arg10[%c0_142, %c0_143] : memref<2x4xf32, #tpu.memory_space<vmem>>, vector<2x4xf32>
    tpu.vector_store %arg10[%c0_142, %c0_143], %103 {strides = array<i32>} : memref<2x4xf32, #tpu.memory_space<vmem>>, vector<2x4xf32>,
    return
  }
  func.func @transform_0(%arg0: i32) -> (i32, i32, i32, i32) {
    %c0_i32 = arith.constant 0 : i32
    %c0_i32_0 = arith.constant 0 : i32
    %c0_i32_1 = arith.constant 0 : i32
    %c0_i32_2 = arith.constant 0 : i32
    %c0_i32_3 = arith.constant 0 : i32
    return %c0_i32, %c0_i32_0, %c0_i32_1, %c0_i32_2 : i32, i32, i32, i32
  }
  func.func @transform_1(%arg0: i32) -> (i32, i32) {
    %c0_i32 = arith.constant 0 : i32
    %c0_i32_0 = arith.constant 0 : i32
    %c0_i32_1 = arith.constant 0 : i32
    return %c0_i32, %c0_i32_0 : i32, i32
  }
  func.func @transform_2(%arg0: i32) -> (i32, i32) {
    %c0_i32 = arith.constant 0 : i32
    %c0_i32_0 = arith.constant 0 : i32
    %c0_i32_1 = arith.constant 0 : i32
    return %c0_i32, %c0_i32_0 : i32, i32
  }
  func.func @transform_3(%arg0: i32) -> (i32, i32) {
    %c0_i32 = arith.constant 0 : i32
    %c0_i32_0 = arith.constant 0 : i32
    %c0_i32_1 = arith.constant 0 : i32
    return %c0_i32, %c0_i32_0 : i32, i32
  }
  func.func @transform_4(%arg0: i32) -> (i32, i32) {
    %c0_i32 = arith.constant 0 : i32
    %c0_i32_0 = arith.constant 0 : i32
    %c0_i32_1 = arith.constant 0 : i32
    return %c0_i32, %c0_i32_0 : i32, i32
  }
  func.func @transform_5(%arg0: i32) -> (i32, i32) {
    %c0_i32 = arith.constant 0 : i32
    %c0_i32_0 = arith.constant 0 : i32
    %c0_i32_1 = arith.constant 0 : i32
    return %c0_i32, %c0_i32_0 : i32, i32
  }
  func.func @transform_6(%arg0: i32) -> (i32, i32) {
    %c0_i32 = arith.constant 0 : i32
    %c0_i32_0 = arith.constant 0 : i32
    %c0_i32_1 = arith.constant 0 : i32
    return %c0_i32, %c0_i32_0 : i32, i32
  }
  func.func @transform_7(%arg0: i32) -> (i32, i32) {
    %c0_i32 = arith.constant 0 : i32
    %c0_i32_0 = arith.constant 0 : i32
    %c0_i32_1 = arith.constant 0 : i32
    return %c0_i32, %c0_i32_0 : i32, i32
  }
  func.func @transform_8(%arg0: i32) -> (i32, i32) {
    %c0_i32 = arith.constant 0 : i32
    %c0_i32_0 = arith.constant 0 : i32
    %c0_i32_1 = arith.constant 0 : i32
    return %c0_i32, %c0_i32_0 : i32, i32
  }
  func.func @transform_9(%arg0: i32) -> (i32, i32) {
    %c0_i32 = arith.constant 0 : i32
    %c0_i32_0 = arith.constant 0 : i32
    %c0_i32_1 = arith.constant 0 : i32
    return %c0_i32, %c0_i32_0 : i32, i32
  }
}

</mosaic_0001>

<llo_original>
// kernel: pallas_forward.1
$region0: #{pallas_forward.1}
  #allocation0 [shape = 'u32[]', space=smem, size = 0x4, offset = 0x4, fixed_abs, tag = 'smem constant byte address 0x4 - core index']
  #allocation1 [shape = 'u32[144,128]{1,0:T(1,128)}', space=vmem, size = 0x12000, scoped, tag = 'internal scratch']
  #allocation2 [shape = 'f32[2,10,10,1]{3,2,1,0:T(8,128)}', space=vmem, size = 0x28000, scoped, tag = 'scratch operand']
  #allocation3 [shape = 'f32[2,10,10,32]{3,2,1,0:T(8,128)}', space=vmem, size = 0x28000, scoped, tag = 'scratch operand']
  %s0 = inlined_call_operand.vmem [shape: f32[2,8,8,1], index: 0, kind: input, shape index: {}]
  %s1 = inlined_call_operand.hbm [shape: f32[9,32], index: 1, kind: input, shape index: {}]
  %s2 = inlined_call_operand.hbm [shape: f32[1,32], index: 2, kind: input, shape index: {}]
  %s3 = inlined_call_operand.vmem [shape: f32[288,64], index: 3, kind: input, shape index: {}]
  %s4 = inlined_call_operand.hbm [shape: f32[1,64], index: 4, kind: input, shape index: {}]
  %s5 = inlined_call_operand.hbm [shape: f32[4096,128], index: 5, kind: input, shape index: {}]
  %s6 = inlined_call_operand.hbm [shape: f32[1,128], index: 6, kind: input, shape index: {}]
  %s7 = inlined_call_operand.vmem [shape: f32[128,4], index: 7, kind: input, shape index: {}]
  %s8 = inlined_call_operand.hbm [shape: f32[1,4], index: 8, kind: input, shape index: {}]
  %s9 = inlined_call_operand.hbm [shape: f32[2,4], index: 9, kind: output, shape index: {}]
  %s10 = sld [smem:[#allocation0]]
  $region70: #{pallas_forward.1} parent=0
    _
  %s12 = ssub.s32 1, %s10
  %s13 = scalar_select 0, %s12, %s10
  $region1: #{pallas_forward.1} parent=0
    #allocation4 [shape = 'u8[8192]{0}', space=vmem, size = 0x2000, scoped, tag = 'input window, operand 1, single buffered']
    #allocation5 [shape = 's32[1]{0}', space=sflag, size = 0x4, scoped, tag = 'scoped memory for pallas_forward.1']
    #allocation6 [shape = 's32[1]{0}', space=sflag, size = 0x4, scoped, tag = 'scoped memory for pallas_forward.1']
    #allocation7 [shape = 'u8[512]{0}', space=vmem, size = 0x400, scoped, tag = 'input window, operand 2, single buffered']
    #allocation8 [shape = 's32[1]{0}', space=sflag, size = 0x4, scoped, tag = 'scoped memory for pallas_forward.1']
    #allocation9 [shape = 'u8[512]{0}', space=vmem, size = 0x400, scoped, tag = 'input window, operand 4, single buffered']
    #allocation10 [shape = 'u8[2097152]{0}', space=vmem, size = 0x200000, scoped, tag = 'input window, operand 5, single buffered']
    #allocation11 [shape = 's32[1]{0}', space=sflag, size = 0x4, scoped, tag = 'scoped memory for pallas_forward.1']
    #allocation12 [shape = 'u8[512]{0}', space=vmem, size = 0x400, scoped, tag = 'input window, operand 6, single buffered']
    #allocation13 [shape = 'u8[512]{0}', space=vmem, size = 0x400, scoped, tag = 'input window, operand 8, single buffered']
    #allocation14 [shape = 's32[1]{0}', space=sflag, size = 0x4, scoped, tag = 'scoped memory for pallas_forward.1']
    #allocation15 [shape = 'u8[1024]{0}', space=vmem, size = 0x400, scoped, tag = 'output window, operand 0, single buffered']
    %14 = vsyncpa [#allocation5], 0
    %15 = vsyncpa [#allocation8], 0
    %16 = vsyncpa [#allocation11], 0
    %17 = vsyncpa [#allocation14], 0
    %18 = vsyncpa [#allocation6], 0
    // Predicated region
    $region2: #{pallas_forward.1} parent=1 // pred_check
      _
    $region3: #{pallas_forward.1} parent=1 // pred_check_branch
      %20 = sbr.rel (0) target = $region5
    $region4: #{pallas_forward.1} parent=1 // pred_region
      _
    $region5: #{pallas_forward.1} parent=1 // pred_fallthru
      _
    // Predicated region
    $region6: #{pallas_forward.1} parent=1 // pred_check
      _
    $region7: #{pallas_forward.1} parent=1 // pred_check_branch
      %22 = sbr.rel (0) target = $region9
    $region8: #{pallas_forward.1} parent=1 // pred_region
      %s24 = ssub.s32 256, 256
      %25 = vsyncadd [#allocation5], %s24
      %s26 = sshll.u32 [#allocation4], 4
      %s27 = int_to_ptr.vmem [resolvable:$true] %s26
      %32 = dma.hbm_to_vmem [thread:$0]  %s1, 256, %s27, [#allocation5], 128, 128, 8
    $region9: #{pallas_forward.1} parent=1 // pred_fallthru
      _
    // Predicated region
    $region10: #{pallas_forward.1} parent=1 // pred_check
      _
    $region11: #{pallas_forward.1} parent=1 // pred_check_branch
      %34 = sbr.rel (0) target = $region13
    $region12: #{pallas_forward.1} parent=1 // pred_region
      %s36 = ssub.s32 16, 16
      %37 = vsyncadd [#allocation8], %s36
      %s39 = sshll.u32 [#allocation7], 4
      %s40 = int_to_ptr.vmem [resolvable:$true] %s39
      %42 = dma.hbm_to_vmem [thread:$0]  %s2, 16, %s40, [#allocation8]
    $region13: #{pallas_forward.1} parent=1 // pred_fallthru
      _
    // Predicated region
    $region14: #{pallas_forward.1} parent=1 // pred_check
      _
    $region15: #{pallas_forward.1} parent=1 // pred_check_branch
      %44 = sbr.rel (0) target = $region17
    $region16: #{pallas_forward.1} parent=1 // pred_region
      _
    $region17: #{pallas_forward.1} parent=1 // pred_fallthru
      _
    // Predicated region
    $region18: #{pallas_forward.1} parent=1 // pred_check
      _
    $region19: #{pallas_forward.1} parent=1 // pred_check_branch
      %46 = sbr.rel (0) target = $region21
    $region20: #{pallas_forward.1} parent=1 // pred_region
      %s48 = ssub.s32 16, 16
      %49 = vsyncadd [#allocation8], %s48
      %s51 = sshll.u32 [#allocation9], 4
      %s52 = int_to_ptr.vmem [resolvable:$true] %s51
      %54 = dma.hbm_to_vmem [thread:$0]  %s4, 16, %s52, [#allocation8]
    $region21: #{pallas_forward.1} parent=1 // pred_fallthru
      _
    // Predicated region
    $region22: #{pallas_forward.1} parent=1 // pred_check
      _
    $region23: #{pallas_forward.1} parent=1 // pred_check_branch
      %56 = sbr.rel (0) target = $region25
    $region24: #{pallas_forward.1} parent=1 // pred_region
      %s58 = ssub.s32 65536, 65536
      %59 = vsyncadd [#allocation11], %s58
      %s60 = sshll.u32 [#allocation10], 4
      %s61 = int_to_ptr.vmem [resolvable:$true] %s60
      %66 = dma.hbm_to_vmem [thread:$0]  %s5, 65536, %s61, [#allocation11], 128, 128, 8
    $region25: #{pallas_forward.1} parent=1 // pred_fallthru
      _
    // Predicated region
    $region26: #{pallas_forward.1} parent=1 // pred_check
      _
    $region27: #{pallas_forward.1} parent=1 // pred_check_branch
      %68 = sbr.rel (0) target = $region29
    $region28: #{pallas_forward.1} parent=1 // pred_region
      %s70 = ssub.s32 16, 16
      %71 = vsyncadd [#allocation11], %s70
      %s73 = sshll.u32 [#allocation12], 4
      %s74 = int_to_ptr.vmem [resolvable:$true] %s73
      %76 = dma.hbm_to_vmem [thread:$0]  %s6, 16, %s74, [#allocation11]
    $region29: #{pallas_forward.1} parent=1 // pred_fallthru
      _
    // Predicated region
    $region30: #{pallas_forward.1} parent=1 // pred_check
      _
    $region31: #{pallas_forward.1} parent=1 // pred_check_branch
      %78 = sbr.rel (0) target = $region33
    $region32: #{pallas_forward.1} parent=1 // pred_region
      _
    $region33: #{pallas_forward.1} parent=1 // pred_fallthru
      _
    // Predicated region
    $region34: #{pallas_forward.1} parent=1 // pred_check
      _
    $region35: #{pallas_forward.1} parent=1 // pred_check_branch
      %80 = sbr.rel (0) target = $region37
    $region36: #{pallas_forward.1} parent=1 // pred_region
      %s82 = ssub.s32 16, 16
      %83 = vsyncadd [#allocation14], %s82
      %s85 = sshll.u32 [#allocation13], 4
      %s86 = int_to_ptr.vmem [resolvable:$true] %s85
      %88 = dma.hbm_to_vmem [thread:$0]  %s8, 16, %s86, [#allocation14]
    $region37: #{pallas_forward.1} parent=1 // pred_fallthru
      _
    // Predicated region
    $region38: #{pallas_forward.1} parent=1 // pred_check
      _
    $region39: #{pallas_forward.1} parent=1 // pred_check_branch
      %90 = sbr.rel (0) target = $region41
    $region40: #{pallas_forward.1} parent=1 // pred_region
      %91 = dma.done [#allocation5], 256
    $region41: #{pallas_forward.1} parent=1 // pred_fallthru
      _
    // Predicated region
    $region42: #{pallas_forward.1} parent=1 // pred_check
      _
    $region43: #{pallas_forward.1} parent=1 // pred_check_branch
      %93 = sbr.rel (0) target = $region45
    $region44: #{pallas_forward.1} parent=1 // pred_region
      %94 = dma.done [#allocation8], 16
    $region45: #{pallas_forward.1} parent=1 // pred_fallthru
      _
    // Predicated region
    $region46: #{pallas_forward.1} parent=1 // pred_check
      _
    $region47: #{pallas_forward.1} parent=1 // pred_check_branch
      %96 = sbr.rel (0) target = $region49
    $region48: #{pallas_forward.1} parent=1 // pred_region
      %97 = dma.done [#allocation8], 16
    $region49: #{pallas_forward.1} parent=1 // pred_fallthru
      _
    // Predicated region
    $region50: #{pallas_forward.1} parent=1 // pred_check
      _
    $region51: #{pallas_forward.1} parent=1 // pred_check_branch
      %99 = sbr.rel (0) target = $region53
    $region52: #{pallas_forward.1} parent=1 // pred_region
      %100 = dma.done [#allocation11], 65536
    $region53: #{pallas_forward.1} parent=1 // pred_fallthru
      _
    // Predicated region
    $region54: #{pallas_forward.1} parent=1 // pred_check
      _
    $region55: #{pallas_forward.1} parent=1 // pred_check_branch
      %102 = sbr.rel (0) target = $region57
    $region56: #{pallas_forward.1} parent=1 // pred_region
      %103 = dma.done [#allocation11], 16
    $region57: #{pallas_forward.1} parent=1 // pred_fallthru
      _
    // Predicated region
    $region58: #{pallas_forward.1} parent=1 // pred_check
      _
    $region59: #{pallas_forward.1} parent=1 // pred_check_branch
      %105 = sbr.rel (0) target = $region61
    $region60: #{pallas_forward.1} parent=1 // pred_region
      %106 = dma.done [#allocation14], 16
    $region61: #{pallas_forward.1} parent=1 // pred_fallthru
      _
    %v107 = vld [vmem:[%s0] sm:$0xff]
    %v108 = vld [vmem:[%s0 + $0x8] sm:$0xff]
    %v109 = vld [vmem:[%s0 + $0x10] sm:$0xff]
    %v110 = vld [vmem:[%s0 + $0x18] sm:$0xff]
    %v111 = vld [vmem:[%s0 + $0x20] sm:$0xff]
    %v112 = vld [vmem:[%s0 + $0x28] sm:$0xff]
    %v113 = vld [vmem:[%s0 + $0x30] sm:$0xff]
    %v114 = vld [vmem:[%s0 + $0x38] sm:$0xff]
    %v115 = vld [vmem:[%s0 + $0x40] sm:$0xff]
    %v116 = vld [vmem:[%s0 + $0x48] sm:$0xff]
    %v117 = vld [vmem:[%s0 + $0x50] sm:$0xff]
    %v118 = vld [vmem:[%s0 + $0x58] sm:$0xff]
    %v119 = vld [vmem:[%s0 + $0x60] sm:$0xff]
    %v120 = vld [vmem:[%s0 + $0x68] sm:$0xff]
    %v121 = vld [vmem:[%s0 + $0x70] sm:$0xff]
    %v122 = vld [vmem:[%s0 + $0x78] sm:$0xff]
    %vm123 = vcmask 7168
    %124 = vst.msk [vmem:[#allocation2] sm:$0xff] %vm123, 0.0
    %vm125 = vcmask 1024
    %126 = vst.msk [vmem:[#allocation2 + $0x8] sm:$0x3] %vm125, 0.0
    %127 = vst.msk [vmem:[#allocation2 + $0xa0] sm:$0xff] %vm123, 0.0
    %128 = vst.msk [vmem:[#allocation2 + $0xa8] sm:$0x3] %vm125, 0.0
    %s129 = scalar_lea.vmem [#allocation2], 144
    %130 = vst.msk [vmem:[%s129] sm:$0xff] %vm123, 0.0
    %131 = vst.msk [vmem:[%s129 + $0x8] sm:$0x3] %vm125, 0.0
    %132 = vst.msk [vmem:[%s129 + $0xa0] sm:$0xff] %vm123, 0.0
    %133 = vst.msk [vmem:[%s129 + $0xa8] sm:$0x3] %vm125, 0.0
    %s134 = scalar_lea.vmem [#allocation2], 16
    %vm135 = vcmask 0
    %136 = vst.msk [vmem:[%s134] sm:$0x1] %vm135, 0.0
    %137 = vst.msk [vmem:[%s134 + $0x10] sm:$0x1] %vm135, 0.0
    %138 = vst.msk [vmem:[%s134 + $0x20] sm:$0x1] %vm135, 0.0
    %139 = vst.msk [vmem:[%s134 + $0x30] sm:$0x1] %vm135, 0.0
    %140 = vst.msk [vmem:[%s134 + $0x40] sm:$0x1] %vm135, 0.0
    %141 = vst.msk [vmem:[%s134 + $0x50] sm:$0x1] %vm135, 0.0
    %142 = vst.msk [vmem:[%s134 + $0x60] sm:$0x1] %vm135, 0.0
    %143 = vst.msk [vmem:[%s134 + $0x70] sm:$0x1] %vm135, 0.0
    %144 = vst.msk [vmem:[%s134 + $0xa0] sm:$0x1] %vm135, 0.0
    %145 = vst.msk [vmem:[%s134 + $0xb0] sm:$0x1] %vm135, 0.0
    %146 = vst.msk [vmem:[%s134 + $0xc0] sm:$0x1] %vm135, 0.0
    %147 = vst.msk [vmem:[%s134 + $0xd0] sm:$0x1] %vm135, 0.0
    %148 = vst.msk [vmem:[%s134 + $0xe0] sm:$0x1] %vm135, 0.0
    %149 = vst.msk [vmem:[%s134 + $0xf0] sm:$0x1] %vm135, 0.0
    %150 = vst.msk [vmem:[%s134 + $0x100] sm:$0x1] %vm135, 0.0
    %151 = vst.msk [vmem:[%s134 + $0x110] sm:$0x1] %vm135, 0.0
    %152 = vst.msk [vmem:[%s134 + $0x9] sm:$0x1] %vm135, 0.0
    %153 = vst.msk [vmem:[%s134 + $0x19] sm:$0x1] %vm135, 0.0
    %154 = vst.msk [vmem:[%s134 + $0x29] sm:$0x1] %vm135, 0.0
    %155 = vst.msk [vmem:[%s134 + $0x39] sm:$0x1] %vm135, 0.0
    %156 = vst.msk [vmem:[%s134 + $0x49] sm:$0x1] %vm135, 0.0
    %157 = vst.msk [vmem:[%s134 + $0x59] sm:$0x1] %vm135, 0.0
    %158 = vst.msk [vmem:[%s134 + $0x69] sm:$0x1] %vm135, 0.0
    %159 = vst.msk [vmem:[%s134 + $0x79] sm:$0x1] %vm135, 0.0
    %160 = vst.msk [vmem:[%s134 + $0xa9] sm:$0x1] %vm135, 0.0
    %161 = vst.msk [vmem:[%s134 + $0xb9] sm:$0x1] %vm135, 0.0
    %162 = vst.msk [vmem:[%s134 + $0xc9] sm:$0x1] %vm135, 0.0
    %163 = vst.msk [vmem:[%s134 + $0xd9] sm:$0x1] %vm135, 0.0
    %164 = vst.msk [vmem:[%s134 + $0xe9] sm:$0x1] %vm135, 0.0
    %165 = vst.msk [vmem:[%s134 + $0xf9] sm:$0x1] %vm135, 0.0
    %166 = vst.msk [vmem:[%s134 + $0x109] sm:$0x1] %vm135, 0.0
    %167 = vst.msk [vmem:[%s134 + $0x119] sm:$0x1] %vm135, 0.0
    %168 = vst.msk [vmem:[%s134 + $0x1] sm:$0xff] %vm123, %v107
    %169 = vst.msk [vmem:[%s134 + $0x11] sm:$0xff] %vm123, %v108
    %170 = vst.msk [vmem:[%s134 + $0x21] sm:$0xff] %vm123, %v109
    %171 = vst.msk [vmem:[%s134 + $0x31] sm:$0xff] %vm123, %v110
    %172 = vst.msk [vmem:[%s134 + $0x41] sm:$0xff] %vm123, %v111
    %173 = vst.msk [vmem:[%s134 + $0x51] sm:$0xff] %vm123, %v112
    %174 = vst.msk [vmem:[%s134 + $0x61] sm:$0xff] %vm123, %v113
    %175 = vst.msk [vmem:[%s134 + $0x71] sm:$0xff] %vm123, %v114
    %176 = vst.msk [vmem:[%s134 + $0xa1] sm:$0xff] %vm123, %v115
    %177 = vst.msk [vmem:[%s134 + $0xb1] sm:$0xff] %vm123, %v116
    %178 = vst.msk [vmem:[%s134 + $0xc1] sm:$0xff] %vm123, %v117
    %179 = vst.msk [vmem:[%s134 + $0xd1] sm:$0xff] %vm123, %v118
    %180 = vst.msk [vmem:[%s134 + $0xe1] sm:$0xff] %vm123, %v119
    %181 = vst.msk [vmem:[%s134 + $0xf1] sm:$0xff] %vm123, %v120
    %182 = vst.msk [vmem:[%s134 + $0x101] sm:$0xff] %vm123, %v121
    %183 = vst.msk [vmem:[%s134 + $0x111] sm:$0xff] %vm123, %v122
    %v184 = vld [vmem:[#allocation2] sm:$0xff]
    %v185 = vld [vmem:[#allocation2 + $0x10] sm:$0xff]
    %v186 = vld [vmem:[#allocation2 + $0x20] sm:$0xff]
    %v187 = vld [vmem:[#allocation2 + $0x30] sm:$0xff]
    %v188 = vld [vmem:[#allocation2 + $0x40] sm:$0xff]
    %v189 = vld [vmem:[#allocation2 + $0x50] sm:$0xff]
    %v190 = vld [vmem:[#allocation2 + $0x60] sm:$0xff]
    %v191 = vld [vmem:[#allocation2 + $0x70] sm:$0xff]
    %v192 = vld [vmem:[#allocation2 + $0xa0] sm:$0xff]
    %v193 = vld [vmem:[#allocation2 + $0xb0] sm:$0xff]
    %v194 = vld [vmem:[#allocation2 + $0xc0] sm:$0xff]
    %v195 = vld [vmem:[#allocation2 + $0xd0] sm:$0xff]
    %v196 = vld [vmem:[#allocation2 + $0xe0] sm:$0xff]
    %v197 = vld [vmem:[#allocation2 + $0xf0] sm:$0xff]
    %v198 = vld [vmem:[#allocation2 + $0x100] sm:$0xff]
    %v199 = vld [vmem:[#allocation2 + $0x110] sm:$0xff]
    %v200 = vld [vmem:[#allocation2 + $0x1] sm:$0xff]
    %v201 = vld [vmem:[#allocation2 + $0x11] sm:$0xff]
    %v202 = vld [vmem:[#allocation2 + $0x21] sm:$0xff]
    %v203 = vld [vmem:[#allocation2 + $0x31] sm:$0xff]
    %v204 = vld [vmem:[#allocation2 + $0x41] sm:$0xff]
    %v205 = vld [vmem:[#allocation2 + $0x51] sm:$0xff]
    %v206 = vld [vmem:[#allocation2 + $0x61] sm:$0xff]
    %v207 = vld [vmem:[#allocation2 + $0x71] sm:$0xff]
    %v208 = vld [vmem:[#allocation2 + $0xa1] sm:$0xff]
    %v209 = vld [vmem:[#allocation2 + $0xb1] sm:$0xff]
    %v210 = vld [vmem:[#allocation2 + $0xc1] sm:$0xff]
    %v211 = vld [vmem:[#allocation2 + $0xd1] sm:$0xff]
    %v212 = vld [vmem:[#allocation2 + $0xe1] sm:$0xff]
    %v213 = vld [vmem:[#allocation2 + $0xf1] sm:$0xff]
    %v214 = vld [vmem:[#allocation2 + $0x101] sm:$0xff]
    %v215 = vld [vmem:[#allocation2 + $0x111] sm:$0xff]
    %v216 = vld [vmem:[#allocation2 + $0x2] sm:$0xff]
    %v217 = vld [vmem:[#allocation2 + $0x12] sm:$0xff]
    %v218 = vld [vmem:[#allocation2 + $0x22] sm:$0xff]
    %v219 = vld [vmem:[#allocation2 + $0x32] sm:$0xff]
    %v220 = vld [vmem:[#allocation2 + $0x42] sm:$0xff]
    %v221 = vld [vmem:[#allocation2 + $0x52] sm:$0xff]
    %v222 = vld [vmem:[#allocation2 + $0x62] sm:$0xff]
    %v223 = vld [vmem:[#allocation2 + $0x72] sm:$0xff]
    %v224 = vld [vmem:[#allocation2 + $0xa2] sm:$0xff]
    %v225 = vld [vmem:[#allocation2 + $0xb2] sm:$0xff]
    %v226 = vld [vmem:[#allocation2 + $0xc2] sm:$0xff]
    %v227 = vld [vmem:[#allocation2 + $0xd2] sm:$0xff]
    %v228 = vld [vmem:[#allocation2 + $0xe2] sm:$0xff]
    %v229 = vld [vmem:[#allocation2 + $0xf2] sm:$0xff]
    %v230 = vld [vmem:[#allocation2 + $0x102] sm:$0xff]
    %v231 = vld [vmem:[#allocation2 + $0x112] sm:$0xff]
    %v232 = vld [vmem:[%s134] sm:$0xff]
    %v233 = vld [vmem:[%s134 + $0x10] sm:$0xff]
    %v234 = vld [vmem:[%s134 + $0x20] sm:$0xff]
    %v235 = vld [vmem:[%s134 + $0x30] sm:$0xff]
    %v236 = vld [vmem:[%s134 + $0x40] sm:$0xff]
    %v237 = vld [vmem:[%s134 + $0x50] sm:$0xff]
    %v238 = vld [vmem:[%s134 + $0x60] sm:$0xff]
    %v239 = vld [vmem:[%s134 + $0x70] sm:$0xff]
    %v240 = vld [vmem:[%s134 + $0xa0] sm:$0xff]
    %v241 = vld [vmem:[%s134 + $0xb0] sm:$0xff]
    %v242 = vld [vmem:[%s134 + $0xc0] sm:$0xff]
    %v243 = vld [vmem:[%s134 + $0xd0] sm:$0xff]
    %v244 = vld [vmem:[%s134 + $0xe0] sm:$0xff]
    %v245 = vld [vmem:[%s134 + $0xf0] sm:$0xff]
    %v246 = vld [vmem:[%s134 + $0x100] sm:$0xff]
    %v247 = vld [vmem:[%s134 + $0x110] sm:$0xff]
    %v248 = vld [vmem:[%s134 + $0x1] sm:$0xff]
    %v249 = vld [vmem:[%s134 + $0x11] sm:$0xff]
    %v250 = vld [vmem:[%s134 + $0x21] sm:$0xff]
    %v251 = vld [vmem:[%s134 + $0x31] sm:$0xff]
    %v252 = vld [vmem:[%s134 + $0x41] sm:$0xff]
    %v253 = vld [vmem:[%s134 + $0x51] sm:$0xff]
    %v254 = vld [vmem:[%s134 + $0x61] sm:$0xff]
    %v255 = vld [vmem:[%s134 + $0x71] sm:$0xff]
    %v256 = vld [vmem:[%s134 + $0xa1] sm:$0xff]
    %v257 = vld [vmem:[%s134 + $0xb1] sm:$0xff]
    %v258 = vld [vmem:[%s134 + $0xc1] sm:$0xff]
    %v259 = vld [vmem:[%s134 + $0xd1] sm:$0xff]
    %v260 = vld [vmem:[%s134 + $0xe1] sm:$0xff]
    %v261 = vld [vmem:[%s134 + $0xf1] sm:$0xff]
    %v262 = vld [vmem:[%s134 + $0x101] sm:$0xff]
    %v263 = vld [vmem:[%s134 + $0x111] sm:$0xff]
    %v264 = vld [vmem:[%s134 + $0x2] sm:$0xff]
    %v265 = vld [vmem:[%s134 + $0x12] sm:$0xff]
    %v266 = vld [vmem:[%s134 + $0x22] sm:$0xff]
    %v267 = vld [vmem:[%s134 + $0x32] sm:$0xff]
    %v268 = vld [vmem:[%s134 + $0x42] sm:$0xff]
    %v269 = vld [vmem:[%s134 + $0x52] sm:$0xff]
    %v270 = vld [vmem:[%s134 + $0x62] sm:$0xff]
    %v271 = vld [vmem:[%s134 + $0x72] sm:$0xff]
    %v272 = vld [vmem:[%s134 + $0xa2] sm:$0xff]
    %v273 = vld [vmem:[%s134 + $0xb2] sm:$0xff]
    %v274 = vld [vmem:[%s134 + $0xc2] sm:$0xff]
    %v275 = vld [vmem:[%s134 + $0xd2] sm:$0xff]
    %v276 = vld [vmem:[%s134 + $0xe2] sm:$0xff]
    %v277 = vld [vmem:[%s134 + $0xf2] sm:$0xff]
    %v278 = vld [vmem:[%s134 + $0x102] sm:$0xff]
    %v279 = vld [vmem:[%s134 + $0x112] sm:$0xff]
    %s280 = scalar_lea.vmem [#allocation2], 32
    %v281 = vld [vmem:[%s280] sm:$0xff]
    %v282 = vld [vmem:[%s280 + $0x10] sm:$0xff]
    %v283 = vld [vmem:[%s280 + $0x20] sm:$0xff]
    %v284 = vld [vmem:[%s280 + $0x30] sm:$0xff]
    %v285 = vld [vmem:[%s280 + $0x40] sm:$0xff]
    %v286 = vld [vmem:[%s280 + $0x50] sm:$0xff]
    %v287 = vld [vmem:[%s280 + $0x60] sm:$0xff]
    %v288 = vld [vmem:[%s280 + $0x70] sm:$0xff]
    %v289 = vld [vmem:[%s280 + $0xa0] sm:$0xff]
    %v290 = vld [vmem:[%s280 + $0xb0] sm:$0xff]
    %v291 = vld [vmem:[%s280 + $0xc0] sm:$0xff]
    %v292 = vld [vmem:[%s280 + $0xd0] sm:$0xff]
    %v293 = vld [vmem:[%s280 + $0xe0] sm:$0xff]
    %v294 = vld [vmem:[%s280 + $0xf0] sm:$0xff]
    %v295 = vld [vmem:[%s280 + $0x100] sm:$0xff]
    %v296 = vld [vmem:[%s280 + $0x110] sm:$0xff]
    %v297 = vld [vmem:[%s280 + $0x1] sm:$0xff]
    %v298 = vld [vmem:[%s280 + $0x11] sm:$0xff]
    %v299 = vld [vmem:[%s280 + $0x21] sm:$0xff]
    %v300 = vld [vmem:[%s280 + $0x31] sm:$0xff]
    %v301 = vld [vmem:[%s280 + $0x41] sm:$0xff]
    %v302 = vld [vmem:[%s280 + $0x51] sm:$0xff]
    %v303 = vld [vmem:[%s280 + $0x61] sm:$0xff]
    %v304 = vld [vmem:[%s280 + $0x71] sm:$0xff]
    %v305 = vld [vmem:[%s280 + $0xa1] sm:$0xff]
    %v306 = vld [vmem:[%s280 + $0xb1] sm:$0xff]
    %v307 = vld [vmem:[%s280 + $0xc1] sm:$0xff]
    %v308 = vld [vmem:[%s280 + $0xd1] sm:$0xff]
    %v309 = vld [vmem:[%s280 + $0xe1] sm:$0xff]
    %v310 = vld [vmem:[%s280 + $0xf1] sm:$0xff]
    %v311 = vld [vmem:[%s280 + $0x101] sm:$0xff]
    %v312 = vld [vmem:[%s280 + $0x111] sm:$0xff]
    %v313 = vld [vmem:[%s280 + $0x2] sm:$0xff]
    %v314 = vld [vmem:[%s280 + $0x12] sm:$0xff]
    %v315 = vld [vmem:[%s280 + $0x22] sm:$0xff]
    %v316 = vld [vmem:[%s280 + $0x32] sm:$0xff]
    %v317 = vld [vmem:[%s280 + $0x42] sm:$0xff]
    %v318 = vld [vmem:[%s280 + $0x52] sm:$0xff]
    %v319 = vld [vmem:[%s280 + $0x62] sm:$0xff]
    %v320 = vld [vmem:[%s280 + $0x72] sm:$0xff]
    %v321 = vld [vmem:[%s280 + $0xa2] sm:$0xff]
    %v322 = vld [vmem:[%s280 + $0xb2] sm:$0xff]
    %v323 = vld [vmem:[%s280 + $0xc2] sm:$0xff]
    %v324 = vld [vmem:[%s280 + $0xd2] sm:$0xff]
    %v325 = vld [vmem:[%s280 + $0xe2] sm:$0xff]
    %v326 = vld [vmem:[%s280 + $0xf2] sm:$0xff]
    %v327 = vld [vmem:[%s280 + $0x102] sm:$0xff]
    %v328 = vld [vmem:[%s280 + $0x112] sm:$0xff]
    %345 = vrot.lane.b32.xlu0 %v200, 1
    %v346 = vpop.permute.xlu0 %345
    %347 = vrot.lane.b32.xlu0 %v201, 1
    %v348 = vpop.permute.xlu0 %347
    %349 = vrot.lane.b32.xlu0 %v202, 1
    %v350 = vpop.permute.xlu0 %349
    %351 = vrot.lane.b32.xlu0 %v203, 1
    %v352 = vpop.permute.xlu0 %351
    %353 = vrot.lane.b32.xlu0 %v204, 1
    %v354 = vpop.permute.xlu0 %353
    %355 = vrot.lane.b32.xlu0 %v205, 1
    %v356 = vpop.permute.xlu0 %355
    %357 = vrot.lane.b32.xlu0 %v206, 1
    %v358 = vpop.permute.xlu0 %357
    %359 = vrot.lane.b32.xlu0 %v207, 1
    %v360 = vpop.permute.xlu0 %359
    %361 = vrot.lane.b32.xlu0 %v208, 1
    %v362 = vpop.permute.xlu0 %361
    %363 = vrot.lane.b32.xlu0 %v209, 1
    %v364 = vpop.permute.xlu0 %363
    %365 = vrot.lane.b32.xlu0 %v210, 1
    %v366 = vpop.permute.xlu0 %365
    %367 = vrot.lane.b32.xlu0 %v211, 1
    %v368 = vpop.permute.xlu0 %367
    %369 = vrot.lane.b32.xlu0 %v212, 1
    %v370 = vpop.permute.xlu0 %369
    %371 = vrot.lane.b32.xlu0 %v213, 1
    %v372 = vpop.permute.xlu0 %371
    %373 = vrot.lane.b32.xlu0 %v214, 1
    %v374 = vpop.permute.xlu0 %373
    %375 = vrot.lane.b32.xlu0 %v215, 1
    %v376 = vpop.permute.xlu0 %375
    %409 = vrot.lane.b32.xlu0 %v216, 2
    %v410 = vpop.permute.xlu0 %409
    %411 = vrot.lane.b32.xlu0 %v217, 2
    %v412 = vpop.permute.xlu0 %411
    %413 = vrot.lane.b32.xlu0 %v218, 2
    %v414 = vpop.permute.xlu0 %413
    %415 = vrot.lane.b32.xlu0 %v219, 2
    %v416 = vpop.permute.xlu0 %415
    %417 = vrot.lane.b32.xlu0 %v220, 2
    %v418 = vpop.permute.xlu0 %417
    %419 = vrot.lane.b32.xlu0 %v221, 2
    %v420 = vpop.permute.xlu0 %419
    %421 = vrot.lane.b32.xlu0 %v222, 2
    %v422 = vpop.permute.xlu0 %421
    %423 = vrot.lane.b32.xlu0 %v223, 2
    %v424 = vpop.permute.xlu0 %423
    %425 = vrot.lane.b32.xlu0 %v224, 2
    %v426 = vpop.permute.xlu0 %425
    %427 = vrot.lane.b32.xlu0 %v225, 2
    %v428 = vpop.permute.xlu0 %427
    %429 = vrot.lane.b32.xlu0 %v226, 2
    %v430 = vpop.permute.xlu0 %429
    %431 = vrot.lane.b32.xlu0 %v227, 2
    %v432 = vpop.permute.xlu0 %431
    %433 = vrot.lane.b32.xlu0 %v228, 2
    %v434 = vpop.permute.xlu0 %433
    %435 = vrot.lane.b32.xlu0 %v229, 2
    %v436 = vpop.permute.xlu0 %435
    %437 = vrot.lane.b32.xlu0 %v230, 2
    %v438 = vpop.permute.xlu0 %437
    %439 = vrot.lane.b32.xlu0 %v231, 2
    %v440 = vpop.permute.xlu0 %439
    %473 = vrot.lane.b32.xlu0 %v232, 3
    %v474 = vpop.permute.xlu0 %473
    %475 = vrot.lane.b32.xlu0 %v233, 3
    %v476 = vpop.permute.xlu0 %475
    %477 = vrot.lane.b32.xlu0 %v234, 3
    %v478 = vpop.permute.xlu0 %477
    %479 = vrot.lane.b32.xlu0 %v235, 3
    %v480 = vpop.permute.xlu0 %479
    %481 = vrot.lane.b32.xlu0 %v236, 3
    %v482 = vpop.permute.xlu0 %481
    %483 = vrot.lane.b32.xlu0 %v237, 3
    %v484 = vpop.permute.xlu0 %483
    %485 = vrot.lane.b32.xlu0 %v238, 3
    %v486 = vpop.permute.xlu0 %485
    %487 = vrot.lane.b32.xlu0 %v239, 3
    %v488 = vpop.permute.xlu0 %487
    %489 = vrot.lane.b32.xlu0 %v240, 3
    %v490 = vpop.permute.xlu0 %489
    %491 = vrot.lane.b32.xlu0 %v241, 3
    %v492 = vpop.permute.xlu0 %491
    %493 = vrot.lane.b32.xlu0 %v242, 3
    %v494 = vpop.permute.xlu0 %493
    %495 = vrot.lane.b32.xlu0 %v243, 3
    %v496 = vpop.permute.xlu0 %495
    %497 = vrot.lane.b32.xlu0 %v244, 3
    %v498 = vpop.permute.xlu0 %497
    %499 = vrot.lane.b32.xlu0 %v245, 3
    %v500 = vpop.permute.xlu0 %499
    %501 = vrot.lane.b32.xlu0 %v246, 3
    %v502 = vpop.permute.xlu0 %501
    %503 = vrot.lane.b32.xlu0 %v247, 3
    %v504 = vpop.permute.xlu0 %503
    %537 = vrot.lane.b32.xlu0 %v248, 4
    %v538 = vpop.permute.xlu0 %537
    %539 = vrot.lane.b32.xlu0 %v249, 4
    %v540 = vpop.permute.xlu0 %539
    %541 = vrot.lane.b32.xlu0 %v250, 4
    %v542 = vpop.permute.xlu0 %541
    %543 = vrot.lane.b32.xlu0 %v251, 4
    %v544 = vpop.permute.xlu0 %543
    %545 = vrot.lane.b32.xlu0 %v252, 4
    %v546 = vpop.permute.xlu0 %545
    %547 = vrot.lane.b32.xlu0 %v253, 4
    %v548 = vpop.permute.xlu0 %547
    %549 = vrot.lane.b32.xlu0 %v254, 4
    %v550 = vpop.permute.xlu0 %549
    %551 = vrot.lane.b32.xlu0 %v255, 4
    %v552 = vpop.permute.xlu0 %551
    %553 = vrot.lane.b32.xlu0 %v256, 4
    %v554 = vpop.permute.xlu0 %553
    %555 = vrot.lane.b32.xlu0 %v257, 4
    %v556 = vpop.permute.xlu0 %555
    %557 = vrot.lane.b32.xlu0 %v258, 4
    %v558 = vpop.permute.xlu0 %557
    %559 = vrot.lane.b32.xlu0 %v259, 4
    %v560 = vpop.permute.xlu0 %559
    %561 = vrot.lane.b32.xlu0 %v260, 4
    %v562 = vpop.permute.xlu0 %561
    %563 = vrot.lane.b32.xlu0 %v261, 4
    %v564 = vpop.permute.xlu0 %563
    %565 = vrot.lane.b32.xlu0 %v262, 4
    %v566 = vpop.permute.xlu0 %565
    %567 = vrot.lane.b32.xlu0 %v263, 4
    %v568 = vpop.permute.xlu0 %567
    %601 = vrot.lane.b32.xlu0 %v264, 5
    %v602 = vpop.permute.xlu0 %601
    %603 = vrot.lane.b32.xlu0 %v265, 5
    %v604 = vpop.permute.xlu0 %603
    %605 = vrot.lane.b32.xlu0 %v266, 5
    %v606 = vpop.permute.xlu0 %605
    %607 = vrot.lane.b32.xlu0 %v267, 5
    %v608 = vpop.permute.xlu0 %607
    %609 = vrot.lane.b32.xlu0 %v268, 5
    %v610 = vpop.permute.xlu0 %609
    %611 = vrot.lane.b32.xlu0 %v269, 5
    %v612 = vpop.permute.xlu0 %611
    %613 = vrot.lane.b32.xlu0 %v270, 5
    %v614 = vpop.permute.xlu0 %613
    %615 = vrot.lane.b32.xlu0 %v271, 5
    %v616 = vpop.permute.xlu0 %615
    %617 = vrot.lane.b32.xlu0 %v272, 5
    %v618 = vpop.permute.xlu0 %617
    %619 = vrot.lane.b32.xlu0 %v273, 5
    %v620 = vpop.permute.xlu0 %619
    %621 = vrot.lane.b32.xlu0 %v274, 5
    %v622 = vpop.permute.xlu0 %621
    %623 = vrot.lane.b32.xlu0 %v275, 5
    %v624 = vpop.permute.xlu0 %623
    %625 = vrot.lane.b32.xlu0 %v276, 5
    %v626 = vpop.permute.xlu0 %625
    %627 = vrot.lane.b32.xlu0 %v277, 5
    %v628 = vpop.permute.xlu0 %627
    %629 = vrot.lane.b32.xlu0 %v278, 5
    %v630 = vpop.permute.xlu0 %629
    %631 = vrot.lane.b32.xlu0 %v279, 5
    %v632 = vpop.permute.xlu0 %631
    %665 = vrot.lane.b32.xlu0 %v281, 6
    %v666 = vpop.permute.xlu0 %665
    %667 = vrot.lane.b32.xlu0 %v282, 6
    %v668 = vpop.permute.xlu0 %667
    %669 = vrot.lane.b32.xlu0 %v283, 6
    %v670 = vpop.permute.xlu0 %669
    %671 = vrot.lane.b32.xlu0 %v284, 6
    %v672 = vpop.permute.xlu0 %671
    %673 = vrot.lane.b32.xlu0 %v285, 6
    %v674 = vpop.permute.xlu0 %673
    %675 = vrot.lane.b32.xlu0 %v286, 6
    %v676 = vpop.permute.xlu0 %675
    %677 = vrot.lane.b32.xlu0 %v287, 6
    %v678 = vpop.permute.xlu0 %677
    %679 = vrot.lane.b32.xlu0 %v288, 6
    %v680 = vpop.permute.xlu0 %679
    %681 = vrot.lane.b32.xlu0 %v289, 6
    %v682 = vpop.permute.xlu0 %681
    %683 = vrot.lane.b32.xlu0 %v290, 6
    %v684 = vpop.permute.xlu0 %683
    %685 = vrot.lane.b32.xlu0 %v291, 6
    %v686 = vpop.permute.xlu0 %685
    %687 = vrot.lane.b32.xlu0 %v292, 6
    %v688 = vpop.permute.xlu0 %687
    %689 = vrot.lane.b32.xlu0 %v293, 6
    %v690 = vpop.permute.xlu0 %689
    %691 = vrot.lane.b32.xlu0 %v294, 6
    %v692 = vpop.permute.xlu0 %691
    %693 = vrot.lane.b32.xlu0 %v295, 6
    %v694 = vpop.permute.xlu0 %693
    %695 = vrot.lane.b32.xlu0 %v296, 6
    %v696 = vpop.permute.xlu0 %695
    %729 = vrot.lane.b32.xlu0 %v297, 7
    %v730 = vpop.permute.xlu0 %729
    %731 = vrot.lane.b32.xlu0 %v298, 7
    %v732 = vpop.permute.xlu0 %731
    %733 = vrot.lane.b32.xlu0 %v299, 7
    %v734 = vpop.permute.xlu0 %733
    %735 = vrot.lane.b32.xlu0 %v300, 7
    %v736 = vpop.permute.xlu0 %735
    %737 = vrot.lane.b32.xlu0 %v301, 7
    %v738 = vpop.permute.xlu0 %737
    %739 = vrot.lane.b32.xlu0 %v302, 7
    %v740 = vpop.permute.xlu0 %739
    %741 = vrot.lane.b32.xlu0 %v303, 7
    %v742 = vpop.permute.xlu0 %741
    %743 = vrot.lane.b32.xlu0 %v304, 7
    %v744 = vpop.permute.xlu0 %743
    %745 = vrot.lane.b32.xlu0 %v305, 7
    %v746 = vpop.permute.xlu0 %745
    %747 = vrot.lane.b32.xlu0 %v306, 7
    %v748 = vpop.permute.xlu0 %747
    %749 = vrot.lane.b32.xlu0 %v307, 7
    %v750 = vpop.permute.xlu0 %749
    %751 = vrot.lane.b32.xlu0 %v308, 7
    %v752 = vpop.permute.xlu0 %751
    %753 = vrot.lane.b32.xlu0 %v309, 7
    %v754 = vpop.permute.xlu0 %753
    %755 = vrot.lane.b32.xlu0 %v310, 7
    %v756 = vpop.permute.xlu0 %755
    %757 = vrot.lane.b32.xlu0 %v311, 7
    %v758 = vpop.permute.xlu0 %757
    %759 = vrot.lane.b32.xlu0 %v312, 7
    %v760 = vpop.permute.xlu0 %759
    %793 = vrot.lane.b32.xlu0 %v313, 8
    %v794 = vpop.permute.xlu0 %793
    %795 = vrot.lane.b32.xlu0 %v314, 8
    %v796 = vpop.permute.xlu0 %795
    %797 = vrot.lane.b32.xlu0 %v315, 8
    %v798 = vpop.permute.xlu0 %797
    %799 = vrot.lane.b32.xlu0 %v316, 8
    %v800 = vpop.permute.xlu0 %799
    %801 = vrot.lane.b32.xlu0 %v317, 8
    %v802 = vpop.permute.xlu0 %801
    %803 = vrot.lane.b32.xlu0 %v318, 8
    %v804 = vpop.permute.xlu0 %803
    %805 = vrot.lane.b32.xlu0 %v319, 8
    %v806 = vpop.permute.xlu0 %805
    %807 = vrot.lane.b32.xlu0 %v320, 8
    %v808 = vpop.permute.xlu0 %807
    %809 = vrot.lane.b32.xlu0 %v321, 8
    %v810 = vpop.permute.xlu0 %809
    %811 = vrot.lane.b32.xlu0 %v322, 8
    %v812 = vpop.permute.xlu0 %811
    %813 = vrot.lane.b32.xlu0 %v323, 8
    %v814 = vpop.permute.xlu0 %813
    %815 = vrot.lane.b32.xlu0 %v324, 8
    %v816 = vpop.permute.xlu0 %815
    %817 = vrot.lane.b32.xlu0 %v325, 8
    %v818 = vpop.permute.xlu0 %817
    %819 = vrot.lane.b32.xlu0 %v326, 8
    %v820 = vpop.permute.xlu0 %819
    %821 = vrot.lane.b32.xlu0 %v327, 8
    %v822 = vpop.permute.xlu0 %821
    %823 = vrot.lane.b32.xlu0 %v328, 8
    %v824 = vpop.permute.xlu0 %823
    %v841 = vsel %vm123, %v184, %v346
    %v842 = vsel %vm123, %v185, %v348
    %v843 = vsel %vm123, %v186, %v350
    %v844 = vsel %vm123, %v187, %v352
    %v845 = vsel %vm123, %v188, %v354
    %v846 = vsel %vm123, %v189, %v356
    %v847 = vsel %vm123, %v190, %v358
    %v848 = vsel %vm123, %v191, %v360
    %v849 = vsel %vm123, %v192, %v362
    %v850 = vsel %vm123, %v193, %v364
    %v851 = vsel %vm123, %v194, %v366
    %v852 = vsel %vm123, %v195, %v368
    %v853 = vsel %vm123, %v196, %v370
    %v854 = vsel %vm123, %v197, %v372
    %v855 = vsel %vm123, %v198, %v374
    %v856 = vsel %vm123, %v199, %v376
    %vm857 = vcmask 15360
    %v858 = vsel %vm857, %v841, %v410
    %v859 = vsel %vm857, %v842, %v412
    %v860 = vsel %vm857, %v843, %v414
    %v861 = vsel %vm857, %v844, %v416
    %v862 = vsel %vm857, %v845, %v418
    %v863 = vsel %vm857, %v846, %v420
    %v864 = vsel %vm857, %v847, %v422
    %v865 = vsel %vm857, %v848, %v424
    %v866 = vsel %vm857, %v849, %v426
    %v867 = vsel %vm857, %v850, %v428
    %v868 = vsel %vm857, %v851, %v430
    %v869 = vsel %vm857, %v852, %v432
    %v870 = vsel %vm857, %v853, %v434
    %v871 = vsel %vm857, %v854, %v436
    %v872 = vsel %vm857, %v855, %v438
    %v873 = vsel %vm857, %v856, %v440
    %vm874 = vcmask 23552
    %v875 = vsel %vm874, %v858, %v474
    %v876 = vsel %vm874, %v859, %v476
    %v877 = vsel %vm874, %v860, %v478
    %v878 = vsel %vm874, %v861, %v480
    %v879 = vsel %vm874, %v862, %v482
    %v880 = vsel %vm874, %v863, %v484
    %v881 = vsel %vm874, %v864, %v486
    %v882 = vsel %vm874, %v865, %v488
    %v883 = vsel %vm874, %v866, %v490
    %v884 = vsel %vm874, %v867, %v492
    %v885 = vsel %vm874, %v868, %v494
    %v886 = vsel %vm874, %v869, %v496
    %v887 = vsel %vm874, %v870, %v498
    %v888 = vsel %vm874, %v871, %v500
    %v889 = vsel %vm874, %v872, %v502
    %v890 = vsel %vm874, %v873, %v504
    %vm891 = vcmask 31744
    %v892 = vsel %vm891, %v875, %v538
    %v893 = vsel %vm891, %v876, %v540
    %v894 = vsel %vm891, %v877, %v542
    %v895 = vsel %vm891, %v878, %v544
    %v896 = vsel %vm891, %v879, %v546
    %v897 = vsel %vm891, %v880, %v548
    %v898 = vsel %vm891, %v881, %v550
    %v899 = vsel %vm891, %v882, %v552
    %v900 = vsel %vm891, %v883, %v554
    %v901 = vsel %vm891, %v884, %v556
    %v902 = vsel %vm891, %v885, %v558
    %v903 = vsel %vm891, %v886, %v560
    %v904 = vsel %vm891, %v887, %v562
    %v905 = vsel %vm891, %v888, %v564
    %v906 = vsel %vm891, %v889, %v566
    %v907 = vsel %vm891, %v890, %v568
    %vm908 = vcmask 39936
    %v909 = vsel %vm908, %v892, %v602
    %v910 = vsel %vm908, %v893, %v604
    %v911 = vsel %vm908, %v894, %v606
    %v912 = vsel %vm908, %v895, %v608
    %v913 = vsel %vm908, %v896, %v610
    %v914 = vsel %vm908, %v897, %v612
    %v915 = vsel %vm908, %v898, %v614
    %v916 = vsel %vm908, %v899, %v616
    %v917 = vsel %vm908, %v900, %v618
    %v918 = vsel %vm908, %v901, %v620
    %v919 = vsel %vm908, %v902, %v622
    %v920 = vsel %vm908, %v903, %v624
    %v921 = vsel %vm908, %v904, %v626
    %v922 = vsel %vm908, %v905, %v628
    %v923 = vsel %vm908, %v906, %v630
    %v924 = vsel %vm908, %v907, %v632
    %vm925 = vcmask 48128
    %v926 = vsel %vm925, %v909, %v666
    %v927 = vsel %vm925, %v910, %v668
    %v928 = vsel %vm925, %v911, %v670
    %v929 = vsel %vm925, %v912, %v672
    %v930 = vsel %vm925, %v913, %v674
    %v931 = vsel %vm925, %v914, %v676
    %v932 = vsel %vm925, %v915, %v678
    %v933 = vsel %vm925, %v916, %v680
    %v934 = vsel %vm925, %v917, %v682
    %v935 = vsel %vm925, %v918, %v684
    %v936 = vsel %vm925, %v919, %v686
    %v937 = vsel %vm925, %v920, %v688
    %v938 = vsel %vm925, %v921, %v690
    %v939 = vsel %vm925, %v922, %v692
    %v940 = vsel %vm925, %v923, %v694
    %v941 = vsel %vm925, %v924, %v696
    %vm942 = vcmask 56320
    %v943 = vsel %vm942, %v926, %v730
    %v944 = vsel %vm942, %v927, %v732
    %v945 = vsel %vm942, %v928, %v734
    %v946 = vsel %vm942, %v929, %v736
    %v947 = vsel %vm942, %v930, %v738
    %v948 = vsel %vm942, %v931, %v740
    %v949 = vsel %vm942, %v932, %v742
    %v950 = vsel %vm942, %v933, %v744
    %v951 = vsel %vm942, %v934, %v746
    %v952 = vsel %vm942, %v935, %v748
    %v953 = vsel %vm942, %v936, %v750
    %v954 = vsel %vm942, %v937, %v752
    %v955 = vsel %vm942, %v938, %v754
    %v956 = vsel %vm942, %v939, %v756
    %v957 = vsel %vm942, %v940, %v758
    %v958 = vsel %vm942, %v941, %v760
    %vm959 = vcmask 64512
    %v960 = vsel %vm959, %v943, %v794
    %v961 = vsel %vm959, %v944, %v796
    %v962 = vsel %vm959, %v945, %v798
    %v963 = vsel %vm959, %v946, %v800
    %v964 = vsel %vm959, %v947, %v802
    %v965 = vsel %vm959, %v948, %v804
    %v966 = vsel %vm959, %v949, %v806
    %v967 = vsel %vm959, %v950, %v808
    %v968 = vsel %vm959, %v951, %v810
    %v969 = vsel %vm959, %v952, %v812
    %v970 = vsel %vm959, %v953, %v814
    %v971 = vsel %vm959, %v954, %v816
    %v972 = vsel %vm959, %v955, %v818
    %v973 = vsel %vm959, %v956, %v820
    %v974 = vsel %vm959, %v957, %v822
    %v975 = vsel %vm959, %v958, %v824
    %v976 = vld [vmem:[#allocation4] sm:$0xff]
    %v977 = vld [vmem:[#allocation4 + $0x8] sm:$0x1]
    %v978 = vld [vmem:[#allocation7] sm:$0x1]
    %v980 = vlaneseq
    %v981 = vshrl.u32 %v980, 7
    %v982 = vsub.s32 0, %v981
    %v983 = vrot.slane %v978, %v982
    %vm985 = vcmask 72704
    %v987 = vsel %vm985, %v960, 0
    %v990 = vsel %vm985, %v961, 0
    %v993 = vsel %vm985, %v962, 0
    %v996 = vsel %vm985, %v963, 0
    %v999 = vsel %vm985, %v964, 0
    %v1002 = vsel %vm985, %v965, 0
    %v1005 = vsel %vm985, %v966, 0
    %v1008 = vsel %vm985, %v967, 0
    %v1011 = vsel %vm985, %v968, 0
    %v1014 = vsel %vm985, %v969, 0
    %v1017 = vsel %vm985, %v970, 0
    %v1020 = vsel %vm985, %v971, 0
    %v1023 = vsel %vm985, %v972, 0
    %v1026 = vsel %vm985, %v973, 0
    %v1029 = vsel %vm985, %v974, 0
    %v1032 = vsel %vm985, %v975, 0
    %vm1034 = vcmask 1040384
    %v1036 = vsel %vm1034, %v977, 0
    %1038 = vmatprep.subr.mxu0 0.0
    %1039 = vmatpush1.msra.mxu0 %v976
    %1040 = vmatprep.subr.mxu0 0.0
    %1041 = vmatpush1.msra.mxu0 %v1036
    %1042 = vmatprep.subr.mxu0 0.0
    %1043 = vmatpush1.msra.mxu0 0.0
    %1044 = vmatprep.subr.mxu0 0.0
    %1045 = vmatpush1.msra.mxu0 0.0
    %1046 = vmatprep.subr.mxu0 0.0
    %1047 = vmatpush1.msra.mxu0 0.0
    %1048 = vmatprep.subr.mxu0 0.0
    %1049 = vmatpush1.msra.mxu0 0.0
    %1050 = vmatprep.subr.mxu0 0.0
    %1051 = vmatpush1.msra.mxu0 0.0
    %1052 = vmatprep.subr.mxu0 0.0
    %1053 = vmatpush1.msra.mxu0 0.0
    %1054 = vmatprep.subr.mxu0 0.0
    %1055 = vmatpush1.msra.mxu0 0.0
    %1056 = vmatprep.subr.mxu0 0.0
    %1057 = vmatpush1.msra.mxu0 0.0
    %1058 = vmatprep.subr.mxu0 0.0
    %1059 = vmatpush1.msra.mxu0 0.0
    %1060 = vmatprep.subr.mxu0 0.0
    %1061 = vmatpush1.msra.mxu0 0.0
    %1062 = vmatprep.subr.mxu0 0.0
    %1063 = vmatpush1.msra.mxu0 0.0
    %1064 = vmatprep.subr.mxu0 0.0
    %1065 = vmatpush1.msra.mxu0 0.0
    %1066 = vmatprep.subr.mxu0 0.0
    %1067 = vmatpush1.msra.mxu0 0.0
    %1068 = vmatprep.subr.mxu0 0.0
    %1069 = vmatpush1.msra.mxu0 0.0
    %1070 = vmatprep.subr.mxu0 0.0
    %1071 = vmatpush1.msra.mxu0 0.0
    %1072 = vmatprep.subr.mxu0 0.0
    %1073 = vmatpush1.msra.mxu0 0.0
    %1074 = vmatprep.subr.mxu0 0.0
    %1075 = vmatpush1.msra.mxu0 0.0
    %1076 = vmatprep.subr.mxu0 0.0
    %1077 = vmatpush1.msra.mxu0 0.0
    %1078 = vmatprep.subr.mxu0 0.0
    %1079 = vmatpush1.msra.mxu0 0.0
    %1080 = vmatprep.subr.mxu0 0.0
    %1081 = vmatpush1.msra.mxu0 0.0
    %1082 = vmatprep.subr.mxu0 0.0
    %1083 = vmatpush1.msra.mxu0 0.0
    %1084 = vmatprep.subr.mxu0 0.0
    %1085 = vmatpush1.msra.mxu0 0.0
    %1086 = vmatprep.subr.mxu0 0.0
    %1087 = vmatpush1.msra.mxu0 0.0
    %1088 = vmatprep.subr.mxu0 0.0
    %1089 = vmatpush1.msra.mxu0 0.0
    %1090 = vmatprep.subr.mxu0 0.0
    %1091 = vmatpush1.msra.mxu0 0.0
    %1092 = vmatprep.subr.mxu0 0.0
    %1093 = vmatpush1.msra.mxu0 0.0
    %1094 = vmatprep.subr.mxu0 0.0
    %1095 = vmatpush1.msra.mxu0 0.0
    %1096 = vmatprep.subr.mxu0 0.0
    %1097 = vmatpush1.msra.mxu0 0.0
    %1098 = vmatprep.subr.mxu0 0.0
    %1099 = vmatpush1.msra.mxu0 0.0
    %1100 = vmatprep.subr.mxu0 0.0
    %1101 = vmatpush1.msra.mxu0 0.0
    %1102 = vmatprep.mubr.f32.mxu0 0.0
    %1103 = vmatmul.mubr.f32.gmra.mrb[0].mxu0 %v987
    %v1104 = vpop.f32.mrb[0].mxu0
    %v1105 = vadd.f32 %v983, %v1104
    %v1106 = vpop.f32.mrb[0].mxu0
    %1107 = vmatprep.mubr.f32.mxu0 0.0
    %1108 = vmatmul.mubr.f32.gmra.mrb[0].mxu0 %v990
    %v1109 = vpop.f32.mrb[0].mxu0
    %v1110 = vadd.f32 %v983, %v1109
    %v1111 = vpop.f32.mrb[0].mxu0
    %1112 = vmatprep.mubr.f32.mxu0 0.0
    %1113 = vmatmul.mubr.f32.gmra.mrb[0].mxu0 %v993
    %v1114 = vpop.f32.mrb[0].mxu0
    %v1115 = vadd.f32 %v983, %v1114
    %v1116 = vpop.f32.mrb[0].mxu0
    %1117 = vmatprep.mubr.f32.mxu0 0.0
    %1118 = vmatmul.mubr.f32.gmra.mrb[0].mxu0 %v996
    %v1119 = vpop.f32.mrb[0].mxu0
    %v1120 = vadd.f32 %v983, %v1119
    %v1121 = vpop.f32.mrb[0].mxu0
    %1122 = vmatprep.mubr.f32.mxu0 0.0
    %1123 = vmatmul.mubr.f32.gmra.mrb[0].mxu0 %v999
    %v1124 = vpop.f32.mrb[0].mxu0
    %v1125 = vadd.f32 %v983, %v1124
    %v1126 = vpop.f32.mrb[0].mxu0
    %1127 = vmatprep.mubr.f32.mxu0 0.0
    %1128 = vmatmul.mubr.f32.gmra.mrb[0].mxu0 %v1002
    %v1129 = vpop.f32.mrb[0].mxu0
    %v1130 = vadd.f32 %v983, %v1129
    %v1131 = vpop.f32.mrb[0].mxu0
    %1132 = vmatprep.mubr.f32.mxu0 0.0
    %1133 = vmatmul.mubr.f32.gmra.mrb[0].mxu0 %v1005
    %v1134 = vpop.f32.mrb[0].mxu0
    %v1135 = vadd.f32 %v983, %v1134
    %v1136 = vpop.f32.mrb[0].mxu0
    %1137 = vmatprep.mubr.f32.mxu0 0.0
    %1138 = vmatmul.mubr.f32.gmra.mrb[0].mxu0 %v1008
    %v1139 = vpop.f32.mrb[0].mxu0
    %v1140 = vadd.f32 %v983, %v1139
    %v1141 = vpop.f32.mrb[0].mxu0
    %1142 = vmatprep.mubr.f32.mxu0 0.0
    %1143 = vmatmul.mubr.f32.gmra.mrb[0].mxu0 %v1011
    %v1144 = vpop.f32.mrb[0].mxu0
    %v1145 = vadd.f32 %v983, %v1144
    %v1146 = vpop.f32.mrb[0].mxu0
    %1147 = vmatprep.mubr.f32.mxu0 0.0
    %1148 = vmatmul.mubr.f32.gmra.mrb[0].mxu0 %v1014
    %v1149 = vpop.f32.mrb[0].mxu0
    %v1150 = vadd.f32 %v983, %v1149
    %v1151 = vpop.f32.mrb[0].mxu0
    %1152 = vmatprep.mubr.f32.mxu0 0.0
    %1153 = vmatmul.mubr.f32.gmra.mrb[0].mxu0 %v1017
    %v1154 = vpop.f32.mrb[0].mxu0
    %v1155 = vadd.f32 %v983, %v1154
    %v1156 = vpop.f32.mrb[0].mxu0
    %1157 = vmatprep.mubr.f32.mxu0 0.0
    %1158 = vmatmul.mubr.f32.gmra.mrb[0].mxu0 %v1020
    %v1159 = vpop.f32.mrb[0].mxu0
    %v1160 = vadd.f32 %v983, %v1159
    %v1161 = vpop.f32.mrb[0].mxu0
    %1162 = vmatprep.mubr.f32.mxu0 0.0
    %1163 = vmatmul.mubr.f32.gmra.mrb[0].mxu0 %v1023
    %v1164 = vpop.f32.mrb[0].mxu0
    %v1165 = vadd.f32 %v983, %v1164
    %v1166 = vpop.f32.mrb[0].mxu0
    %1167 = vmatprep.mubr.f32.mxu0 0.0
    %1168 = vmatmul.mubr.f32.gmra.mrb[0].mxu0 %v1026
    %v1169 = vpop.f32.mrb[0].mxu0
    %v1170 = vadd.f32 %v983, %v1169
    %v1171 = vpop.f32.mrb[0].mxu0
    %1172 = vmatprep.mubr.f32.mxu0 0.0
    %1173 = vmatmul.mubr.f32.gmra.mrb[0].mxu0 %v1029
    %v1174 = vpop.f32.mrb[0].mxu0
    %v1175 = vadd.f32 %v983, %v1174
    %v1176 = vpop.f32.mrb[0].mxu0
    %1177 = vmatprep.mubr.f32.mxu0 0.0
    %1178 = vmatmul.mubr.f32.gmra.mrb[0].mxu0 %v1032
    %v1179 = vpop.f32.mrb[0].mxu0
    %v1180 = vadd.f32 %v983, %v1179
    %v1181 = vpop.f32.mrb[0].mxu0
    %1182 = vdwg.mxu0
    %v1183 = vmax.f32 %v1105, 0.0
    %v1184 = vmax.f32 %v1110, 0.0
    %v1185 = vmax.f32 %v1115, 0.0
    %v1186 = vmax.f32 %v1120, 0.0
    %v1187 = vmax.f32 %v1125, 0.0
    %v1188 = vmax.f32 %v1130, 0.0
    %v1189 = vmax.f32 %v1135, 0.0
    %v1190 = vmax.f32 %v1140, 0.0
    %v1191 = vmax.f32 %v1145, 0.0
    %v1192 = vmax.f32 %v1150, 0.0
    %v1193 = vmax.f32 %v1155, 0.0
    %v1194 = vmax.f32 %v1160, 0.0
    %v1195 = vmax.f32 %v1165, 0.0
    %v1196 = vmax.f32 %v1170, 0.0
    %v1197 = vmax.f32 %v1175, 0.0
    %v1198 = vmax.f32 %v1180, 0.0
    %vm1199 = vcmask 261120
    %1200 = vst.msk [vmem:[#allocation3] sm:$0xff] %vm1199, 0.0
    %vm1201 = vcmask 254976
    %1202 = vst.msk [vmem:[#allocation3 + $0x8] sm:$0x3] %vm1201, 0.0
    %1203 = vst.msk [vmem:[#allocation3 + $0xa0] sm:$0xff] %vm1199, 0.0
    %1204 = vst.msk [vmem:[#allocation3 + $0xa8] sm:$0x3] %vm1201, 0.0
    %s1205 = scalar_lea.vmem [#allocation3], 144
    %1206 = vst.msk [vmem:[%s1205] sm:$0xff] %vm1199, 0.0
    %1207 = vst.msk [vmem:[%s1205 + $0x8] sm:$0x3] %vm1201, 0.0
    %1208 = vst.msk [vmem:[%s1205 + $0xa0] sm:$0xff] %vm1199, 0.0
    %1209 = vst.msk [vmem:[%s1205 + $0xa8] sm:$0x3] %vm1201, 0.0
    %s1210 = scalar_lea.vmem [#allocation3], 16
    %vm1211 = vcmask 253952
    %1212 = vst.msk [vmem:[%s1210] sm:$0x1] %vm1211, 0.0
    %1213 = vst.msk [vmem:[%s1210 + $0x10] sm:$0x1] %vm1211, 0.0
    %1214 = vst.msk [vmem:[%s1210 + $0x20] sm:$0x1] %vm1211, 0.0
    %1215 = vst.msk [vmem:[%s1210 + $0x30] sm:$0x1] %vm1211, 0.0
    %1216 = vst.msk [vmem:[%s1210 + $0x40] sm:$0x1] %vm1211, 0.0
    %1217 = vst.msk [vmem:[%s1210 + $0x50] sm:$0x1] %vm1211, 0.0
    %1218 = vst.msk [vmem:[%s1210 + $0x60] sm:$0x1] %vm1211, 0.0
    %1219 = vst.msk [vmem:[%s1210 + $0x70] sm:$0x1] %vm1211, 0.0
    %1220 = vst.msk [vmem:[%s1210 + $0xa0] sm:$0x1] %vm1211, 0.0
    %1221 = vst.msk [vmem:[%s1210 + $0xb0] sm:$0x1] %vm1211, 0.0
    %1222 = vst.msk [vmem:[%s1210 + $0xc0] sm:$0x1] %vm1211, 0.0
    %1223 = vst.msk [vmem:[%s1210 + $0xd0] sm:$0x1] %vm1211, 0.0
    %1224 = vst.msk [vmem:[%s1210 + $0xe0] sm:$0x1] %vm1211, 0.0
    %1225 = vst.msk [vmem:[%s1210 + $0xf0] sm:$0x1] %vm1211, 0.0
    %1226 = vst.msk [vmem:[%s1210 + $0x100] sm:$0x1] %vm1211, 0.0
    %1227 = vst.msk [vmem:[%s1210 + $0x110] sm:$0x1] %vm1211, 0.0
    %1228 = vst.msk [vmem:[%s1210 + $0x9] sm:$0x1] %vm1211, 0.0
    %1229 = vst.msk [vmem:[%s1210 + $0x19] sm:$0x1] %vm1211, 0.0
    %1230 = vst.msk [vmem:[%s1210 + $0x29] sm:$0x1] %vm1211, 0.0
    %1231 = vst.msk [vmem:[%s1210 + $0x39] sm:$0x1] %vm1211, 0.0
    %1232 = vst.msk [vmem:[%s1210 + $0x49] sm:$0x1] %vm1211, 0.0
    %1233 = vst.msk [vmem:[%s1210 + $0x59] sm:$0x1] %vm1211, 0.0
    %1234 = vst.msk [vmem:[%s1210 + $0x69] sm:$0x1] %vm1211, 0.0
    %1235 = vst.msk [vmem:[%s1210 + $0x79] sm:$0x1] %vm1211, 0.0
    %1236 = vst.msk [vmem:[%s1210 + $0xa9] sm:$0x1] %vm1211, 0.0
    %1237 = vst.msk [vmem:[%s1210 + $0xb9] sm:$0x1] %vm1211, 0.0
    %1238 = vst.msk [vmem:[%s1210 + $0xc9] sm:$0x1] %vm1211, 0.0
    %1239 = vst.msk [vmem:[%s1210 + $0xd9] sm:$0x1] %vm1211, 0.0
    %1240 = vst.msk [vmem:[%s1210 + $0xe9] sm:$0x1] %vm1211, 0.0
    %1241 = vst.msk [vmem:[%s1210 + $0xf9] sm:$0x1] %vm1211, 0.0
    %1242 = vst.msk [vmem:[%s1210 + $0x109] sm:$0x1] %vm1211, 0.0
    %1243 = vst.msk [vmem:[%s1210 + $0x119] sm:$0x1] %vm1211, 0.0
    %1244 = vst.msk [vmem:[%s1210 + $0x1] sm:$0xff] %vm1199, %v1183
    %1245 = vst.msk [vmem:[%s1210 + $0x11] sm:$0xff] %vm1199, %v1184
    %1246 = vst.msk [vmem:[%s1210 + $0x21] sm:$0xff] %vm1199, %v1185
    %1247 = vst.msk [vmem:[%s1210 + $0x31] sm:$0xff] %vm1199, %v1186
    %1248 = vst.msk [vmem:[%s1210 + $0x41] sm:$0xff] %vm1199, %v1187
    %1249 = vst.msk [vmem:[%s1210 + $0x51] sm:$0xff] %vm1199, %v1188
    %1250 = vst.msk [vmem:[%s1210 + $0x61] sm:$0xff] %vm1199, %v1189
    %1251 = vst.msk [vmem:[%s1210 + $0x71] sm:$0xff] %vm1199, %v1190
    %1252 = vst.msk [vmem:[%s1210 + $0xa1] sm:$0xff] %vm1199, %v1191
    %1253 = vst.msk [vmem:[%s1210 + $0xb1] sm:$0xff] %vm1199, %v1192
    %1254 = vst.msk [vmem:[%s1210 + $0xc1] sm:$0xff] %vm1199, %v1193
    %1255 = vst.msk [vmem:[%s1210 + $0xd1] sm:$0xff] %vm1199, %v1194
    %1256 = vst.msk [vmem:[%s1210 + $0xe1] sm:$0xff] %vm1199, %v1195
    %1257 = vst.msk [vmem:[%s1210 + $0xf1] sm:$0xff] %vm1199, %v1196
    %1258 = vst.msk [vmem:[%s1210 + $0x101] sm:$0xff] %vm1199, %v1197
    %1259 = vst.msk [vmem:[%s1210 + $0x111] sm:$0xff] %vm1199, %v1198
    %v1260 = vld [vmem:[#allocation3] sm:$0xff]
    %v1261 = vld [vmem:[#allocation3 + $0x10] sm:$0xff]
    %v1262 = vld [vmem:[#allocation3 + $0x20] sm:$0xff]
    %v1263 = vld [vmem:[#allocation3 + $0x30] sm:$0xff]
    %v1264 = vld [vmem:[#allocation3 + $0x40] sm:$0xff]
    %v1265 = vld [vmem:[#allocation3 + $0x50] sm:$0xff]
    %v1266 = vld [vmem:[#allocation3 + $0x60] sm:$0xff]
    %v1267 = vld [vmem:[#allocation3 + $0x70] sm:$0xff]
    %v1268 = vld [vmem:[#allocation3 + $0xa0] sm:$0xff]
    %v1269 = vld [vmem:[#allocation3 + $0xb0] sm:$0xff]
    %v1270 = vld [vmem:[#allocation3 + $0xc0] sm:$0xff]
    %v1271 = vld [vmem:[#allocation3 + $0xd0] sm:$0xff]
    %v1272 = vld [vmem:[#allocation3 + $0xe0] sm:$0xff]
    %v1273 = vld [vmem:[#allocation3 + $0xf0] sm:$0xff]
    %v1274 = vld [vmem:[#allocation3 + $0x100] sm:$0xff]
    %v1275 = vld [vmem:[#allocation3 + $0x110] sm:$0xff]
    %v1276 = vld [vmem:[#allocation3 + $0x1] sm:$0xff]
    %v1277 = vld [vmem:[#allocation3 + $0x11] sm:$0xff]
    %v1278 = vld [vmem:[#allocation3 + $0x21] sm:$0xff]
    %v1279 = vld [vmem:[#allocation3 + $0x31] sm:$0xff]
    %v1280 = vld [vmem:[#allocation3 + $0x41] sm:$0xff]
    %v1281 = vld [vmem:[#allocation3 + $0x51] sm:$0xff]
    %v1282 = vld [vmem:[#allocation3 + $0x61] sm:$0xff]
    %v1283 = vld [vmem:[#allocation3 + $0x71] sm:$0xff]
    %v1284 = vld [vmem:[#allocation3 + $0xa1] sm:$0xff]
    %v1285 = vld [vmem:[#allocation3 + $0xb1] sm:$0xff]
    %v1286 = vld [vmem:[#allocation3 + $0xc1] sm:$0xff]
    %v1287 = vld [vmem:[#allocation3 + $0xd1] sm:$0xff]
    %v1288 = vld [vmem:[#allocation3 + $0xe1] sm:$0xff]
    %v1289 = vld [vmem:[#allocation3 + $0xf1] sm:$0xff]
    %v1290 = vld [vmem:[#allocation3 + $0x101] sm:$0xff]
    %v1291 = vld [vmem:[#allocation3 + $0x111] sm:$0xff]
    %v1292 = vld [vmem:[#allocation3 + $0x2] sm:$0xff]
    %v1293 = vld [vmem:[#allocation3 + $0x12] sm:$0xff]
    %v1294 = vld [vmem:[#allocation3 + $0x22] sm:$0xff]
    %v1295 = vld [vmem:[#allocation3 + $0x32] sm:$0xff]
    %v1296 = vld [vmem:[#allocation3 + $0x42] sm:$0xff]
    %v1297 = vld [vmem:[#allocation3 + $0x52] sm:$0xff]
    %v1298 = vld [vmem:[#allocation3 + $0x62] sm:$0xff]
    %v1299 = vld [vmem:[#allocation3 + $0x72] sm:$0xff]
    %v1300 = vld [vmem:[#allocation3 + $0xa2] sm:$0xff]
    %v1301 = vld [vmem:[#allocation3 + $0xb2] sm:$0xff]
    %v1302 = vld [vmem:[#allocation3 + $0xc2] sm:$0xff]
    %v1303 = vld [vmem:[#allocation3 + $0xd2] sm:$0xff]
    %v1304 = vld [vmem:[#allocation3 + $0xe2] sm:$0xff]
    %v1305 = vld [vmem:[#allocation3 + $0xf2] sm:$0xff]
    %v1306 = vld [vmem:[#allocation3 + $0x102] sm:$0xff]
    %v1307 = vld [vmem:[#allocation3 + $0x112] sm:$0xff]
    %v1308 = vld [vmem:[%s1210] sm:$0xff]
    %v1309 = vld [vmem:[%s1210 + $0x10] sm:$0xff]
    %v1310 = vld [vmem:[%s1210 + $0x20] sm:$0xff]
    %v1311 = vld [vmem:[%s1210 + $0x30] sm:$0xff]
    %v1312 = vld [vmem:[%s1210 + $0x40] sm:$0xff]
    %v1313 = vld [vmem:[%s1210 + $0x50] sm:$0xff]
    %v1314 = vld [vmem:[%s1210 + $0x60] sm:$0xff]
    %v1315 = vld [vmem:[%s1210 + $0x70] sm:$0xff]
    %v1316 = vld [vmem:[%s1210 + $0xa0] sm:$0xff]
    %v1317 = vld [vmem:[%s1210 + $0xb0] sm:$0xff]
    %v1318 = vld [vmem:[%s1210 + $0xc0] sm:$0xff]
    %v1319 = vld [vmem:[%s1210 + $0xd0] sm:$0xff]
    %v1320 = vld [vmem:[%s1210 + $0xe0] sm:$0xff]
    %v1321 = vld [vmem:[%s1210 + $0xf0] sm:$0xff]
    %v1322 = vld [vmem:[%s1210 + $0x100] sm:$0xff]
    %v1323 = vld [vmem:[%s1210 + $0x110] sm:$0xff]
    %v1324 = vld [vmem:[%s1210 + $0x1] sm:$0xff]
    %v1325 = vld [vmem:[%s1210 + $0x11] sm:$0xff]
    %v1326 = vld [vmem:[%s1210 + $0x21] sm:$0xff]
    %v1327 = vld [vmem:[%s1210 + $0x31] sm:$0xff]
    %v1328 = vld [vmem:[%s1210 + $0x41] sm:$0xff]
    %v1329 = vld [vmem:[%s1210 + $0x51] sm:$0xff]
    %v1330 = vld [vmem:[%s1210 + $0x61] sm:$0xff]
    %v1331 = vld [vmem:[%s1210 + $0x71] sm:$0xff]
    %v1332 = vld [vmem:[%s1210 + $0xa1] sm:$0xff]
    %v1333 = vld [vmem:[%s1210 + $0xb1] sm:$0xff]
    %v1334 = vld [vmem:[%s1210 + $0xc1] sm:$0xff]
    %v1335 = vld [vmem:[%s1210 + $0xd1] sm:$0xff]
    %v1336 = vld [vmem:[%s1210 + $0xe1] sm:$0xff]
    %v1337 = vld [vmem:[%s1210 + $0xf1] sm:$0xff]
    %v1338 = vld [vmem:[%s1210 + $0x101] sm:$0xff]
    %v1339 = vld [vmem:[%s1210 + $0x111] sm:$0xff]
    %v1340 = vld [vmem:[%s1210 + $0x2] sm:$0xff]
    %v1341 = vld [vmem:[%s1210 + $0x12] sm:$0xff]
    %v1342 = vld [vmem:[%s1210 + $0x22] sm:$0xff]
    %v1343 = vld [vmem:[%s1210 + $0x32] sm:$0xff]
    %v1344 = vld [vmem:[%s1210 + $0x42] sm:$0xff]
    %v1345 = vld [vmem:[%s1210 + $0x52] sm:$0xff]
    %v1346 = vld [vmem:[%s1210 + $0x62] sm:$0xff]
    %v1347 = vld [vmem:[%s1210 + $0x72] sm:$0xff]
    %v1348 = vld [vmem:[%s1210 + $0xa2] sm:$0xff]
    %v1349 = vld [vmem:[%s1210 + $0xb2] sm:$0xff]
    %v1350 = vld [vmem:[%s1210 + $0xc2] sm:$0xff]
    %v1351 = vld [vmem:[%s1210 + $0xd2] sm:$0xff]
    %v1352 = vld [vmem:[%s1210 + $0xe2] sm:$0xff]
    %v1353 = vld [vmem:[%s1210 + $0xf2] sm:$0xff]
    %v1354 = vld [vmem:[%s1210 + $0x102] sm:$0xff]
    %v1355 = vld [vmem:[%s1210 + $0x112] sm:$0xff]
    %s1356 = scalar_lea.vmem [#allocation3], 32
    %v1357 = vld [vmem:[%s1356] sm:$0xff]
    %v1358 = vld [vmem:[%s1356 + $0x10] sm:$0xff]
    %v1359 = vld [vmem:[%s1356 + $0x20] sm:$0xff]
    %v1360 = vld [vmem:[%s1356 + $0x30] sm:$0xff]
    %v1361 = vld [vmem:[%s1356 + $0x40] sm:$0xff]
    %v1362 = vld [vmem:[%s1356 + $0x50] sm:$0xff]
    %v1363 = vld [vmem:[%s1356 + $0x60] sm:$0xff]
    %v1364 = vld [vmem:[%s1356 + $0x70] sm:$0xff]
    %v1365 = vld [vmem:[%s1356 + $0xa0] sm:$0xff]
    %v1366 = vld [vmem:[%s1356 + $0xb0] sm:$0xff]
    %v1367 = vld [vmem:[%s1356 + $0xc0] sm:$0xff]
    %v1368 = vld [vmem:[%s1356 + $0xd0] sm:$0xff]
    %v1369 = vld [vmem:[%s1356 + $0xe0] sm:$0xff]
    %v1370 = vld [vmem:[%s1356 + $0xf0] sm:$0xff]
    %v1371 = vld [vmem:[%s1356 + $0x100] sm:$0xff]
    %v1372 = vld [vmem:[%s1356 + $0x110] sm:$0xff]
    %v1373 = vld [vmem:[%s1356 + $0x1] sm:$0xff]
    %v1374 = vld [vmem:[%s1356 + $0x11] sm:$0xff]
    %v1375 = vld [vmem:[%s1356 + $0x21] sm:$0xff]
    %v1376 = vld [vmem:[%s1356 + $0x31] sm:$0xff]
    %v1377 = vld [vmem:[%s1356 + $0x41] sm:$0xff]
    %v1378 = vld [vmem:[%s1356 + $0x51] sm:$0xff]
    %v1379 = vld [vmem:[%s1356 + $0x61] sm:$0xff]
    %v1380 = vld [vmem:[%s1356 + $0x71] sm:$0xff]
    %v1381 = vld [vmem:[%s1356 + $0xa1] sm:$0xff]
    %v1382 = vld [vmem:[%s1356 + $0xb1] sm:$0xff]
    %v1383 = vld [vmem:[%s1356 + $0xc1] sm:$0xff]
    %v1384 = vld [vmem:[%s1356 + $0xd1] sm:$0xff]
    %v1385 = vld [vmem:[%s1356 + $0xe1] sm:$0xff]
    %v1386 = vld [vmem:[%s1356 + $0xf1] sm:$0xff]
    %v1387 = vld [vmem:[%s1356 + $0x101] sm:$0xff]
    %v1388 = vld [vmem:[%s1356 + $0x111] sm:$0xff]
    %v1389 = vld [vmem:[%s1356 + $0x2] sm:$0xff]
    %v1390 = vld [vmem:[%s1356 + $0x12] sm:$0xff]
    %v1391 = vld [vmem:[%s1356 + $0x22] sm:$0xff]
    %v1392 = vld [vmem:[%s1356 + $0x32] sm:$0xff]
    %v1393 = vld [vmem:[%s1356 + $0x42] sm:$0xff]
    %v1394 = vld [vmem:[%s1356 + $0x52] sm:$0xff]
    %v1395 = vld [vmem:[%s1356 + $0x62] sm:$0xff]
    %v1396 = vld [vmem:[%s1356 + $0x72] sm:$0xff]
    %v1397 = vld [vmem:[%s1356 + $0xa2] sm:$0xff]
    %v1398 = vld [vmem:[%s1356 + $0xb2] sm:$0xff]
    %v1399 = vld [vmem:[%s1356 + $0xc2] sm:$0xff]
    %v1400 = vld [vmem:[%s1356 + $0xd2] sm:$0xff]
    %v1401 = vld [vmem:[%s1356 + $0xe2] sm:$0xff]
    %v1402 = vld [vmem:[%s1356 + $0xf2] sm:$0xff]
    %v1403 = vld [vmem:[%s1356 + $0x102] sm:$0xff]
    %v1404 = vld [vmem:[%s1356 + $0x112] sm:$0xff]
    %1421 = vrot.lane.b32.xlu0 %v1276, 32
    %v1422 = vpop.permute.xlu0 %1421
    %1423 = vrot.lane.b32.xlu0 %v1277, 32
    %v1424 = vpop.permute.xlu0 %1423
    %1425 = vrot.lane.b32.xlu0 %v1278, 32
    %v1426 = vpop.permute.xlu0 %1425
    %1427 = vrot.lane.b32.xlu0 %v1279, 32
    %v1428 = vpop.permute.xlu0 %1427
    %1429 = vrot.lane.b32.xlu0 %v1280, 32
    %v1430 = vpop.permute.xlu0 %1429
    %1431 = vrot.lane.b32.xlu0 %v1281, 32
    %v1432 = vpop.permute.xlu0 %1431
    %1433 = vrot.lane.b32.xlu0 %v1282, 32
    %v1434 = vpop.permute.xlu0 %1433
    %1435 = vrot.lane.b32.xlu0 %v1283, 32
    %v1436 = vpop.permute.xlu0 %1435
    %1437 = vrot.lane.b32.xlu0 %v1284, 32
    %v1438 = vpop.permute.xlu0 %1437
    %1439 = vrot.lane.b32.xlu0 %v1285, 32
    %v1440 = vpop.permute.xlu0 %1439
    %1441 = vrot.lane.b32.xlu0 %v1286, 32
    %v1442 = vpop.permute.xlu0 %1441
    %1443 = vrot.lane.b32.xlu0 %v1287, 32
    %v1444 = vpop.permute.xlu0 %1443
    %1445 = vrot.lane.b32.xlu0 %v1288, 32
    %v1446 = vpop.permute.xlu0 %1445
    %1447 = vrot.lane.b32.xlu0 %v1289, 32
    %v1448 = vpop.permute.xlu0 %1447
    %1449 = vrot.lane.b32.xlu0 %v1290, 32
    %v1450 = vpop.permute.xlu0 %1449
    %1451 = vrot.lane.b32.xlu0 %v1291, 32
    %v1452 = vpop.permute.xlu0 %1451
    %1485 = vrot.lane.b32.xlu0 %v1292, 64
    %v1486 = vpop.permute.xlu0 %1485
    %1487 = vrot.lane.b32.xlu0 %v1293, 64
    %v1488 = vpop.permute.xlu0 %1487
    %1489 = vrot.lane.b32.xlu0 %v1294, 64
    %v1490 = vpop.permute.xlu0 %1489
    %1491 = vrot.lane.b32.xlu0 %v1295, 64
    %v1492 = vpop.permute.xlu0 %1491
    %1493 = vrot.lane.b32.xlu0 %v1296, 64
    %v1494 = vpop.permute.xlu0 %1493
    %1495 = vrot.lane.b32.xlu0 %v1297, 64
    %v1496 = vpop.permute.xlu0 %1495
    %1497 = vrot.lane.b32.xlu0 %v1298, 64
    %v1498 = vpop.permute.xlu0 %1497
    %1499 = vrot.lane.b32.xlu0 %v1299, 64
    %v1500 = vpop.permute.xlu0 %1499
    %1501 = vrot.lane.b32.xlu0 %v1300, 64
    %v1502 = vpop.permute.xlu0 %1501
    %1503 = vrot.lane.b32.xlu0 %v1301, 64
    %v1504 = vpop.permute.xlu0 %1503
    %1505 = vrot.lane.b32.xlu0 %v1302, 64
    %v1506 = vpop.permute.xlu0 %1505
    %1507 = vrot.lane.b32.xlu0 %v1303, 64
    %v1508 = vpop.permute.xlu0 %1507
    %1509 = vrot.lane.b32.xlu0 %v1304, 64
    %v1510 = vpop.permute.xlu0 %1509
    %1511 = vrot.lane.b32.xlu0 %v1305, 64
    %v1512 = vpop.permute.xlu0 %1511
    %1513 = vrot.lane.b32.xlu0 %v1306, 64
    %v1514 = vpop.permute.xlu0 %1513
    %1515 = vrot.lane.b32.xlu0 %v1307, 64
    %v1516 = vpop.permute.xlu0 %1515
    %1549 = vrot.lane.b32.xlu0 %v1308, 96
    %v1550 = vpop.permute.xlu0 %1549
    %1551 = vrot.lane.b32.xlu0 %v1309, 96
    %v1552 = vpop.permute.xlu0 %1551
    %1553 = vrot.lane.b32.xlu0 %v1310, 96
    %v1554 = vpop.permute.xlu0 %1553
    %1555 = vrot.lane.b32.xlu0 %v1311, 96
    %v1556 = vpop.permute.xlu0 %1555
    %1557 = vrot.lane.b32.xlu0 %v1312, 96
    %v1558 = vpop.permute.xlu0 %1557
    %1559 = vrot.lane.b32.xlu0 %v1313, 96
    %v1560 = vpop.permute.xlu0 %1559
    %1561 = vrot.lane.b32.xlu0 %v1314, 96
    %v1562 = vpop.permute.xlu0 %1561
    %1563 = vrot.lane.b32.xlu0 %v1315, 96
    %v1564 = vpop.permute.xlu0 %1563
    %1565 = vrot.lane.b32.xlu0 %v1316, 96
    %v1566 = vpop.permute.xlu0 %1565
    %1567 = vrot.lane.b32.xlu0 %v1317, 96
    %v1568 = vpop.permute.xlu0 %1567
    %1569 = vrot.lane.b32.xlu0 %v1318, 96
    %v1570 = vpop.permute.xlu0 %1569
    %1571 = vrot.lane.b32.xlu0 %v1319, 96
    %v1572 = vpop.permute.xlu0 %1571
    %1573 = vrot.lane.b32.xlu0 %v1320, 96
    %v1574 = vpop.permute.xlu0 %1573
    %1575 = vrot.lane.b32.xlu0 %v1321, 96
    %v1576 = vpop.permute.xlu0 %1575
    %1577 = vrot.lane.b32.xlu0 %v1322, 96
    %v1578 = vpop.permute.xlu0 %1577
    %1579 = vrot.lane.b32.xlu0 %v1323, 96
    %v1580 = vpop.permute.xlu0 %1579
    %1613 = vrot.lane.b32.xlu0 %v1340, 32
    %v1614 = vpop.permute.xlu0 %1613
    %1615 = vrot.lane.b32.xlu0 %v1341, 32
    %v1616 = vpop.permute.xlu0 %1615
    %1617 = vrot.lane.b32.xlu0 %v1342, 32
    %v1618 = vpop.permute.xlu0 %1617
    %1619 = vrot.lane.b32.xlu0 %v1343, 32
    %v1620 = vpop.permute.xlu0 %1619
    %1621 = vrot.lane.b32.xlu0 %v1344, 32
    %v1622 = vpop.permute.xlu0 %1621
    %1623 = vrot.lane.b32.xlu0 %v1345, 32
    %v1624 = vpop.permute.xlu0 %1623
    %1625 = vrot.lane.b32.xlu0 %v1346, 32
    %v1626 = vpop.permute.xlu0 %1625
    %1627 = vrot.lane.b32.xlu0 %v1347, 32
    %v1628 = vpop.permute.xlu0 %1627
    %1629 = vrot.lane.b32.xlu0 %v1348, 32
    %v1630 = vpop.permute.xlu0 %1629
    %1631 = vrot.lane.b32.xlu0 %v1349, 32
    %v1632 = vpop.permute.xlu0 %1631
    %1633 = vrot.lane.b32.xlu0 %v1350, 32
    %v1634 = vpop.permute.xlu0 %1633
    %1635 = vrot.lane.b32.xlu0 %v1351, 32
    %v1636 = vpop.permute.xlu0 %1635
    %1637 = vrot.lane.b32.xlu0 %v1352, 32
    %v1638 = vpop.permute.xlu0 %1637
    %1639 = vrot.lane.b32.xlu0 %v1353, 32
    %v1640 = vpop.permute.xlu0 %1639
    %1641 = vrot.lane.b32.xlu0 %v1354, 32
    %v1642 = vpop.permute.xlu0 %1641
    %1643 = vrot.lane.b32.xlu0 %v1355, 32
    %v1644 = vpop.permute.xlu0 %1643
    %1677 = vrot.lane.b32.xlu0 %v1357, 64
    %v1678 = vpop.permute.xlu0 %1677
    %1679 = vrot.lane.b32.xlu0 %v1358, 64
    %v1680 = vpop.permute.xlu0 %1679
    %1681 = vrot.lane.b32.xlu0 %v1359, 64
    %v1682 = vpop.permute.xlu0 %1681
    %1683 = vrot.lane.b32.xlu0 %v1360, 64
    %v1684 = vpop.permute.xlu0 %1683
    %1685 = vrot.lane.b32.xlu0 %v1361, 64
    %v1686 = vpop.permute.xlu0 %1685
    %1687 = vrot.lane.b32.xlu0 %v1362, 64
    %v1688 = vpop.permute.xlu0 %1687
    %1689 = vrot.lane.b32.xlu0 %v1363, 64
    %v1690 = vpop.permute.xlu0 %1689
    %1691 = vrot.lane.b32.xlu0 %v1364, 64
    %v1692 = vpop.permute.xlu0 %1691
    %1693 = vrot.lane.b32.xlu0 %v1365, 64
    %v1694 = vpop.permute.xlu0 %1693
    %1695 = vrot.lane.b32.xlu0 %v1366, 64
    %v1696 = vpop.permute.xlu0 %1695
    %1697 = vrot.lane.b32.xlu0 %v1367, 64
    %v1698 = vpop.permute.xlu0 %1697
    %1699 = vrot.lane.b32.xlu0 %v1368, 64
    %v1700 = vpop.permute.xlu0 %1699
    %1701 = vrot.lane.b32.xlu0 %v1369, 64
    %v1702 = vpop.permute.xlu0 %1701
    %1703 = vrot.lane.b32.xlu0 %v1370, 64
    %v1704 = vpop.permute.xlu0 %1703
    %1705 = vrot.lane.b32.xlu0 %v1371, 64
    %v1706 = vpop.permute.xlu0 %1705
    %1707 = vrot.lane.b32.xlu0 %v1372, 64
    %v1708 = vpop.permute.xlu0 %1707
    %1741 = vrot.lane.b32.xlu0 %v1373, 96
    %v1742 = vpop.permute.xlu0 %1741
    %1743 = vrot.lane.b32.xlu0 %v1374, 96
    %v1744 = vpop.permute.xlu0 %1743
    %1745 = vrot.lane.b32.xlu0 %v1375, 96
    %v1746 = vpop.permute.xlu0 %1745
    %1747 = vrot.lane.b32.xlu0 %v1376, 96
    %v1748 = vpop.permute.xlu0 %1747
    %1749 = vrot.lane.b32.xlu0 %v1377, 96
    %v1750 = vpop.permute.xlu0 %1749
    %1751 = vrot.lane.b32.xlu0 %v1378, 96
    %v1752 = vpop.permute.xlu0 %1751
    %1753 = vrot.lane.b32.xlu0 %v1379, 96
    %v1754 = vpop.permute.xlu0 %1753
    %1755 = vrot.lane.b32.xlu0 %v1380, 96
    %v1756 = vpop.permute.xlu0 %1755
    %1757 = vrot.lane.b32.xlu0 %v1381, 96
    %v1758 = vpop.permute.xlu0 %1757
    %1759 = vrot.lane.b32.xlu0 %v1382, 96
    %v1760 = vpop.permute.xlu0 %1759
    %1761 = vrot.lane.b32.xlu0 %v1383, 96
    %v1762 = vpop.permute.xlu0 %1761
    %1763 = vrot.lane.b32.xlu0 %v1384, 96
    %v1764 = vpop.permute.xlu0 %1763
    %1765 = vrot.lane.b32.xlu0 %v1385, 96
    %v1766 = vpop.permute.xlu0 %1765
    %1767 = vrot.lane.b32.xlu0 %v1386, 96
    %v1768 = vpop.permute.xlu0 %1767
    %1769 = vrot.lane.b32.xlu0 %v1387, 96
    %v1770 = vpop.permute.xlu0 %1769
    %1771 = vrot.lane.b32.xlu0 %v1388, 96
    %v1772 = vpop.permute.xlu0 %1771
    %v1789 = vsel %vm1199, %v1260, %v1422
    %v1790 = vsel %vm1199, %v1261, %v1424
    %v1791 = vsel %vm1199, %v1262, %v1426
    %v1792 = vsel %vm1199, %v1263, %v1428
    %v1793 = vsel %vm1199, %v1264, %v1430
    %v1794 = vsel %vm1199, %v1265, %v1432
    %v1795 = vsel %vm1199, %v1266, %v1434
    %v1796 = vsel %vm1199, %v1267, %v1436
    %v1797 = vsel %vm1199, %v1268, %v1438
    %v1798 = vsel %vm1199, %v1269, %v1440
    %v1799 = vsel %vm1199, %v1270, %v1442
    %v1800 = vsel %vm1199, %v1271, %v1444
    %v1801 = vsel %vm1199, %v1272, %v1446
    %v1802 = vsel %vm1199, %v1273, %v1448
    %v1803 = vsel %vm1199, %v1274, %v1450
    %v1804 = vsel %vm1199, %v1275, %v1452
    %vm1805 = vcmask 523264
    %v1806 = vsel %vm1805, %v1789, %v1486
    %v1807 = vsel %vm1805, %v1790, %v1488
    %v1808 = vsel %vm1805, %v1791, %v1490
    %v1809 = vsel %vm1805, %v1792, %v1492
    %v1810 = vsel %vm1805, %v1793, %v1494
    %v1811 = vsel %vm1805, %v1794, %v1496
    %v1812 = vsel %vm1805, %v1795, %v1498
    %v1813 = vsel %vm1805, %v1796, %v1500
    %v1814 = vsel %vm1805, %v1797, %v1502
    %v1815 = vsel %vm1805, %v1798, %v1504
    %v1816 = vsel %vm1805, %v1799, %v1506
    %v1817 = vsel %vm1805, %v1800, %v1508
    %v1818 = vsel %vm1805, %v1801, %v1510
    %v1819 = vsel %vm1805, %v1802, %v1512
    %v1820 = vsel %vm1805, %v1803, %v1514
    %v1821 = vsel %vm1805, %v1804, %v1516
    %vm1822 = vcmask 785408
    %v1823 = vsel %vm1822, %v1806, %v1550
    %v1824 = vsel %vm1822, %v1807, %v1552
    %v1825 = vsel %vm1822, %v1808, %v1554
    %v1826 = vsel %vm1822, %v1809, %v1556
    %v1827 = vsel %vm1822, %v1810, %v1558
    %v1828 = vsel %vm1822, %v1811, %v1560
    %v1829 = vsel %vm1822, %v1812, %v1562
    %v1830 = vsel %vm1822, %v1813, %v1564
    %v1831 = vsel %vm1822, %v1814, %v1566
    %v1832 = vsel %vm1822, %v1815, %v1568
    %v1833 = vsel %vm1822, %v1816, %v1570
    %v1834 = vsel %vm1822, %v1817, %v1572
    %v1835 = vsel %vm1822, %v1818, %v1574
    %v1836 = vsel %vm1822, %v1819, %v1576
    %v1837 = vsel %vm1822, %v1820, %v1578
    %v1838 = vsel %vm1822, %v1821, %v1580
    %v1839 = vsel %vm1199, %v1324, %v1614
    %v1840 = vsel %vm1199, %v1325, %v1616
    %v1841 = vsel %vm1199, %v1326, %v1618
    %v1842 = vsel %vm1199, %v1327, %v1620
    %v1843 = vsel %vm1199, %v1328, %v1622
    %v1844 = vsel %vm1199, %v1329, %v1624
    %v1845 = vsel %vm1199, %v1330, %v1626
    %v1846 = vsel %vm1199, %v1331, %v1628
    %v1847 = vsel %vm1199, %v1332, %v1630
    %v1848 = vsel %vm1199, %v1333, %v1632
    %v1849 = vsel %vm1199, %v1334, %v1634
    %v1850 = vsel %vm1199, %v1335, %v1636
    %v1851 = vsel %vm1199, %v1336, %v1638
    %v1852 = vsel %vm1199, %v1337, %v1640
    %v1853 = vsel %vm1199, %v1338, %v1642
    %v1854 = vsel %vm1199, %v1339, %v1644
    %v1855 = vsel %vm1805, %v1839, %v1678
    %v1856 = vsel %vm1805, %v1840, %v1680
    %v1857 = vsel %vm1805, %v1841, %v1682
    %v1858 = vsel %vm1805, %v1842, %v1684
    %v1859 = vsel %vm1805, %v1843, %v1686
    %v1860 = vsel %vm1805, %v1844, %v1688
    %v1861 = vsel %vm1805, %v1845, %v1690
    %v1862 = vsel %vm1805, %v1846, %v1692
    %v1863 = vsel %vm1805, %v1847, %v1694
    %v1864 = vsel %vm1805, %v1848, %v1696
    %v1865 = vsel %vm1805, %v1849, %v1698
    %v1866 = vsel %vm1805, %v1850, %v1700
    %v1867 = vsel %vm1805, %v1851, %v1702
    %v1868 = vsel %vm1805, %v1852, %v1704
    %v1869 = vsel %vm1805, %v1853, %v1706
    %v1870 = vsel %vm1805, %v1854, %v1708
    %v1871 = vsel %vm1822, %v1855, %v1742
    %v1872 = vsel %vm1822, %v1856, %v1744
    %v1873 = vsel %vm1822, %v1857, %v1746
    %v1874 = vsel %vm1822, %v1858, %v1748
    %v1875 = vsel %vm1822, %v1859, %v1750
    %v1876 = vsel %vm1822, %v1860, %v1752
    %v1877 = vsel %vm1822, %v1861, %v1754
    %v1878 = vsel %vm1822, %v1862, %v1756
    %v1879 = vsel %vm1822, %v1863, %v1758
    %v1880 = vsel %vm1822, %v1864, %v1760
    %v1881 = vsel %vm1822, %v1865, %v1762
    %v1882 = vsel %vm1822, %v1866, %v1764
    %v1883 = vsel %vm1822, %v1867, %v1766
    %v1884 = vsel %vm1822, %v1868, %v1768
    %v1885 = vsel %vm1822, %v1869, %v1770
    %v1886 = vsel %vm1822, %v1870, %v1772
    %v1887 = vld [vmem:[%s3] sm:$0xff]
    %v1888 = vld [vmem:[%s3 + $0x8] sm:$0xff]
    %v1889 = vld [vmem:[%s3 + $0x10] sm:$0xff]
    %v1890 = vld [vmem:[%s3 + $0x18] sm:$0xff]
    %v1891 = vld [vmem:[%s3 + $0x20] sm:$0xff]
    %v1892 = vld [vmem:[%s3 + $0x28] sm:$0xff]
    %v1893 = vld [vmem:[%s3 + $0x30] sm:$0xff]
    %v1894 = vld [vmem:[%s3 + $0x38] sm:$0xff]
    %v1895 = vld [vmem:[%s3 + $0x40] sm:$0xff]
    %v1896 = vld [vmem:[%s3 + $0x48] sm:$0xff]
    %v1897 = vld [vmem:[%s3 + $0x50] sm:$0xff]
    %v1898 = vld [vmem:[%s3 + $0x58] sm:$0xff]
    %v1899 = vld [vmem:[%s3 + $0x60] sm:$0xff]
    %v1900 = vld [vmem:[%s3 + $0x68] sm:$0xff]
    %v1901 = vld [vmem:[%s3 + $0x70] sm:$0xff]
    %v1902 = vld [vmem:[%s3 + $0x78] sm:$0xff]
    %v1903 = vld [vmem:[%s3 + $0x80] sm:$0xff]
    %v1904 = vld [vmem:[%s3 + $0x88] sm:$0xff]
    %v1905 = vld [vmem:[%s3 + $0x90] sm:$0xff]
    %v1906 = vld [vmem:[%s3 + $0x98] sm:$0xff]
    %v1907 = vld [vmem:[%s3 + $0xa0] sm:$0xff]
    %v1908 = vld [vmem:[%s3 + $0xa8] sm:$0xff]
    %v1909 = vld [vmem:[%s3 + $0xb0] sm:$0xff]
    %v1910 = vld [vmem:[%s3 + $0xb8] sm:$0xff]
    %v1911 = vld [vmem:[%s3 + $0xc0] sm:$0xff]
    %v1912 = vld [vmem:[%s3 + $0xc8] sm:$0xff]
    %v1913 = vld [vmem:[%s3 + $0xd0] sm:$0xff]
    %v1914 = vld [vmem:[%s3 + $0xd8] sm:$0xff]
    %v1915 = vld [vmem:[%s3 + $0xe0] sm:$0xff]
    %v1916 = vld [vmem:[%s3 + $0xe8] sm:$0xff]
    %v1917 = vld [vmem:[%s3 + $0xf0] sm:$0xff]
    %v1918 = vld [vmem:[%s3 + $0xf8] sm:$0xff]
    %v1919 = vld [vmem:[%s3 + $0x100] sm:$0xff]
    %v1920 = vld [vmem:[%s3 + $0x108] sm:$0xff]
    %v1921 = vld [vmem:[%s3 + $0x110] sm:$0xff]
    %v1922 = vld [vmem:[%s3 + $0x118] sm:$0xff]
    %v1923 = vld [vmem:[#allocation9] sm:$0x1]
    %v1925 = vlaneseq
    %v1926 = vshrl.u32 %v1925, 7
    %v1927 = vsub.s32 0, %v1926
    %v1928 = vrot.slane %v1923, %v1927
    %v1931 = vsel %vm1199, %v1389, 0
    %v1934 = vsel %vm1199, %v1390, 0
    %v1937 = vsel %vm1199, %v1391, 0
    %v1940 = vsel %vm1199, %v1392, 0
    %v1943 = vsel %vm1199, %v1393, 0
    %v1946 = vsel %vm1199, %v1394, 0
    %v1949 = vsel %vm1199, %v1395, 0
    %v1952 = vsel %vm1199, %v1396, 0
    %v1955 = vsel %vm1199, %v1397, 0
    %v1958 = vsel %vm1199, %v1398, 0
    %v1961 = vsel %vm1199, %v1399, 0
    %v1964 = vsel %vm1199, %v1400, 0
    %v1967 = vsel %vm1199, %v1401, 0
    %v1970 = vsel %vm1199, %v1402, 0
    %v1973 = vsel %vm1199, %v1403, 0
    %v1976 = vsel %vm1199, %v1404, 0
    %1978 = vmatprep.subr.mxu0 0.0
    %1979 = vmatpush1.msra.mxu0 %v1887
    %1980 = vmatprep.subr.mxu0 0.0
    %1981 = vmatpush1.msra.mxu0 %v1888
    %1982 = vmatprep.subr.mxu0 0.0
    %1983 = vmatpush1.msra.mxu0 %v1889
    %1984 = vmatprep.subr.mxu0 0.0
    %1985 = vmatpush1.msra.mxu0 %v1890
    %1986 = vmatprep.subr.mxu0 0.0
    %1987 = vmatpush1.msra.mxu0 %v1891
    %1988 = vmatprep.subr.mxu0 0.0
    %1989 = vmatpush1.msra.mxu0 %v1892
    %1990 = vmatprep.subr.mxu0 0.0
    %1991 = vmatpush1.msra.mxu0 %v1893
    %1992 = vmatprep.subr.mxu0 0.0
    %1993 = vmatpush1.msra.mxu0 %v1894
    %1994 = vmatprep.subr.mxu0 0.0
    %1995 = vmatpush1.msra.mxu0 %v1895
    %1996 = vmatprep.subr.mxu0 0.0
    %1997 = vmatpush1.msra.mxu0 %v1896
    %1998 = vmatprep.subr.mxu0 0.0
    %1999 = vmatpush1.msra.mxu0 %v1897
    %2000 = vmatprep.subr.mxu0 0.0
    %2001 = vmatpush1.msra.mxu0 %v1898
    %2002 = vmatprep.subr.mxu0 0.0
    %2003 = vmatpush1.msra.mxu0 %v1899
    %2004 = vmatprep.subr.mxu0 0.0
    %2005 = vmatpush1.msra.mxu0 %v1900
    %2006 = vmatprep.subr.mxu0 0.0
    %2007 = vmatpush1.msra.mxu0 %v1901
    %2008 = vmatprep.subr.mxu0 0.0
    %2009 = vmatpush1.msra.mxu0 %v1902
    %2010 = vmatprep.subr.mxu0 0.0
    %2011 = vmatpush1.msra.mxu0 %v1903
    %2012 = vmatprep.subr.mxu0 0.0
    %2013 = vmatpush1.msra.mxu0 %v1904
    %2014 = vmatprep.subr.mxu0 0.0
    %2015 = vmatpush1.msra.mxu0 %v1905
    %2016 = vmatprep.subr.mxu0 0.0
    %2017 = vmatpush1.msra.mxu0 %v1906
    %2018 = vmatprep.subr.mxu0 0.0
    %2019 = vmatpush1.msra.mxu0 %v1907
    %2020 = vmatprep.subr.mxu0 0.0
    %2021 = vmatpush1.msra.mxu0 %v1908
    %2022 = vmatprep.subr.mxu0 0.0
    %2023 = vmatpush1.msra.mxu0 %v1909
    %2024 = vmatprep.subr.mxu0 0.0
    %2025 = vmatpush1.msra.mxu0 %v1910
    %2026 = vmatprep.subr.mxu0 0.0
    %2027 = vmatpush1.msra.mxu0 %v1911
    %2028 = vmatprep.subr.mxu0 0.0
    %2029 = vmatpush1.msra.mxu0 %v1912
    %2030 = vmatprep.subr.mxu0 0.0
    %2031 = vmatpush1.msra.mxu0 %v1913
    %2032 = vmatprep.subr.mxu0 0.0
    %2033 = vmatpush1.msra.mxu0 %v1914
    %2034 = vmatprep.subr.mxu0 0.0
    %2035 = vmatpush1.msra.mxu0 %v1915
    %2036 = vmatprep.subr.mxu0 0.0
    %2037 = vmatpush1.msra.mxu0 %v1916
    %2038 = vmatprep.subr.mxu0 0.0
    %2039 = vmatpush1.msra.mxu0 %v1917
    %2040 = vmatprep.subr.mxu0 0.0
    %2041 = vmatpush1.msra.mxu0 %v1918
    %2042 = vmatprep.mubr.f32.mxu0 %v1871
    %2043 = vmatmul.mubr.f32.gmra.mrb[0].mxu0 %v1823
    %v2044 = vpop.f32.mrb[0].mxu0
    %v2045 = vadd.f32 %v1928, %v2044
    %v2046 = vpop.f32.mrb[0].mxu0
    %2047 = vmatprep.mubr.f32.mxu0 %v1872
    %2048 = vmatmul.mubr.f32.gmra.mrb[0].mxu0 %v1824
    %v2049 = vpop.f32.mrb[0].mxu0
    %v2050 = vadd.f32 %v1928, %v2049
    %v2051 = vpop.f32.mrb[0].mxu0
    %2052 = vmatprep.mubr.f32.mxu0 %v1873
    %2053 = vmatmul.mubr.f32.gmra.mrb[0].mxu0 %v1825
    %v2054 = vpop.f32.mrb[0].mxu0
    %v2055 = vadd.f32 %v1928, %v2054
    %v2056 = vpop.f32.mrb[0].mxu0
    %2057 = vmatprep.mubr.f32.mxu0 %v1874
    %2058 = vmatmul.mubr.f32.gmra.mrb[0].mxu0 %v1826
    %v2059 = vpop.f32.mrb[0].mxu0
    %v2060 = vadd.f32 %v1928, %v2059
    %v2061 = vpop.f32.mrb[0].mxu0
    %2062 = vmatprep.mubr.f32.mxu0 %v1875
    %2063 = vmatmul.mubr.f32.gmra.mrb[0].mxu0 %v1827
    %v2064 = vpop.f32.mrb[0].mxu0
    %v2065 = vadd.f32 %v1928, %v2064
    %v2066 = vpop.f32.mrb[0].mxu0
    %2067 = vmatprep.mubr.f32.mxu0 %v1876
    %2068 = vmatmul.mubr.f32.gmra.mrb[0].mxu0 %v1828
    %v2069 = vpop.f32.mrb[0].mxu0
    %v2070 = vadd.f32 %v1928, %v2069
    %v2071 = vpop.f32.mrb[0].mxu0
    %2072 = vmatprep.mubr.f32.mxu0 %v1877
    %2073 = vmatmul.mubr.f32.gmra.mrb[0].mxu0 %v1829
    %v2074 = vpop.f32.mrb[0].mxu0
    %v2075 = vadd.f32 %v1928, %v2074
    %v2076 = vpop.f32.mrb[0].mxu0
    %2077 = vmatprep.mubr.f32.mxu0 %v1878
    %2078 = vmatmul.mubr.f32.gmra.mrb[0].mxu0 %v1830
    %v2079 = vpop.f32.mrb[0].mxu0
    %v2080 = vadd.f32 %v1928, %v2079
    %v2081 = vpop.f32.mrb[0].mxu0
    %2082 = vmatprep.mubr.f32.mxu0 %v1879
    %2083 = vmatmul.mubr.f32.gmra.mrb[0].mxu0 %v1831
    %v2084 = vpop.f32.mrb[0].mxu0
    %v2085 = vadd.f32 %v1928, %v2084
    %v2086 = vpop.f32.mrb[0].mxu0
    %2087 = vmatprep.mubr.f32.mxu0 %v1880
    %2088 = vmatmul.mubr.f32.gmra.mrb[0].mxu0 %v1832
    %v2089 = vpop.f32.mrb[0].mxu0
    %v2090 = vadd.f32 %v1928, %v2089
    %v2091 = vpop.f32.mrb[0].mxu0
    %2092 = vmatprep.mubr.f32.mxu0 %v1881
    %2093 = vmatmul.mubr.f32.gmra.mrb[0].mxu0 %v1833
    %v2094 = vpop.f32.mrb[0].mxu0
    %v2095 = vadd.f32 %v1928, %v2094
    %v2096 = vpop.f32.mrb[0].mxu0
    %2097 = vmatprep.mubr.f32.mxu0 %v1882
    %2098 = vmatmul.mubr.f32.gmra.mrb[0].mxu0 %v1834
    %v2099 = vpop.f32.mrb[0].mxu0
    %v2100 = vadd.f32 %v1928, %v2099
    %v2101 = vpop.f32.mrb[0].mxu0
    %2102 = vmatprep.mubr.f32.mxu0 %v1883
    %2103 = vmatmul.mubr.f32.gmra.mrb[0].mxu0 %v1835
    %v2104 = vpop.f32.mrb[0].mxu0
    %v2105 = vadd.f32 %v1928, %v2104
    %v2106 = vpop.f32.mrb[0].mxu0
    %2107 = vmatprep.mubr.f32.mxu0 %v1884
    %2108 = vmatmul.mubr.f32.gmra.mrb[0].mxu0 %v1836
    %v2109 = vpop.f32.mrb[0].mxu0
    %v2110 = vadd.f32 %v1928, %v2109
    %v2111 = vpop.f32.mrb[0].mxu0
    %2112 = vmatprep.mubr.f32.mxu0 %v1885
    %2113 = vmatmul.mubr.f32.gmra.mrb[0].mxu0 %v1837
    %v2114 = vpop.f32.mrb[0].mxu0
    %v2115 = vadd.f32 %v1928, %v2114
    %v2116 = vpop.f32.mrb[0].mxu0
    %2117 = vmatprep.mubr.f32.mxu0 %v1886
    %2118 = vmatmul.mubr.f32.gmra.mrb[0].mxu0 %v1838
    %v2119 = vpop.f32.mrb[0].mxu0
    %v2120 = vadd.f32 %v1928, %v2119
    %v2121 = vpop.f32.mrb[0].mxu0
    %2122 = vdwg.mxu0
    %2123 = vmatprep.subr.mxu0 0.0
    %2124 = vmatpush1.msra.mxu0 %v1919
    %2125 = vmatprep.subr.mxu0 0.0
    %2126 = vmatpush1.msra.mxu0 %v1920
    %2127 = vmatprep.subr.mxu0 0.0
    %2128 = vmatpush1.msra.mxu0 %v1921
    %2129 = vmatprep.subr.mxu0 0.0
    %2130 = vmatpush1.msra.mxu0 %v1922
    %2131 = vmatprep.subr.mxu0 0.0
    %2132 = vmatpush1.msra.mxu0 0.0
    %2133 = vmatprep.subr.mxu0 0.0
    %2134 = vmatpush1.msra.mxu0 0.0
    %2135 = vmatprep.subr.mxu0 0.0
    %2136 = vmatpush1.msra.mxu0 0.0
    %2137 = vmatprep.subr.mxu0 0.0
    %2138 = vmatpush1.msra.mxu0 0.0
    %2139 = vmatprep.subr.mxu0 0.0
    %2140 = vmatpush1.msra.mxu0 0.0
    %2141 = vmatprep.subr.mxu0 0.0
    %2142 = vmatpush1.msra.mxu0 0.0
    %2143 = vmatprep.subr.mxu0 0.0
    %2144 = vmatpush1.msra.mxu0 0.0
    %2145 = vmatprep.subr.mxu0 0.0
    %2146 = vmatpush1.msra.mxu0 0.0
    %2147 = vmatprep.subr.mxu0 0.0
    %2148 = vmatpush1.msra.mxu0 0.0
    %2149 = vmatprep.subr.mxu0 0.0
    %2150 = vmatpush1.msra.mxu0 0.0
    %2151 = vmatprep.subr.mxu0 0.0
    %2152 = vmatpush1.msra.mxu0 0.0
    %2153 = vmatprep.subr.mxu0 0.0
    %2154 = vmatpush1.msra.mxu0 0.0
    %2155 = vmatprep.subr.mxu0 0.0
    %2156 = vmatpush1.msra.mxu0 0.0
    %2157 = vmatprep.subr.mxu0 0.0
    %2158 = vmatpush1.msra.mxu0 0.0
    %2159 = vmatprep.subr.mxu0 0.0
    %2160 = vmatpush1.msra.mxu0 0.0
    %2161 = vmatprep.subr.mxu0 0.0
    %2162 = vmatpush1.msra.mxu0 0.0
    %2163 = vmatprep.subr.mxu0 0.0
    %2164 = vmatpush1.msra.mxu0 0.0
    %2165 = vmatprep.subr.mxu0 0.0
    %2166 = vmatpush1.msra.mxu0 0.0
    %2167 = vmatprep.subr.mxu0 0.0
    %2168 = vmatpush1.msra.mxu0 0.0
    %2169 = vmatprep.subr.mxu0 0.0
    %2170 = vmatpush1.msra.mxu0 0.0
    %2171 = vmatprep.subr.mxu0 0.0
    %2172 = vmatpush1.msra.mxu0 0.0
    %2173 = vmatprep.subr.mxu0 0.0
    %2174 = vmatpush1.msra.mxu0 0.0
    %2175 = vmatprep.subr.mxu0 0.0
    %2176 = vmatpush1.msra.mxu0 0.0
    %2177 = vmatprep.subr.mxu0 0.0
    %2178 = vmatpush1.msra.mxu0 0.0
    %2179 = vmatprep.subr.mxu0 0.0
    %2180 = vmatpush1.msra.mxu0 0.0
    %2181 = vmatprep.subr.mxu0 0.0
    %2182 = vmatpush1.msra.mxu0 0.0
    %2183 = vmatprep.subr.mxu0 0.0
    %2184 = vmatpush1.msra.mxu0 0.0
    %2185 = vmatprep.subr.mxu0 0.0
    %2186 = vmatpush1.msra.mxu0 0.0
    %2187 = vmatprep.mubr.f32.mxu0 0.0
    %2188 = vmatmul.mubr.f32.gmra.mrb[0].mxu0 %v1931
    %v2189 = vpop.f32.mrb[0].mxu0
    %v2190 = vadd.f32 %v2045, %v2189
    %v2191 = vpop.f32.mrb[0].mxu0
    %2192 = vmatprep.mubr.f32.mxu0 0.0
    %2193 = vmatmul.mubr.f32.gmra.mrb[0].mxu0 %v1934
    %v2194 = vpop.f32.mrb[0].mxu0
    %v2195 = vadd.f32 %v2050, %v2194
    %v2196 = vpop.f32.mrb[0].mxu0
    %2197 = vmatprep.mubr.f32.mxu0 0.0
    %2198 = vmatmul.mubr.f32.gmra.mrb[0].mxu0 %v1937
    %v2199 = vpop.f32.mrb[0].mxu0
    %v2200 = vadd.f32 %v2055, %v2199
    %v2201 = vpop.f32.mrb[0].mxu0
    %2202 = vmatprep.mubr.f32.mxu0 0.0
    %2203 = vmatmul.mubr.f32.gmra.mrb[0].mxu0 %v1940
    %v2204 = vpop.f32.mrb[0].mxu0
    %v2205 = vadd.f32 %v2060, %v2204
    %v2206 = vpop.f32.mrb[0].mxu0
    %2207 = vmatprep.mubr.f32.mxu0 0.0
    %2208 = vmatmul.mubr.f32.gmra.mrb[0].mxu0 %v1943
    %v2209 = vpop.f32.mrb[0].mxu0
    %v2210 = vadd.f32 %v2065, %v2209
    %v2211 = vpop.f32.mrb[0].mxu0
    %2212 = vmatprep.mubr.f32.mxu0 0.0
    %2213 = vmatmul.mubr.f32.gmra.mrb[0].mxu0 %v1946
    %v2214 = vpop.f32.mrb[0].mxu0
    %v2215 = vadd.f32 %v2070, %v2214
    %v2216 = vpop.f32.mrb[0].mxu0
    %2217 = vmatprep.mubr.f32.mxu0 0.0
    %2218 = vmatmul.mubr.f32.gmra.mrb[0].mxu0 %v1949
    %v2219 = vpop.f32.mrb[0].mxu0
    %v2220 = vadd.f32 %v2075, %v2219
    %v2221 = vpop.f32.mrb[0].mxu0
    %2222 = vmatprep.mubr.f32.mxu0 0.0
    %2223 = vmatmul.mubr.f32.gmra.mrb[0].mxu0 %v1952
    %v2224 = vpop.f32.mrb[0].mxu0
    %v2225 = vadd.f32 %v2080, %v2224
    %v2226 = vpop.f32.mrb[0].mxu0
    %2227 = vmatprep.mubr.f32.mxu0 0.0
    %2228 = vmatmul.mubr.f32.gmra.mrb[0].mxu0 %v1955
    %v2229 = vpop.f32.mrb[0].mxu0
    %v2230 = vadd.f32 %v2085, %v2229
    %v2231 = vpop.f32.mrb[0].mxu0
    %2232 = vmatprep.mubr.f32.mxu0 0.0
    %2233 = vmatmul.mubr.f32.gmra.mrb[0].mxu0 %v1958
    %v2234 = vpop.f32.mrb[0].mxu0
    %v2235 = vadd.f32 %v2090, %v2234
    %v2236 = vpop.f32.mrb[0].mxu0
    %2237 = vmatprep.mubr.f32.mxu0 0.0
    %2238 = vmatmul.mubr.f32.gmra.mrb[0].mxu0 %v1961
    %v2239 = vpop.f32.mrb[0].mxu0
    %v2240 = vadd.f32 %v2095, %v2239
    %v2241 = vpop.f32.mrb[0].mxu0
    %2242 = vmatprep.mubr.f32.mxu0 0.0
    %2243 = vmatmul.mubr.f32.gmra.mrb[0].mxu0 %v1964
    %v2244 = vpop.f32.mrb[0].mxu0
    %v2245 = vadd.f32 %v2100, %v2244
    %v2246 = vpop.f32.mrb[0].mxu0
    %2247 = vmatprep.mubr.f32.mxu0 0.0
    %2248 = vmatmul.mubr.f32.gmra.mrb[0].mxu0 %v1967
    %v2249 = vpop.f32.mrb[0].mxu0
    %v2250 = vadd.f32 %v2105, %v2249
    %v2251 = vpop.f32.mrb[0].mxu0
    %2252 = vmatprep.mubr.f32.mxu0 0.0
    %2253 = vmatmul.mubr.f32.gmra.mrb[0].mxu0 %v1970
    %v2254 = vpop.f32.mrb[0].mxu0
    %v2255 = vadd.f32 %v2110, %v2254
    %v2256 = vpop.f32.mrb[0].mxu0
    %2257 = vmatprep.mubr.f32.mxu0 0.0
    %2258 = vmatmul.mubr.f32.gmra.mrb[0].mxu0 %v1973
    %v2259 = vpop.f32.mrb[0].mxu0
    %v2260 = vadd.f32 %v2115, %v2259
    %v2261 = vpop.f32.mrb[0].mxu0
    %2262 = vmatprep.mubr.f32.mxu0 0.0
    %2263 = vmatmul.mubr.f32.gmra.mrb[0].mxu0 %v1976
    %v2264 = vpop.f32.mrb[0].mxu0
    %v2265 = vadd.f32 %v2120, %v2264
    %v2266 = vpop.f32.mrb[0].mxu0
    %2267 = vdwg.mxu0
    %v2268 = vmax.f32 %v2190, 0.0
    %v2269 = vmax.f32 %v2195, 0.0
    %v2270 = vmax.f32 %v2200, 0.0
    %v2271 = vmax.f32 %v2205, 0.0
    %v2272 = vmax.f32 %v2210, 0.0
    %v2273 = vmax.f32 %v2215, 0.0
    %v2274 = vmax.f32 %v2220, 0.0
    %v2275 = vmax.f32 %v2225, 0.0
    %v2276 = vmax.f32 %v2230, 0.0
    %v2277 = vmax.f32 %v2235, 0.0
    %v2278 = vmax.f32 %v2240, 0.0
    %v2279 = vmax.f32 %v2245, 0.0
    %v2280 = vmax.f32 %v2250, 0.0
    %v2281 = vmax.f32 %v2255, 0.0
    %v2282 = vmax.f32 %v2260, 0.0
    %v2283 = vmax.f32 %v2265, 0.0
    %2292 = vrot.lane.b32.xlu0 %v2272, 64
    %v2293 = vpop.permute.xlu0 %2292
    %2294 = vrot.lane.b32.xlu0 %v2273, 64
    %v2295 = vpop.permute.xlu0 %2294
    %2296 = vrot.lane.b32.xlu0 %v2274, 64
    %v2297 = vpop.permute.xlu0 %2296
    %2298 = vrot.lane.b32.xlu0 %v2275, 64
    %v2299 = vpop.permute.xlu0 %2298
    %2300 = vrot.lane.b32.xlu0 %v2280, 64
    %v2301 = vpop.permute.xlu0 %2300
    %2302 = vrot.lane.b32.xlu0 %v2281, 64
    %v2303 = vpop.permute.xlu0 %2302
    %2304 = vrot.lane.b32.xlu0 %v2282, 64
    %v2305 = vpop.permute.xlu0 %2304
    %2306 = vrot.lane.b32.xlu0 %v2283, 64
    %v2307 = vpop.permute.xlu0 %2306
    %v2316 = vsel %vm1805, %v2268, %v2293
    %v2317 = vsel %vm1805, %v2269, %v2295
    %v2318 = vsel %vm1805, %v2270, %v2297
    %v2319 = vsel %vm1805, %v2271, %v2299
    %v2320 = vsel %vm1805, %v2276, %v2301
    %v2321 = vsel %vm1805, %v2277, %v2303
    %v2322 = vsel %vm1805, %v2278, %v2305
    %v2323 = vsel %vm1805, %v2279, %v2307
    %v2332 = vrot.slane %v2316, 4
    %v2333 = vrot.slane %v2318, 4
    %v2334 = vrot.slane %v2317, 4
    %v2335 = vrot.slane %v2319, 4
    %v2336 = vrot.slane %v2320, 4
    %v2337 = vrot.slane %v2322, 4
    %v2338 = vrot.slane %v2321, 4
    %v2339 = vrot.slane %v2323, 4
    %v2340 = vrot.slane %v2316, 2
    %v2341 = vrot.slane %v2318, 2
    %v2342 = vrot.slane %v2317, 2
    %v2343 = vrot.slane %v2319, 2
    %v2344 = vrot.slane %v2332, 2
    %v2345 = vrot.slane %v2333, 2
    %v2346 = vrot.slane %v2334, 2
    %v2347 = vrot.slane %v2335, 2
    %v2348 = vrot.slane %v2320, 2
    %v2349 = vrot.slane %v2322, 2
    %v2350 = vrot.slane %v2321, 2
    %v2351 = vrot.slane %v2323, 2
    %v2352 = vrot.slane %v2336, 2
    %v2353 = vrot.slane %v2337, 2
    %v2354 = vrot.slane %v2338, 2
    %v2355 = vrot.slane %v2339, 2
    %v2356 = vrot.slane %v2316, 1
    %v2357 = vrot.slane %v2318, 1
    %v2358 = vrot.slane %v2317, 1
    %v2359 = vrot.slane %v2319, 1
    %v2360 = vrot.slane %v2332, 1
    %v2361 = vrot.slane %v2333, 1
    %v2362 = vrot.slane %v2334, 1
    %v2363 = vrot.slane %v2335, 1
    %v2364 = vrot.slane %v2340, 1
    %v2365 = vrot.slane %v2341, 1
    %v2366 = vrot.slane %v2342, 1
    %v2367 = vrot.slane %v2343, 1
    %v2368 = vrot.slane %v2344, 1
    %v2369 = vrot.slane %v2345, 1
    %v2370 = vrot.slane %v2346, 1
    %v2371 = vrot.slane %v2347, 1
    %v2372 = vrot.slane %v2320, 1
    %v2373 = vrot.slane %v2322, 1
    %v2374 = vrot.slane %v2321, 1
    %v2375 = vrot.slane %v2323, 1
    %v2376 = vrot.slane %v2336, 1
    %v2377 = vrot.slane %v2337, 1
    %v2378 = vrot.slane %v2338, 1
    %v2379 = vrot.slane %v2339, 1
    %v2380 = vrot.slane %v2348, 1
    %v2381 = vrot.slane %v2349, 1
    %v2382 = vrot.slane %v2350, 1
    %v2383 = vrot.slane %v2351, 1
    %v2384 = vrot.slane %v2352, 1
    %v2385 = vrot.slane %v2353, 1
    %v2386 = vrot.slane %v2354, 1
    %v2387 = vrot.slane %v2355, 1
    %v2388 = vld [vmem:[#allocation10] sm:$0xff]
    %v2389 = vld [vmem:[#allocation10 + $0x8] sm:$0xff]
    %v2390 = vld [vmem:[#allocation10 + $0x10] sm:$0xff]
    %v2391 = vld [vmem:[#allocation10 + $0x18] sm:$0xff]
    %v2392 = vld [vmem:[#allocation10 + $0x20] sm:$0xff]
    %v2393 = vld [vmem:[#allocation10 + $0x28] sm:$0xff]
    %v2394 = vld [vmem:[#allocation10 + $0x30] sm:$0xff]
    %v2395 = vld [vmem:[#allocation10 + $0x38] sm:$0xff]
    %v2396 = vld [vmem:[#allocation10 + $0x40] sm:$0xff]
    %v2397 = vld [vmem:[#allocation10 + $0x48] sm:$0xff]
    %v2398 = vld [vmem:[#allocation10 + $0x50] sm:$0xff]
    %v2399 = vld [vmem:[#allocation10 + $0x58] sm:$0xff]
    %v2400 = vld [vmem:[#allocation10 + $0x60] sm:$0xff]
    %v2401 = vld [vmem:[#allocation10 + $0x68] sm:$0xff]
    %v2402 = vld [vmem:[#allocation10 + $0x70] sm:$0xff]
    %v2403 = vld [vmem:[#allocation10 + $0x78] sm:$0xff]
    %v2404 = vld [vmem:[#allocation10 + $0x80] sm:$0xff]
    %v2405 = vld [vmem:[#allocation10 + $0x88] sm:$0xff]
    %v2406 = vld [vmem:[#allocation10 + $0x90] sm:$0xff]
    %v2407 = vld [vmem:[#allocation10 + $0x98] sm:$0xff]
    %v2408 = vld [vmem:[#allocation10 + $0xa0] sm:$0xff]
    %v2409 = vld [vmem:[#allocation10 + $0xa8] sm:$0xff]
    %v2410 = vld [vmem:[#allocation10 + $0xb0] sm:$0xff]
    %v2411 = vld [vmem:[#allocation10 + $0xb8] sm:$0xff]
    %v2412 = vld [vmem:[#allocation10 + $0xc0] sm:$0xff]
    %v2413 = vld [vmem:[#allocation10 + $0xc8] sm:$0xff]
    %v2414 = vld [vmem:[#allocation10 + $0xd0] sm:$0xff]
    %v2415 = vld [vmem:[#allocation10 + $0xd8] sm:$0xff]
    %v2416 = vld [vmem:[#allocation10 + $0xe0] sm:$0xff]
    %v2417 = vld [vmem:[#allocation10 + $0xe8] sm:$0xff]
    %v2418 = vld [vmem:[#allocation10 + $0xf0] sm:$0xff]
    %v2419 = vld [vmem:[#allocation10 + $0xf8] sm:$0xff]
    %v2420 = vld [vmem:[#allocation10 + $0x100] sm:$0xff]
    %v2421 = vld [vmem:[#allocation10 + $0x108] sm:$0xff]
    %v2422 = vld [vmem:[#allocation10 + $0x110] sm:$0xff]
    %v2423 = vld [vmem:[#allocation10 + $0x118] sm:$0xff]
    %v2424 = vld [vmem:[#allocation10 + $0x120] sm:$0xff]
    %v2425 = vld [vmem:[#allocation10 + $0x128] sm:$0xff]
    %v2426 = vld [vmem:[#allocation10 + $0x130] sm:$0xff]
    %v2427 = vld [vmem:[#allocation10 + $0x138] sm:$0xff]
    %v2428 = vld [vmem:[#allocation10 + $0x140] sm:$0xff]
    %v2429 = vld [vmem:[#allocation10 + $0x148] sm:$0xff]
    %v2430 = vld [vmem:[#allocation10 + $0x150] sm:$0xff]
    %v2431 = vld [vmem:[#allocation10 + $0x158] sm:$0xff]
    %v2432 = vld [vmem:[#allocation10 + $0x160] sm:$0xff]
    %v2433 = vld [vmem:[#allocation10 + $0x168] sm:$0xff]
    %v2434 = vld [vmem:[#allocation10 + $0x170] sm:$0xff]
    %v2435 = vld [vmem:[#allocation10 + $0x178] sm:$0xff]
    %v2436 = vld [vmem:[#allocation10 + $0x180] sm:$0xff]
    %v2437 = vld [vmem:[#allocation10 + $0x188] sm:$0xff]
    %v2438 = vld [vmem:[#allocation10 + $0x190] sm:$0xff]
    %v2439 = vld [vmem:[#allocation10 + $0x198] sm:$0xff]
    %v2440 = vld [vmem:[#allocation10 + $0x1a0] sm:$0xff]
    %v2441 = vld [vmem:[#allocation10 + $0x1a8] sm:$0xff]
    %v2442 = vld [vmem:[#allocation10 + $0x1b0] sm:$0xff]
    %v2443 = vld [vmem:[#allocation10 + $0x1b8] sm:$0xff]
    %v2444 = vld [vmem:[#allocation10 + $0x1c0] sm:$0xff]
    %v2445 = vld [vmem:[#allocation10 + $0x1c8] sm:$0xff]
    %v2446 = vld [vmem:[#allocation10 + $0x1d0] sm:$0xff]
    %v2447 = vld [vmem:[#allocation10 + $0x1d8] sm:$0xff]
    %v2448 = vld [vmem:[#allocation10 + $0x1e0] sm:$0xff]
    %v2449 = vld [vmem:[#allocation10 + $0x1e8] sm:$0xff]
    %v2450 = vld [vmem:[#allocation10 + $0x1f0] sm:$0xff]
    %v2451 = vld [vmem:[#allocation10 + $0x1f8] sm:$0xff]
    %v2452 = vld [vmem:[#allocation10 + $0x200] sm:$0xff]
    %v2453 = vld [vmem:[#allocation10 + $0x208] sm:$0xff]
    %v2454 = vld [vmem:[#allocation10 + $0x210] sm:$0xff]
    %v2455 = vld [vmem:[#allocation10 + $0x218] sm:$0xff]
    %v2456 = vld [vmem:[#allocation10 + $0x220] sm:$0xff]
    %v2457 = vld [vmem:[#allocation10 + $0x228] sm:$0xff]
    %v2458 = vld [vmem:[#allocation10 + $0x230] sm:$0xff]
    %v2459 = vld [vmem:[#allocation10 + $0x238] sm:$0xff]
    %v2460 = vld [vmem:[#allocation10 + $0x240] sm:$0xff]
    %v2461 = vld [vmem:[#allocation10 + $0x248] sm:$0xff]
    %v2462 = vld [vmem:[#allocation10 + $0x250] sm:$0xff]
    %v2463 = vld [vmem:[#allocation10 + $0x258] sm:$0xff]
    %v2464 = vld [vmem:[#allocation10 + $0x260] sm:$0xff]
    %v2465 = vld [vmem:[#allocation10 + $0x268] sm:$0xff]
    %v2466 = vld [vmem:[#allocation10 + $0x270] sm:$0xff]
    %v2467 = vld [vmem:[#allocation10 + $0x278] sm:$0xff]
    %v2468 = vld [vmem:[#allocation10 + $0x280] sm:$0xff]
    %v2469 = vld [vmem:[#allocation10 + $0x288] sm:$0xff]
    %v2470 = vld [vmem:[#allocation10 + $0x290] sm:$0xff]
    %v2471 = vld [vmem:[#allocation10 + $0x298] sm:$0xff]
    %v2472 = vld [vmem:[#allocation10 + $0x2a0] sm:$0xff]
    %v2473 = vld [vmem:[#allocation10 + $0x2a8] sm:$0xff]
    %v2474 = vld [vmem:[#allocation10 + $0x2b0] sm:$0xff]
    %v2475 = vld [vmem:[#allocation10 + $0x2b8] sm:$0xff]
    %v2476 = vld [vmem:[#allocation10 + $0x2c0] sm:$0xff]
    %v2477 = vld [vmem:[#allocation10 + $0x2c8] sm:$0xff]
    %v2478 = vld [vmem:[#allocation10 + $0x2d0] sm:$0xff]
    %v2479 = vld [vmem:[#allocation10 + $0x2d8] sm:$0xff]
    %v2480 = vld [vmem:[#allocation10 + $0x2e0] sm:$0xff]
    %v2481 = vld [vmem:[#allocation10 + $0x2e8] sm:$0xff]
    %v2482 = vld [vmem:[#allocation10 + $0x2f0] sm:$0xff]
    %v2483 = vld [vmem:[#allocation10 + $0x2f8] sm:$0xff]
    %v2484 = vld [vmem:[#allocation10 + $0x300] sm:$0xff]
    %v2485 = vld [vmem:[#allocation10 + $0x308] sm:$0xff]
    %v2486 = vld [vmem:[#allocation10 + $0x310] sm:$0xff]
    %v2487 = vld [vmem:[#allocation10 + $0x318] sm:$0xff]
    %v2488 = vld [vmem:[#allocation10 + $0x320] sm:$0xff]
    %v2489 = vld [vmem:[#allocation10 + $0x328] sm:$0xff]
    %v2490 = vld [vmem:[#allocation10 + $0x330] sm:$0xff]
    %v2491 = vld [vmem:[#allocation10 + $0x338] sm:$0xff]
    %v2492 = vld [vmem:[#allocation10 + $0x340] sm:$0xff]
    %v2493 = vld [vmem:[#allocation10 + $0x348] sm:$0xff]
    %v2494 = vld [vmem:[#allocation10 + $0x350] sm:$0xff]
    %v2495 = vld [vmem:[#allocation10 + $0x358] sm:$0xff]
    %v2496 = vld [vmem:[#allocation10 + $0x360] sm:$0xff]
    %v2497 = vld [vmem:[#allocation10 + $0x368] sm:$0xff]
    %v2498 = vld [vmem:[#allocation10 + $0x370] sm:$0xff]
    %v2499 = vld [vmem:[#allocation10 + $0x378] sm:$0xff]
    %v2500 = vld [vmem:[#allocation10 + $0x380] sm:$0xff]
    %v2501 = vld [vmem:[#allocation10 + $0x388] sm:$0xff]
    %v2502 = vld [vmem:[#allocation10 + $0x390] sm:$0xff]
    %v2503 = vld [vmem:[#allocation10 + $0x398] sm:$0xff]
    %v2504 = vld [vmem:[#allocation10 + $0x3a0] sm:$0xff]
    %v2505 = vld [vmem:[#allocation10 + $0x3a8] sm:$0xff]
    %v2506 = vld [vmem:[#allocation10 + $0x3b0] sm:$0xff]
    %v2507 = vld [vmem:[#allocation10 + $0x3b8] sm:$0xff]
    %v2508 = vld [vmem:[#allocation10 + $0x3c0] sm:$0xff]
    %v2509 = vld [vmem:[#allocation10 + $0x3c8] sm:$0xff]
    %v2510 = vld [vmem:[#allocation10 + $0x3d0] sm:$0xff]
    %v2511 = vld [vmem:[#allocation10 + $0x3d8] sm:$0xff]
    %v2512 = vld [vmem:[#allocation10 + $0x3e0] sm:$0xff]
    %v2513 = vld [vmem:[#allocation10 + $0x3e8] sm:$0xff]
    %v2514 = vld [vmem:[#allocation10 + $0x3f0] sm:$0xff]
    %v2515 = vld [vmem:[#allocation10 + $0x3f8] sm:$0xff]
    %v2516 = vld [vmem:[#allocation10 + $0x400] sm:$0xff]
    %v2517 = vld [vmem:[#allocation10 + $0x408] sm:$0xff]
    %v2518 = vld [vmem:[#allocation10 + $0x410] sm:$0xff]
    %v2519 = vld [vmem:[#allocation10 + $0x418] sm:$0xff]
    %v2520 = vld [vmem:[#allocation10 + $0x420] sm:$0xff]
    %v2521 = vld [vmem:[#allocation10 + $0x428] sm:$0xff]
    %v2522 = vld [vmem:[#allocation10 + $0x430] sm:$0xff]
    %v2523 = vld [vmem:[#allocation10 + $0x438] sm:$0xff]
    %v2524 = vld [vmem:[#allocation10 + $0x440] sm:$0xff]
    %v2525 = vld [vmem:[#allocation10 + $0x448] sm:$0xff]
    %v2526 = vld [vmem:[#allocation10 + $0x450] sm:$0xff]
    %v2527 = vld [vmem:[#allocation10 + $0x458] sm:$0xff]
    %v2528 = vld [vmem:[#allocation10 + $0x460] sm:$0xff]
    %v2529 = vld [vmem:[#allocation10 + $0x468] sm:$0xff]
    %v2530 = vld [vmem:[#allocation10 + $0x470] sm:$0xff]
    %v2531 = vld [vmem:[#allocation10 + $0x478] sm:$0xff]
    %v2532 = vld [vmem:[#allocation10 + $0x480] sm:$0xff]
    %v2533 = vld [vmem:[#allocation10 + $0x488] sm:$0xff]
    %v2534 = vld [vmem:[#allocation10 + $0x490] sm:$0xff]
    %v2535 = vld [vmem:[#allocation10 + $0x498] sm:$0xff]
    %v2536 = vld [vmem:[#allocation10 + $0x4a0] sm:$0xff]
    %v2537 = vld [vmem:[#allocation10 + $0x4a8] sm:$0xff]
    %v2538 = vld [vmem:[#allocation10 + $0x4b0] sm:$0xff]
    %v2539 = vld [vmem:[#allocation10 + $0x4b8] sm:$0xff]
    %v2540 = vld [vmem:[#allocation10 + $0x4c0] sm:$0xff]
    %v2541 = vld [vmem:[#allocation10 + $0x4c8] sm:$0xff]
    %v2542 = vld [vmem:[#allocation10 + $0x4d0] sm:$0xff]
    %v2543 = vld [vmem:[#allocation10 + $0x4d8] sm:$0xff]
    %v2544 = vld [vmem:[#allocation10 + $0x4e0] sm:$0xff]
    %v2545 = vld [vmem:[#allocation10 + $0x4e8] sm:$0xff]
    %v2546 = vld [vmem:[#allocation10 + $0x4f0] sm:$0xff]
    %v2547 = vld [vmem:[#allocation10 + $0x4f8] sm:$0xff]
    %v2548 = vld [vmem:[#allocation10 + $0x500] sm:$0xff]
    %v2549 = vld [vmem:[#allocation10 + $0x508] sm:$0xff]
    %v2550 = vld [vmem:[#allocation10 + $0x510] sm:$0xff]
    %v2551 = vld [vmem:[#allocation10 + $0x518] sm:$0xff]
    %v2552 = vld [vmem:[#allocation10 + $0x520] sm:$0xff]
    %v2553 = vld [vmem:[#allocation10 + $0x528] sm:$0xff]
    %v2554 = vld [vmem:[#allocation10 + $0x530] sm:$0xff]
    %v2555 = vld [vmem:[#allocation10 + $0x538] sm:$0xff]
    %v2556 = vld [vmem:[#allocation10 + $0x540] sm:$0xff]
    %v2557 = vld [vmem:[#allocation10 + $0x548] sm:$0xff]
    %v2558 = vld [vmem:[#allocation10 + $0x550] sm:$0xff]
    %v2559 = vld [vmem:[#allocation10 + $0x558] sm:$0xff]
    %v2560 = vld [vmem:[#allocation10 + $0x560] sm:$0xff]
    %v2561 = vld [vmem:[#allocation10 + $0x568] sm:$0xff]
    %v2562 = vld [vmem:[#allocation10 + $0x570] sm:$0xff]
    %v2563 = vld [vmem:[#allocation10 + $0x578] sm:$0xff]
    %v2564 = vld [vmem:[#allocation10 + $0x580] sm:$0xff]
    %v2565 = vld [vmem:[#allocation10 + $0x588] sm:$0xff]
    %v2566 = vld [vmem:[#allocation10 + $0x590] sm:$0xff]
    %v2567 = vld [vmem:[#allocation10 + $0x598] sm:$0xff]
    %v2568 = vld [vmem:[#allocation10 + $0x5a0] sm:$0xff]
    %v2569 = vld [vmem:[#allocation10 + $0x5a8] sm:$0xff]
    %v2570 = vld [vmem:[#allocation10 + $0x5b0] sm:$0xff]
    %v2571 = vld [vmem:[#allocation10 + $0x5b8] sm:$0xff]
    %v2572 = vld [vmem:[#allocation10 + $0x5c0] sm:$0xff]
    %v2573 = vld [vmem:[#allocation10 + $0x5c8] sm:$0xff]
    %v2574 = vld [vmem:[#allocation10 + $0x5d0] sm:$0xff]
    %v2575 = vld [vmem:[#allocation10 + $0x5d8] sm:$0xff]
    %v2576 = vld [vmem:[#allocation10 + $0x5e0] sm:$0xff]
    %v2577 = vld [vmem:[#allocation10 + $0x5e8] sm:$0xff]
    %v2578 = vld [vmem:[#allocation10 + $0x5f0] sm:$0xff]
    %v2579 = vld [vmem:[#allocation10 + $0x5f8] sm:$0xff]
    %v2580 = vld [vmem:[#allocation10 + $0x600] sm:$0xff]
    %v2581 = vld [vmem:[#allocation10 + $0x608] sm:$0xff]
    %v2582 = vld [vmem:[#allocation10 + $0x610] sm:$0xff]
    %v2583 = vld [vmem:[#allocation10 + $0x618] sm:$0xff]
    %v2584 = vld [vmem:[#allocation10 + $0x620] sm:$0xff]
    %v2585 = vld [vmem:[#allocation10 + $0x628] sm:$0xff]
    %v2586 = vld [vmem:[#allocation10 + $0x630] sm:$0xff]
    %v2587 = vld [vmem:[#allocation10 + $0x638] sm:$0xff]
    %v2588 = vld [vmem:[#allocation10 + $0x640] sm:$0xff]
    %v2589 = vld [vmem:[#allocation10 + $0x648] sm:$0xff]
    %v2590 = vld [vmem:[#allocation10 + $0x650] sm:$0xff]
    %v2591 = vld [vmem:[#allocation10 + $0x658] sm:$0xff]
    %v2592 = vld [vmem:[#allocation10 + $0x660] sm:$0xff]
    %v2593 = vld [vmem:[#allocation10 + $0x668] sm:$0xff]
    %v2594 = vld [vmem:[#allocation10 + $0x670] sm:$0xff]
    %v2595 = vld [vmem:[#allocation10 + $0x678] sm:$0xff]
    %v2596 = vld [vmem:[#allocation10 + $0x680] sm:$0xff]
    %v2597 = vld [vmem:[#allocation10 + $0x688] sm:$0xff]
    %v2598 = vld [vmem:[#allocation10 + $0x690] sm:$0xff]
    %v2599 = vld [vmem:[#allocation10 + $0x698] sm:$0xff]
    %v2600 = vld [vmem:[#allocation10 + $0x6a0] sm:$0xff]
    %v2601 = vld [vmem:[#allocation10 + $0x6a8] sm:$0xff]
    %v2602 = vld [vmem:[#allocation10 + $0x6b0] sm:$0xff]
    %v2603 = vld [vmem:[#allocation10 + $0x6b8] sm:$0xff]
    %v2604 = vld [vmem:[#allocation10 + $0x6c0] sm:$0xff]
    %v2605 = vld [vmem:[#allocation10 + $0x6c8] sm:$0xff]
    %v2606 = vld [vmem:[#allocation10 + $0x6d0] sm:$0xff]
    %v2607 = vld [vmem:[#allocation10 + $0x6d8] sm:$0xff]
    %v2608 = vld [vmem:[#allocation10 + $0x6e0] sm:$0xff]
    %v2609 = vld [vmem:[#allocation10 + $0x6e8] sm:$0xff]
    %v2610 = vld [vmem:[#allocation10 + $0x6f0] sm:$0xff]
    %v2611 = vld [vmem:[#allocation10 + $0x6f8] sm:$0xff]
    %v2612 = vld [vmem:[#allocation10 + $0x700] sm:$0xff]
    %v2613 = vld [vmem:[#allocation10 + $0x708] sm:$0xff]
    %v2614 = vld [vmem:[#allocation10 + $0x710] sm:$0xff]
    %v2615 = vld [vmem:[#allocation10 + $0x718] sm:$0xff]
    %v2616 = vld [vmem:[#allocation10 + $0x720] sm:$0xff]
    %v2617 = vld [vmem:[#allocation10 + $0x728] sm:$0xff]
    %v2618 = vld [vmem:[#allocation10 + $0x730] sm:$0xff]
    %v2619 = vld [vmem:[#allocation10 + $0x738] sm:$0xff]
    %v2620 = vld [vmem:[#allocation10 + $0x740] sm:$0xff]
    %v2621 = vld [vmem:[#allocation10 + $0x748] sm:$0xff]
    %v2622 = vld [vmem:[#allocation10 + $0x750] sm:$0xff]
    %v2623 = vld [vmem:[#allocation10 + $0x758] sm:$0xff]
    %v2624 = vld [vmem:[#allocation10 + $0x760] sm:$0xff]
    %v2625 = vld [vmem:[#allocation10 + $0x768] sm:$0xff]
    %v2626 = vld [vmem:[#allocation10 + $0x770] sm:$0xff]
    %v2627 = vld [vmem:[#allocation10 + $0x778] sm:$0xff]
    %v2628 = vld [vmem:[#allocation10 + $0x780] sm:$0xff]
    %v2629 = vld [vmem:[#allocation10 + $0x788] sm:$0xff]
    %v2630 = vld [vmem:[#allocation10 + $0x790] sm:$0xff]
    %v2631 = vld [vmem:[#allocation10 + $0x798] sm:$0xff]
    %v2632 = vld [vmem:[#allocation10 + $0x7a0] sm:$0xff]
    %v2633 = vld [vmem:[#allocation10 + $0x7a8] sm:$0xff]
    %v2634 = vld [vmem:[#allocation10 + $0x7b0] sm:$0xff]
    %v2635 = vld [vmem:[#allocation10 + $0x7b8] sm:$0xff]
    %v2636 = vld [vmem:[#allocation10 + $0x7c0] sm:$0xff]
    %v2637 = vld [vmem:[#allocation10 + $0x7c8] sm:$0xff]
    %v2638 = vld [vmem:[#allocation10 + $0x7d0] sm:$0xff]
    %v2639 = vld [vmem:[#allocation10 + $0x7d8] sm:$0xff]
    %v2640 = vld [vmem:[#allocation10 + $0x7e0] sm:$0xff]
    %v2641 = vld [vmem:[#allocation10 + $0x7e8] sm:$0xff]
    %v2642 = vld [vmem:[#allocation10 + $0x7f0] sm:$0xff]
    %v2643 = vld [vmem:[#allocation10 + $0x7f8] sm:$0xff]
    %v2644 = vld [vmem:[#allocation10 + $0x800] sm:$0xff]
    %v2645 = vld [vmem:[#allocation10 + $0x808] sm:$0xff]
    %v2646 = vld [vmem:[#allocation10 + $0x810] sm:$0xff]
    %v2647 = vld [vmem:[#allocation10 + $0x818] sm:$0xff]
    %v2648 = vld [vmem:[#allocation10 + $0x820] sm:$0xff]
    %v2649 = vld [vmem:[#allocation10 + $0x828] sm:$0xff]
    %v2650 = vld [vmem:[#allocation10 + $0x830] sm:$0xff]
    %v2651 = vld [vmem:[#allocation10 + $0x838] sm:$0xff]
    %v2652 = vld [vmem:[#allocation10 + $0x840] sm:$0xff]
    %v2653 = vld [vmem:[#allocation10 + $0x848] sm:$0xff]
    %v2654 = vld [vmem:[#allocation10 + $0x850] sm:$0xff]
    %v2655 = vld [vmem:[#allocation10 + $0x858] sm:$0xff]
    %v2656 = vld [vmem:[#allocation10 + $0x860] sm:$0xff]
    %v2657 = vld [vmem:[#allocation10 + $0x868] sm:$0xff]
    %v2658 = vld [vmem:[#allocation10 + $0x870] sm:$0xff]
    %v2659 = vld [vmem:[#allocation10 + $0x878] sm:$0xff]
    %v2660 = vld [vmem:[#allocation10 + $0x880] sm:$0xff]
    %v2661 = vld [vmem:[#allocation10 + $0x888] sm:$0xff]
    %v2662 = vld [vmem:[#allocation10 + $0x890] sm:$0xff]
    %v2663 = vld [vmem:[#allocation10 + $0x898] sm:$0xff]
    %v2664 = vld [vmem:[#allocation10 + $0x8a0] sm:$0xff]
    %v2665 = vld [vmem:[#allocation10 + $0x8a8] sm:$0xff]
    %v2666 = vld [vmem:[#allocation10 + $0x8b0] sm:$0xff]
    %v2667 = vld [vmem:[#allocation10 + $0x8b8] sm:$0xff]
    %v2668 = vld [vmem:[#allocation10 + $0x8c0] sm:$0xff]
    %v2669 = vld [vmem:[#allocation10 + $0x8c8] sm:$0xff]
    %v2670 = vld [vmem:[#allocation10 + $0x8d0] sm:$0xff]
    %v2671 = vld [vmem:[#allocation10 + $0x8d8] sm:$0xff]
    %v2672 = vld [vmem:[#allocation10 + $0x8e0] sm:$0xff]
    %v2673 = vld [vmem:[#allocation10 + $0x8e8] sm:$0xff]
    %v2674 = vld [vmem:[#allocation10 + $0x8f0] sm:$0xff]
    %v2675 = vld [vmem:[#allocation10 + $0x8f8] sm:$0xff]
    %v2676 = vld [vmem:[#allocation10 + $0x900] sm:$0xff]
    %v2677 = vld [vmem:[#allocation10 + $0x908] sm:$0xff]
    %v2678 = vld [vmem:[#allocation10 + $0x910] sm:$0xff]
    %v2679 = vld [vmem:[#allocation10 + $0x918] sm:$0xff]
    %v2680 = vld [vmem:[#allocation10 + $0x920] sm:$0xff]
    %v2681 = vld [vmem:[#allocation10 + $0x928] sm:$0xff]
    %v2682 = vld [vmem:[#allocation10 + $0x930] sm:$0xff]
    %v2683 = vld [vmem:[#allocation10 + $0x938] sm:$0xff]
    %v2684 = vld [vmem:[#allocation10 + $0x940] sm:$0xff]
    %v2685 = vld [vmem:[#allocation10 + $0x948] sm:$0xff]
    %v2686 = vld [vmem:[#allocation10 + $0x950] sm:$0xff]
    %v2687 = vld [vmem:[#allocation10 + $0x958] sm:$0xff]
    %v2688 = vld [vmem:[#allocation10 + $0x960] sm:$0xff]
    %v2689 = vld [vmem:[#allocation10 + $0x968] sm:$0xff]
    %v2690 = vld [vmem:[#allocation10 + $0x970] sm:$0xff]
    %v2691 = vld [vmem:[#allocation10 + $0x978] sm:$0xff]
    %v2692 = vld [vmem:[#allocation10 + $0x980] sm:$0xff]
    %v2693 = vld [vmem:[#allocation10 + $0x988] sm:$0xff]
    %v2694 = vld [vmem:[#allocation10 + $0x990] sm:$0xff]
    %v2695 = vld [vmem:[#allocation10 + $0x998] sm:$0xff]
    %v2696 = vld [vmem:[#allocation10 + $0x9a0] sm:$0xff]
    %v2697 = vld [vmem:[#allocation10 + $0x9a8] sm:$0xff]
    %v2698 = vld [vmem:[#allocation10 + $0x9b0] sm:$0xff]
    %v2699 = vld [vmem:[#allocation10 + $0x9b8] sm:$0xff]
    %v2700 = vld [vmem:[#allocation10 + $0x9c0] sm:$0xff]
    %v2701 = vld [vmem:[#allocation10 + $0x9c8] sm:$0xff]
    %v2702 = vld [vmem:[#allocation10 + $0x9d0] sm:$0xff]
    %v2703 = vld [vmem:[#allocation10 + $0x9d8] sm:$0xff]
    %v2704 = vld [vmem:[#allocation10 + $0x9e0] sm:$0xff]
    %v2705 = vld [vmem:[#allocation10 + $0x9e8] sm:$0xff]
    %v2706 = vld [vmem:[#allocation10 + $0x9f0] sm:$0xff]
    %v2707 = vld [vmem:[#allocation10 + $0x9f8] sm:$0xff]
    %v2708 = vld [vmem:[#allocation10 + $0xa00] sm:$0xff]
    %v2709 = vld [vmem:[#allocation10 + $0xa08] sm:$0xff]
    %v2710 = vld [vmem:[#allocation10 + $0xa10] sm:$0xff]
    %v2711 = vld [vmem:[#allocation10 + $0xa18] sm:$0xff]
    %v2712 = vld [vmem:[#allocation10 + $0xa20] sm:$0xff]
    %v2713 = vld [vmem:[#allocation10 + $0xa28] sm:$0xff]
    %v2714 = vld [vmem:[#allocation10 + $0xa30] sm:$0xff]
    %v2715 = vld [vmem:[#allocation10 + $0xa38] sm:$0xff]
    %v2716 = vld [vmem:[#allocation10 + $0xa40] sm:$0xff]
    %v2717 = vld [vmem:[#allocation10 + $0xa48] sm:$0xff]
    %v2718 = vld [vmem:[#allocation10 + $0xa50] sm:$0xff]
    %v2719 = vld [vmem:[#allocation10 + $0xa58] sm:$0xff]
    %v2720 = vld [vmem:[#allocation10 + $0xa60] sm:$0xff]
    %v2721 = vld [vmem:[#allocation10 + $0xa68] sm:$0xff]
    %v2722 = vld [vmem:[#allocation10 + $0xa70] sm:$0xff]
    %v2723 = vld [vmem:[#allocation10 + $0xa78] sm:$0xff]
    %v2724 = vld [vmem:[#allocation10 + $0xa80] sm:$0xff]
    %v2725 = vld [vmem:[#allocation10 + $0xa88] sm:$0xff]
    %v2726 = vld [vmem:[#allocation10 + $0xa90] sm:$0xff]
    %v2727 = vld [vmem:[#allocation10 + $0xa98] sm:$0xff]
    %v2728 = vld [vmem:[#allocation10 + $0xaa0] sm:$0xff]
    %v2729 = vld [vmem:[#allocation10 + $0xaa8] sm:$0xff]
    %v2730 = vld [vmem:[#allocation10 + $0xab0] sm:$0xff]
    %v2731 = vld [vmem:[#allocation10 + $0xab8] sm:$0xff]
    %v2732 = vld [vmem:[#allocation10 + $0xac0] sm:$0xff]
    %v2733 = vld [vmem:[#allocation10 + $0xac8] sm:$0xff]
    %v2734 = vld [vmem:[#allocation10 + $0xad0] sm:$0xff]
    %v2735 = vld [vmem:[#allocation10 + $0xad8] sm:$0xff]
    %v2736 = vld [vmem:[#allocation10 + $0xae0] sm:$0xff]
    %v2737 = vld [vmem:[#allocation10 + $0xae8] sm:$0xff]
    %v2738 = vld [vmem:[#allocation10 + $0xaf0] sm:$0xff]
    %v2739 = vld [vmem:[#allocation10 + $0xaf8] sm:$0xff]
    %v2740 = vld [vmem:[#allocation10 + $0xb00] sm:$0xff]
    %v2741 = vld [vmem:[#allocation10 + $0xb08] sm:$0xff]
    %v2742 = vld [vmem:[#allocation10 + $0xb10] sm:$0xff]
    %v2743 = vld [vmem:[#allocation10 + $0xb18] sm:$0xff]
    %v2744 = vld [vmem:[#allocation10 + $0xb20] sm:$0xff]
    %v2745 = vld [vmem:[#allocation10 + $0xb28] sm:$0xff]
    %v2746 = vld [vmem:[#allocation10 + $0xb30] sm:$0xff]
    %v2747 = vld [vmem:[#allocation10 + $0xb38] sm:$0xff]
    %v2748 = vld [vmem:[#allocation10 + $0xb40] sm:$0xff]
    %v2749 = vld [vmem:[#allocation10 + $0xb48] sm:$0xff]
    %v2750 = vld [vmem:[#allocation10 + $0xb50] sm:$0xff]
    %v2751 = vld [vmem:[#allocation10 + $0xb58] sm:$0xff]
    %v2752 = vld [vmem:[#allocation10 + $0xb60] sm:$0xff]
    %v2753 = vld [vmem:[#allocation10 + $0xb68] sm:$0xff]
    %v2754 = vld [vmem:[#allocation10 + $0xb70] sm:$0xff]
    %v2755 = vld [vmem:[#allocation10 + $0xb78] sm:$0xff]
    %v2756 = vld [vmem:[#allocation10 + $0xb80] sm:$0xff]
    %v2757 = vld [vmem:[#allocation10 + $0xb88] sm:$0xff]
    %v2758 = vld [vmem:[#allocation10 + $0xb90] sm:$0xff]
    %v2759 = vld [vmem:[#allocation10 + $0xb98] sm:$0xff]
    %v2760 = vld [vmem:[#allocation10 + $0xba0] sm:$0xff]
    %v2761 = vld [vmem:[#allocation10 + $0xba8] sm:$0xff]
    %v2762 = vld [vmem:[#allocation10 + $0xbb0] sm:$0xff]
    %v2763 = vld [vmem:[#allocation10 + $0xbb8] sm:$0xff]
    %v2764 = vld [vmem:[#allocation10 + $0xbc0] sm:$0xff]
    %v2765 = vld [vmem:[#allocation10 + $0xbc8] sm:$0xff]
    %v2766 = vld [vmem:[#allocation10 + $0xbd0] sm:$0xff]
    %v2767 = vld [vmem:[#allocation10 + $0xbd8] sm:$0xff]
    %v2768 = vld [vmem:[#allocation10 + $0xbe0] sm:$0xff]
    %v2769 = vld [vmem:[#allocation10 + $0xbe8] sm:$0xff]
    %v2770 = vld [vmem:[#allocation10 + $0xbf0] sm:$0xff]
    %v2771 = vld [vmem:[#allocation10 + $0xbf8] sm:$0xff]
    %v2772 = vld [vmem:[#allocation10 + $0xc00] sm:$0xff]
    %v2773 = vld [vmem:[#allocation10 + $0xc08] sm:$0xff]
    %v2774 = vld [vmem:[#allocation10 + $0xc10] sm:$0xff]
    %v2775 = vld [vmem:[#allocation10 + $0xc18] sm:$0xff]
    %v2776 = vld [vmem:[#allocation10 + $0xc20] sm:$0xff]
    %v2777 = vld [vmem:[#allocation10 + $0xc28] sm:$0xff]
    %v2778 = vld [vmem:[#allocation10 + $0xc30] sm:$0xff]
    %v2779 = vld [vmem:[#allocation10 + $0xc38] sm:$0xff]
    %v2780 = vld [vmem:[#allocation10 + $0xc40] sm:$0xff]
    %v2781 = vld [vmem:[#allocation10 + $0xc48] sm:$0xff]
    %v2782 = vld [vmem:[#allocation10 + $0xc50] sm:$0xff]
    %v2783 = vld [vmem:[#allocation10 + $0xc58] sm:$0xff]
    %v2784 = vld [vmem:[#allocation10 + $0xc60] sm:$0xff]
    %v2785 = vld [vmem:[#allocation10 + $0xc68] sm:$0xff]
    %v2786 = vld [vmem:[#allocation10 + $0xc70] sm:$0xff]
    %v2787 = vld [vmem:[#allocation10 + $0xc78] sm:$0xff]
    %v2788 = vld [vmem:[#allocation10 + $0xc80] sm:$0xff]
    %v2789 = vld [vmem:[#allocation10 + $0xc88] sm:$0xff]
    %v2790 = vld [vmem:[#allocation10 + $0xc90] sm:$0xff]
    %v2791 = vld [vmem:[#allocation10 + $0xc98] sm:$0xff]
    %v2792 = vld [vmem:[#allocation10 + $0xca0] sm:$0xff]
    %v2793 = vld [vmem:[#allocation10 + $0xca8] sm:$0xff]
    %v2794 = vld [vmem:[#allocation10 + $0xcb0] sm:$0xff]
    %v2795 = vld [vmem:[#allocation10 + $0xcb8] sm:$0xff]
    %v2796 = vld [vmem:[#allocation10 + $0xcc0] sm:$0xff]
    %v2797 = vld [vmem:[#allocation10 + $0xcc8] sm:$0xff]
    %v2798 = vld [vmem:[#allocation10 + $0xcd0] sm:$0xff]
    %v2799 = vld [vmem:[#allocation10 + $0xcd8] sm:$0xff]
    %v2800 = vld [vmem:[#allocation10 + $0xce0] sm:$0xff]
    %v2801 = vld [vmem:[#allocation10 + $0xce8] sm:$0xff]
    %v2802 = vld [vmem:[#allocation10 + $0xcf0] sm:$0xff]
    %v2803 = vld [vmem:[#allocation10 + $0xcf8] sm:$0xff]
    %v2804 = vld [vmem:[#allocation10 + $0xd00] sm:$0xff]
    %v2805 = vld [vmem:[#allocation10 + $0xd08] sm:$0xff]
    %v2806 = vld [vmem:[#allocation10 + $0xd10] sm:$0xff]
    %v2807 = vld [vmem:[#allocation10 + $0xd18] sm:$0xff]
    %v2808 = vld [vmem:[#allocation10 + $0xd20] sm:$0xff]
    %v2809 = vld [vmem:[#allocation10 + $0xd28] sm:$0xff]
    %v2810 = vld [vmem:[#allocation10 + $0xd30] sm:$0xff]
    %v2811 = vld [vmem:[#allocation10 + $0xd38] sm:$0xff]
    %v2812 = vld [vmem:[#allocation10 + $0xd40] sm:$0xff]
    %v2813 = vld [vmem:[#allocation10 + $0xd48] sm:$0xff]
    %v2814 = vld [vmem:[#allocation10 + $0xd50] sm:$0xff]
    %v2815 = vld [vmem:[#allocation10 + $0xd58] sm:$0xff]
    %v2816 = vld [vmem:[#allocation10 + $0xd60] sm:$0xff]
    %v2817 = vld [vmem:[#allocation10 + $0xd68] sm:$0xff]
    %v2818 = vld [vmem:[#allocation10 + $0xd70] sm:$0xff]
    %v2819 = vld [vmem:[#allocation10 + $0xd78] sm:$0xff]
    %v2820 = vld [vmem:[#allocation10 + $0xd80] sm:$0xff]
    %v2821 = vld [vmem:[#allocation10 + $0xd88] sm:$0xff]
    %v2822 = vld [vmem:[#allocation10 + $0xd90] sm:$0xff]
    %v2823 = vld [vmem:[#allocation10 + $0xd98] sm:$0xff]
    %v2824 = vld [vmem:[#allocation10 + $0xda0] sm:$0xff]
    %v2825 = vld [vmem:[#allocation10 + $0xda8] sm:$0xff]
    %v2826 = vld [vmem:[#allocation10 + $0xdb0] sm:$0xff]
    %v2827 = vld [vmem:[#allocation10 + $0xdb8] sm:$0xff]
    %v2828 = vld [vmem:[#allocation10 + $0xdc0] sm:$0xff]
    %v2829 = vld [vmem:[#allocation10 + $0xdc8] sm:$0xff]
    %v2830 = vld [vmem:[#allocation10 + $0xdd0] sm:$0xff]
    %v2831 = vld [vmem:[#allocation10 + $0xdd8] sm:$0xff]
    %v2832 = vld [vmem:[#allocation10 + $0xde0] sm:$0xff]
    %v2833 = vld [vmem:[#allocation10 + $0xde8] sm:$0xff]
    %v2834 = vld [vmem:[#allocation10 + $0xdf0] sm:$0xff]
    %v2835 = vld [vmem:[#allocation10 + $0xdf8] sm:$0xff]
    %v2836 = vld [vmem:[#allocation10 + $0xe00] sm:$0xff]
    %v2837 = vld [vmem:[#allocation10 + $0xe08] sm:$0xff]
    %v2838 = vld [vmem:[#allocation10 + $0xe10] sm:$0xff]
    %v2839 = vld [vmem:[#allocation10 + $0xe18] sm:$0xff]
    %v2840 = vld [vmem:[#allocation10 + $0xe20] sm:$0xff]
    %v2841 = vld [vmem:[#allocation10 + $0xe28] sm:$0xff]
    %v2842 = vld [vmem:[#allocation10 + $0xe30] sm:$0xff]
    %v2843 = vld [vmem:[#allocation10 + $0xe38] sm:$0xff]
    %v2844 = vld [vmem:[#allocation10 + $0xe40] sm:$0xff]
    %v2845 = vld [vmem:[#allocation10 + $0xe48] sm:$0xff]
    %v2846 = vld [vmem:[#allocation10 + $0xe50] sm:$0xff]
    %v2847 = vld [vmem:[#allocation10 + $0xe58] sm:$0xff]
    %v2848 = vld [vmem:[#allocation10 + $0xe60] sm:$0xff]
    %v2849 = vld [vmem:[#allocation10 + $0xe68] sm:$0xff]
    %v2850 = vld [vmem:[#allocation10 + $0xe70] sm:$0xff]
    %v2851 = vld [vmem:[#allocation10 + $0xe78] sm:$0xff]
    %v2852 = vld [vmem:[#allocation10 + $0xe80] sm:$0xff]
    %v2853 = vld [vmem:[#allocation10 + $0xe88] sm:$0xff]
    %v2854 = vld [vmem:[#allocation10 + $0xe90] sm:$0xff]
    %v2855 = vld [vmem:[#allocation10 + $0xe98] sm:$0xff]
    %v2856 = vld [vmem:[#allocation10 + $0xea0] sm:$0xff]
    %v2857 = vld [vmem:[#allocation10 + $0xea8] sm:$0xff]
    %v2858 = vld [vmem:[#allocation10 + $0xeb0] sm:$0xff]
    %v2859 = vld [vmem:[#allocation10 + $0xeb8] sm:$0xff]
    %v2860 = vld [vmem:[#allocation10 + $0xec0] sm:$0xff]
    %v2861 = vld [vmem:[#allocation10 + $0xec8] sm:$0xff]
    %v2862 = vld [vmem:[#allocation10 + $0xed0] sm:$0xff]
    %v2863 = vld [vmem:[#allocation10 + $0xed8] sm:$0xff]
    %v2864 = vld [vmem:[#allocation10 + $0xee0] sm:$0xff]
    %v2865 = vld [vmem:[#allocation10 + $0xee8] sm:$0xff]
    %v2866 = vld [vmem:[#allocation10 + $0xef0] sm:$0xff]
    %v2867 = vld [vmem:[#allocation10 + $0xef8] sm:$0xff]
    %v2868 = vld [vmem:[#allocation10 + $0xf00] sm:$0xff]
    %v2869 = vld [vmem:[#allocation10 + $0xf08] sm:$0xff]
    %v2870 = vld [vmem:[#allocation10 + $0xf10] sm:$0xff]
    %v2871 = vld [vmem:[#allocation10 + $0xf18] sm:$0xff]
    %v2872 = vld [vmem:[#allocation10 + $0xf20] sm:$0xff]
    %v2873 = vld [vmem:[#allocation10 + $0xf28] sm:$0xff]
    %v2874 = vld [vmem:[#allocation10 + $0xf30] sm:$0xff]
    %v2875 = vld [vmem:[#allocation10 + $0xf38] sm:$0xff]
    %v2876 = vld [vmem:[#allocation10 + $0xf40] sm:$0xff]
    %v2877 = vld [vmem:[#allocation10 + $0xf48] sm:$0xff]
    %v2878 = vld [vmem:[#allocation10 + $0xf50] sm:$0xff]
    %v2879 = vld [vmem:[#allocation10 + $0xf58] sm:$0xff]
    %v2880 = vld [vmem:[#allocation10 + $0xf60] sm:$0xff]
    %v2881 = vld [vmem:[#allocation10 + $0xf68] sm:$0xff]
    %v2882 = vld [vmem:[#allocation10 + $0xf70] sm:$0xff]
    %v2883 = vld [vmem:[#allocation10 + $0xf78] sm:$0xff]
    %v2884 = vld [vmem:[#allocation10 + $0xf80] sm:$0xff]
    %v2885 = vld [vmem:[#allocation10 + $0xf88] sm:$0xff]
    %v2886 = vld [vmem:[#allocation10 + $0xf90] sm:$0xff]
    %v2887 = vld [vmem:[#allocation10 + $0xf98] sm:$0xff]
    %v2888 = vld [vmem:[#allocation10 + $0xfa0] sm:$0xff]
    %v2889 = vld [vmem:[#allocation10 + $0xfa8] sm:$0xff]
    %v2890 = vld [vmem:[#allocation10 + $0xfb0] sm:$0xff]
    %v2891 = vld [vmem:[#allocation10 + $0xfb8] sm:$0xff]
    %v2892 = vld [vmem:[#allocation10 + $0xfc0] sm:$0xff]
    %v2893 = vld [vmem:[#allocation10 + $0xfc8] sm:$0xff]
    %v2894 = vld [vmem:[#allocation10 + $0xfd0] sm:$0xff]
    %v2895 = vld [vmem:[#allocation10 + $0xfd8] sm:$0xff]
    %v2896 = vld [vmem:[#allocation10 + $0xfe0] sm:$0xff]
    %v2897 = vld [vmem:[#allocation10 + $0xfe8] sm:$0xff]
    %v2898 = vld [vmem:[#allocation10 + $0xff0] sm:$0xff]
    %v2899 = vld [vmem:[#allocation10 + $0xff8] sm:$0xff]
    %v2900 = vld [vmem:[#allocation12] sm:$0x1]
    %v2902 = vlaneseq
    %v2903 = vshrl.u32 %v2902, 7
    %v2904 = vsub.s32 0, %v2903
    %v2905 = vrot.slane %v2900, %v2904
    %v2907 = vrot.slane %v2320, 7
    %vm2908 = vcmask 1041409
    %v2909 = vsel %vm2908, %v2907, %v2316
    %v2910 = vrot.slane %v2322, 7
    %v2911 = vsel %vm2908, %v2910, %v2318
    %v2912 = vrot.slane %v2321, 7
    %v2913 = vsel %vm2908, %v2912, %v2317
    %v2914 = vrot.slane %v2323, 7
    %v2915 = vsel %vm2908, %v2914, %v2319
    %v2916 = vrot.slane %v2336, 7
    %v2917 = vsel %vm2908, %v2916, %v2332
    %v2918 = vrot.slane %v2337, 7
    %v2919 = vsel %vm2908, %v2918, %v2333
    %v2920 = vrot.slane %v2338, 7
    %v2921 = vsel %vm2908, %v2920, %v2334
    %v2922 = vrot.slane %v2339, 7
    %v2923 = vsel %vm2908, %v2922, %v2335
    %v2924 = vrot.slane %v2348, 7
    %v2925 = vsel %vm2908, %v2924, %v2340
    %v2926 = vrot.slane %v2349, 7
    %v2927 = vsel %vm2908, %v2926, %v2341
    %v2928 = vrot.slane %v2350, 7
    %v2929 = vsel %vm2908, %v2928, %v2342
    %v2930 = vrot.slane %v2351, 7
    %v2931 = vsel %vm2908, %v2930, %v2343
    %v2932 = vrot.slane %v2352, 7
    %v2933 = vsel %vm2908, %v2932, %v2344
    %v2934 = vrot.slane %v2353, 7
    %v2935 = vsel %vm2908, %v2934, %v2345
    %v2936 = vrot.slane %v2354, 7
    %v2937 = vsel %vm2908, %v2936, %v2346
    %v2938 = vrot.slane %v2355, 7
    %v2939 = vsel %vm2908, %v2938, %v2347
    %v2940 = vrot.slane %v2372, 7
    %v2941 = vsel %vm2908, %v2940, %v2356
    %v2942 = vrot.slane %v2373, 7
    %v2943 = vsel %vm2908, %v2942, %v2357
    %v2944 = vrot.slane %v2374, 7
    %v2945 = vsel %vm2908, %v2944, %v2358
    %v2946 = vrot.slane %v2375, 7
    %v2947 = vsel %vm2908, %v2946, %v2359
    %v2948 = vrot.slane %v2376, 7
    %v2949 = vsel %vm2908, %v2948, %v2360
    %v2950 = vrot.slane %v2377, 7
    %v2951 = vsel %vm2908, %v2950, %v2361
    %v2952 = vrot.slane %v2378, 7
    %v2953 = vsel %vm2908, %v2952, %v2362
    %v2954 = vrot.slane %v2379, 7
    %v2955 = vsel %vm2908, %v2954, %v2363
    %v2956 = vrot.slane %v2380, 7
    %v2957 = vsel %vm2908, %v2956, %v2364
    %v2958 = vrot.slane %v2381, 7
    %v2959 = vsel %vm2908, %v2958, %v2365
    %v2960 = vrot.slane %v2382, 7
    %v2961 = vsel %vm2908, %v2960, %v2366
    %v2962 = vrot.slane %v2383, 7
    %v2963 = vsel %vm2908, %v2962, %v2367
    %v2964 = vrot.slane %v2384, 7
    %v2965 = vsel %vm2908, %v2964, %v2368
    %v2966 = vrot.slane %v2385, 7
    %v2967 = vsel %vm2908, %v2966, %v2369
    %v2968 = vrot.slane %v2386, 7
    %v2969 = vsel %vm2908, %v2968, %v2370
    %v2970 = vrot.slane %v2387, 7
    %v2971 = vsel %vm2908, %v2970, %v2371
    %3004 = vmatprep.subr.mxu0 0.0
    %3005 = vmatpush1.msra.mxu0 %v2388
    %3006 = vmatprep.subr.mxu0 0.0
    %3007 = vmatpush1.msra.mxu0 %v2389
    %3008 = vmatprep.subr.mxu0 0.0
    %3009 = vmatpush1.msra.mxu0 %v2390
    %3010 = vmatprep.subr.mxu0 0.0
    %3011 = vmatpush1.msra.mxu0 %v2391
    %3012 = vmatprep.subr.mxu0 0.0
    %3013 = vmatpush1.msra.mxu0 %v2392
    %3014 = vmatprep.subr.mxu0 0.0
    %3015 = vmatpush1.msra.mxu0 %v2393
    %3016 = vmatprep.subr.mxu0 0.0
    %3017 = vmatpush1.msra.mxu0 %v2394
    %3018 = vmatprep.subr.mxu0 0.0
    %3019 = vmatpush1.msra.mxu0 %v2395
    %3020 = vmatprep.subr.mxu0 0.0
    %3021 = vmatpush1.msra.mxu0 %v2396
    %3022 = vmatprep.subr.mxu0 0.0
    %3023 = vmatpush1.msra.mxu0 %v2397
    %3024 = vmatprep.subr.mxu0 0.0
    %3025 = vmatpush1.msra.mxu0 %v2398
    %3026 = vmatprep.subr.mxu0 0.0
    %3027 = vmatpush1.msra.mxu0 %v2399
    %3028 = vmatprep.subr.mxu0 0.0
    %3029 = vmatpush1.msra.mxu0 %v2400
    %3030 = vmatprep.subr.mxu0 0.0
    %3031 = vmatpush1.msra.mxu0 %v2401
    %3032 = vmatprep.subr.mxu0 0.0
    %3033 = vmatpush1.msra.mxu0 %v2402
    %3034 = vmatprep.subr.mxu0 0.0
    %3035 = vmatpush1.msra.mxu0 %v2403
    %3036 = vmatprep.subr.mxu0 0.0
    %3037 = vmatpush1.msra.mxu0 %v2404
    %3038 = vmatprep.subr.mxu0 0.0
    %3039 = vmatpush1.msra.mxu0 %v2405
    %3040 = vmatprep.subr.mxu0 0.0
    %3041 = vmatpush1.msra.mxu0 %v2406
    %3042 = vmatprep.subr.mxu0 0.0
    %3043 = vmatpush1.msra.mxu0 %v2407
    %3044 = vmatprep.subr.mxu0 0.0
    %3045 = vmatpush1.msra.mxu0 %v2408
    %3046 = vmatprep.subr.mxu0 0.0
    %3047 = vmatpush1.msra.mxu0 %v2409
    %3048 = vmatprep.subr.mxu0 0.0
    %3049 = vmatpush1.msra.mxu0 %v2410
    %3050 = vmatprep.subr.mxu0 0.0
    %3051 = vmatpush1.msra.mxu0 %v2411
    %3052 = vmatprep.subr.mxu0 0.0
    %3053 = vmatpush1.msra.mxu0 %v2412
    %3054 = vmatprep.subr.mxu0 0.0
    %3055 = vmatpush1.msra.mxu0 %v2413
    %3056 = vmatprep.subr.mxu0 0.0
    %3057 = vmatpush1.msra.mxu0 %v2414
    %3058 = vmatprep.subr.mxu0 0.0
    %3059 = vmatpush1.msra.mxu0 %v2415
    %3060 = vmatprep.subr.mxu0 0.0
    %3061 = vmatpush1.msra.mxu0 %v2416
    %3062 = vmatprep.subr.mxu0 0.0
    %3063 = vmatpush1.msra.mxu0 %v2417
    %3064 = vmatprep.subr.mxu0 0.0
    %3065 = vmatpush1.msra.mxu0 %v2418
    %3066 = vmatprep.subr.mxu0 0.0
    %3067 = vmatpush1.msra.mxu0 %v2419
    %3068 = vmatprep.mubr.f32.mxu0 %v2911
    %3069 = vmatmul.mubr.f32.gmra.mrb[0].mxu0 %v2909
    %v3070 = vpop.f32.mrb[0].mxu0
    %v3071 = vadd.f32 %v2905, %v3070
    %v3072 = vpop.f32.mrb[0].mxu0
    %3073 = vdwg.mxu0
    %3074 = vmatprep.subr.mxu0 0.0
    %3075 = vmatpush1.msra.mxu0 %v2420
    %3076 = vmatprep.subr.mxu0 0.0
    %3077 = vmatpush1.msra.mxu0 %v2421
    %3078 = vmatprep.subr.mxu0 0.0
    %3079 = vmatpush1.msra.mxu0 %v2422
    %3080 = vmatprep.subr.mxu0 0.0
    %3081 = vmatpush1.msra.mxu0 %v2423
    %3082 = vmatprep.subr.mxu0 0.0
    %3083 = vmatpush1.msra.mxu0 %v2424
    %3084 = vmatprep.subr.mxu0 0.0
    %3085 = vmatpush1.msra.mxu0 %v2425
    %3086 = vmatprep.subr.mxu0 0.0
    %3087 = vmatpush1.msra.mxu0 %v2426
    %3088 = vmatprep.subr.mxu0 0.0
    %3089 = vmatpush1.msra.mxu0 %v2427
    %3090 = vmatprep.subr.mxu0 0.0
    %3091 = vmatpush1.msra.mxu0 %v2428
    %3092 = vmatprep.subr.mxu0 0.0
    %3093 = vmatpush1.msra.mxu0 %v2429
    %3094 = vmatprep.subr.mxu0 0.0
    %3095 = vmatpush1.msra.mxu0 %v2430
    %3096 = vmatprep.subr.mxu0 0.0
    %3097 = vmatpush1.msra.mxu0 %v2431
    %3098 = vmatprep.subr.mxu0 0.0
    %3099 = vmatpush1.msra.mxu0 %v2432
    %3100 = vmatprep.subr.mxu0 0.0
    %3101 = vmatpush1.msra.mxu0 %v2433
    %3102 = vmatprep.subr.mxu0 0.0
    %3103 = vmatpush1.msra.mxu0 %v2434
    %3104 = vmatprep.subr.mxu0 0.0
    %3105 = vmatpush1.msra.mxu0 %v2435
    %3106 = vmatprep.subr.mxu0 0.0
    %3107 = vmatpush1.msra.mxu0 %v2436
    %3108 = vmatprep.subr.mxu0 0.0
    %3109 = vmatpush1.msra.mxu0 %v2437
    %3110 = vmatprep.subr.mxu0 0.0
    %3111 = vmatpush1.msra.mxu0 %v2438
    %3112 = vmatprep.subr.mxu0 0.0
    %3113 = vmatpush1.msra.mxu0 %v2439
    %3114 = vmatprep.subr.mxu0 0.0
    %3115 = vmatpush1.msra.mxu0 %v2440
    %3116 = vmatprep.subr.mxu0 0.0
    %3117 = vmatpush1.msra.mxu0 %v2441
    %3118 = vmatprep.subr.mxu0 0.0
    %3119 = vmatpush1.msra.mxu0 %v2442
    %3120 = vmatprep.subr.mxu0 0.0
    %3121 = vmatpush1.msra.mxu0 %v2443
    %3122 = vmatprep.subr.mxu0 0.0
    %3123 = vmatpush1.msra.mxu0 %v2444
    %3124 = vmatprep.subr.mxu0 0.0
    %3125 = vmatpush1.msra.mxu0 %v2445
    %3126 = vmatprep.subr.mxu0 0.0
    %3127 = vmatpush1.msra.mxu0 %v2446
    %3128 = vmatprep.subr.mxu0 0.0
    %3129 = vmatpush1.msra.mxu0 %v2447
    %3130 = vmatprep.subr.mxu0 0.0
    %3131 = vmatpush1.msra.mxu0 %v2448
    %3132 = vmatprep.subr.mxu0 0.0
    %3133 = vmatpush1.msra.mxu0 %v2449
    %3134 = vmatprep.subr.mxu0 0.0
    %3135 = vmatpush1.msra.mxu0 %v2450
    %3136 = vmatprep.subr.mxu0 0.0
    %3137 = vmatpush1.msra.mxu0 %v2451
    %3138 = vmatprep.mubr.f32.mxu0 %v2915
    %3139 = vmatmul.mubr.f32.gmra.mrb[0].mxu0 %v2913
    %v3140 = vpop.f32.mrb[0].mxu0
    %v3141 = vadd.f32 %v3071, %v3140
    %v3142 = vpop.f32.mrb[0].mxu0
    %3143 = vdwg.mxu0
    %3144 = vmatprep.subr.mxu0 0.0
    %3145 = vmatpush1.msra.mxu0 %v2452
    %3146 = vmatprep.subr.mxu0 0.0
    %3147 = vmatpush1.msra.mxu0 %v2453
    %3148 = vmatprep.subr.mxu0 0.0
    %3149 = vmatpush1.msra.mxu0 %v2454
    %3150 = vmatprep.subr.mxu0 0.0
    %3151 = vmatpush1.msra.mxu0 %v2455
    %3152 = vmatprep.subr.mxu0 0.0
    %3153 = vmatpush1.msra.mxu0 %v2456
    %3154 = vmatprep.subr.mxu0 0.0
    %3155 = vmatpush1.msra.mxu0 %v2457
    %3156 = vmatprep.subr.mxu0 0.0
    %3157 = vmatpush1.msra.mxu0 %v2458
    %3158 = vmatprep.subr.mxu0 0.0
    %3159 = vmatpush1.msra.mxu0 %v2459
    %3160 = vmatprep.subr.mxu0 0.0
    %3161 = vmatpush1.msra.mxu0 %v2460
    %3162 = vmatprep.subr.mxu0 0.0
    %3163 = vmatpush1.msra.mxu0 %v2461
    %3164 = vmatprep.subr.mxu0 0.0
    %3165 = vmatpush1.msra.mxu0 %v2462
    %3166 = vmatprep.subr.mxu0 0.0
    %3167 = vmatpush1.msra.mxu0 %v2463
    %3168 = vmatprep.subr.mxu0 0.0
    %3169 = vmatpush1.msra.mxu0 %v2464
    %3170 = vmatprep.subr.mxu0 0.0
    %3171 = vmatpush1.msra.mxu0 %v2465
    %3172 = vmatprep.subr.mxu0 0.0
    %3173 = vmatpush1.msra.mxu0 %v2466
    %3174 = vmatprep.subr.mxu0 0.0
    %3175 = vmatpush1.msra.mxu0 %v2467
    %3176 = vmatprep.subr.mxu0 0.0
    %3177 = vmatpush1.msra.mxu0 %v2468
    %3178 = vmatprep.subr.mxu0 0.0
    %3179 = vmatpush1.msra.mxu0 %v2469
    %3180 = vmatprep.subr.mxu0 0.0
    %3181 = vmatpush1.msra.mxu0 %v2470
    %3182 = vmatprep.subr.mxu0 0.0
    %3183 = vmatpush1.msra.mxu0 %v2471
    %3184 = vmatprep.subr.mxu0 0.0
    %3185 = vmatpush1.msra.mxu0 %v2472
    %3186 = vmatprep.subr.mxu0 0.0
    %3187 = vmatpush1.msra.mxu0 %v2473
    %3188 = vmatprep.subr.mxu0 0.0
    %3189 = vmatpush1.msra.mxu0 %v2474
    %3190 = vmatprep.subr.mxu0 0.0
    %3191 = vmatpush1.msra.mxu0 %v2475
    %3192 = vmatprep.subr.mxu0 0.0
    %3193 = vmatpush1.msra.mxu0 %v2476
    %3194 = vmatprep.subr.mxu0 0.0
    %3195 = vmatpush1.msra.mxu0 %v2477
    %3196 = vmatprep.subr.mxu0 0.0
    %3197 = vmatpush1.msra.mxu0 %v2478
    %3198 = vmatprep.subr.mxu0 0.0
    %3199 = vmatpush1.msra.mxu0 %v2479
    %3200 = vmatprep.subr.mxu0 0.0
    %3201 = vmatpush1.msra.mxu0 %v2480
    %3202 = vmatprep.subr.mxu0 0.0
    %3203 = vmatpush1.msra.mxu0 %v2481
    %3204 = vmatprep.subr.mxu0 0.0
    %3205 = vmatpush1.msra.mxu0 %v2482
    %3206 = vmatprep.subr.mxu0 0.0
    %3207 = vmatpush1.msra.mxu0 %v2483
    %3208 = vmatprep.mubr.f32.mxu0 %v2919
    %3209 = vmatmul.mubr.f32.gmra.mrb[0].mxu0 %v2917
    %v3210 = vpop.f32.mrb[0].mxu0
    %v3211 = vadd.f32 %v3141, %v3210
    %v3212 = vpop.f32.mrb[0].mxu0
    %3213 = vdwg.mxu0
    %3214 = vmatprep.subr.mxu0 0.0
    %3215 = vmatpush1.msra.mxu0 %v2484
    %3216 = vmatprep.subr.mxu0 0.0
    %3217 = vmatpush1.msra.mxu0 %v2485
    %3218 = vmatprep.subr.mxu0 0.0
    %3219 = vmatpush1.msra.mxu0 %v2486
    %3220 = vmatprep.subr.mxu0 0.0
    %3221 = vmatpush1.msra.mxu0 %v2487
    %3222 = vmatprep.subr.mxu0 0.0
    %3223 = vmatpush1.msra.mxu0 %v2488
    %3224 = vmatprep.subr.mxu0 0.0
    %3225 = vmatpush1.msra.mxu0 %v2489
    %3226 = vmatprep.subr.mxu0 0.0
    %3227 = vmatpush1.msra.mxu0 %v2490
    %3228 = vmatprep.subr.mxu0 0.0
    %3229 = vmatpush1.msra.mxu0 %v2491
    %3230 = vmatprep.subr.mxu0 0.0
    %3231 = vmatpush1.msra.mxu0 %v2492
    %3232 = vmatprep.subr.mxu0 0.0
    %3233 = vmatpush1.msra.mxu0 %v2493
    %3234 = vmatprep.subr.mxu0 0.0
    %3235 = vmatpush1.msra.mxu0 %v2494
    %3236 = vmatprep.subr.mxu0 0.0
    %3237 = vmatpush1.msra.mxu0 %v2495
    %3238 = vmatprep.subr.mxu0 0.0
    %3239 = vmatpush1.msra.mxu0 %v2496
    %3240 = vmatprep.subr.mxu0 0.0
    %3241 = vmatpush1.msra.mxu0 %v2497
    %3242 = vmatprep.subr.mxu0 0.0
    %3243 = vmatpush1.msra.mxu0 %v2498
    %3244 = vmatprep.subr.mxu0 0.0
    %3245 = vmatpush1.msra.mxu0 %v2499
    %3246 = vmatprep.subr.mxu0 0.0
    %3247 = vmatpush1.msra.mxu0 %v2500
    %3248 = vmatprep.subr.mxu0 0.0
    %3249 = vmatpush1.msra.mxu0 %v2501
    %3250 = vmatprep.subr.mxu0 0.0
    %3251 = vmatpush1.msra.mxu0 %v2502
    %3252 = vmatprep.subr.mxu0 0.0
    %3253 = vmatpush1.msra.mxu0 %v2503
    %3254 = vmatprep.subr.mxu0 0.0
    %3255 = vmatpush1.msra.mxu0 %v2504
    %3256 = vmatprep.subr.mxu0 0.0
    %3257 = vmatpush1.msra.mxu0 %v2505
    %3258 = vmatprep.subr.mxu0 0.0
    %3259 = vmatpush1.msra.mxu0 %v2506
    %3260 = vmatprep.subr.mxu0 0.0
    %3261 = vmatpush1.msra.mxu0 %v2507
    %3262 = vmatprep.subr.mxu0 0.0
    %3263 = vmatpush1.msra.mxu0 %v2508
    %3264 = vmatprep.subr.mxu0 0.0
    %3265 = vmatpush1.msra.mxu0 %v2509
    %3266 = vmatprep.subr.mxu0 0.0
    %3267 = vmatpush1.msra.mxu0 %v2510
    %3268 = vmatprep.subr.mxu0 0.0
    %3269 = vmatpush1.msra.mxu0 %v2511
    %3270 = vmatprep.subr.mxu0 0.0
    %3271 = vmatpush1.msra.mxu0 %v2512
    %3272 = vmatprep.subr.mxu0 0.0
    %3273 = vmatpush1.msra.mxu0 %v2513
    %3274 = vmatprep.subr.mxu0 0.0
    %3275 = vmatpush1.msra.mxu0 %v2514
    %3276 = vmatprep.subr.mxu0 0.0
    %3277 = vmatpush1.msra.mxu0 %v2515
    %3278 = vmatprep.mubr.f32.mxu0 %v2923
    %3279 = vmatmul.mubr.f32.gmra.mrb[0].mxu0 %v2921
    %v3280 = vpop.f32.mrb[0].mxu0
    %v3281 = vadd.f32 %v3211, %v3280
    %v3282 = vpop.f32.mrb[0].mxu0
    %3283 = vdwg.mxu0
    %3284 = vmatprep.subr.mxu0 0.0
    %3285 = vmatpush1.msra.mxu0 %v2516
    %3286 = vmatprep.subr.mxu0 0.0
    %3287 = vmatpush1.msra.mxu0 %v2517
    %3288 = vmatprep.subr.mxu0 0.0
    %3289 = vmatpush1.msra.mxu0 %v2518
    %3290 = vmatprep.subr.mxu0 0.0
    %3291 = vmatpush1.msra.mxu0 %v2519
    %3292 = vmatprep.subr.mxu0 0.0
    %3293 = vmatpush1.msra.mxu0 %v2520
    %3294 = vmatprep.subr.mxu0 0.0
    %3295 = vmatpush1.msra.mxu0 %v2521
    %3296 = vmatprep.subr.mxu0 0.0
    %3297 = vmatpush1.msra.mxu0 %v2522
    %3298 = vmatprep.subr.mxu0 0.0
    %3299 = vmatpush1.msra.mxu0 %v2523
    %3300 = vmatprep.subr.mxu0 0.0
    %3301 = vmatpush1.msra.mxu0 %v2524
    %3302 = vmatprep.subr.mxu0 0.0
    %3303 = vmatpush1.msra.mxu0 %v2525
    %3304 = vmatprep.subr.mxu0 0.0
    %3305 = vmatpush1.msra.mxu0 %v2526
    %3306 = vmatprep.subr.mxu0 0.0
    %3307 = vmatpush1.msra.mxu0 %v2527
    %3308 = vmatprep.subr.mxu0 0.0
    %3309 = vmatpush1.msra.mxu0 %v2528
    %3310 = vmatprep.subr.mxu0 0.0
    %3311 = vmatpush1.msra.mxu0 %v2529
    %3312 = vmatprep.subr.mxu0 0.0
    %3313 = vmatpush1.msra.mxu0 %v2530
    %3314 = vmatprep.subr.mxu0 0.0
    %3315 = vmatpush1.msra.mxu0 %v2531
    %3316 = vmatprep.subr.mxu0 0.0
    %3317 = vmatpush1.msra.mxu0 %v2532
    %3318 = vmatprep.subr.mxu0 0.0
    %3319 = vmatpush1.msra.mxu0 %v2533
    %3320 = vmatprep.subr.mxu0 0.0
    %3321 = vmatpush1.msra.mxu0 %v2534
    %3322 = vmatprep.subr.mxu0 0.0
    %3323 = vmatpush1.msra.mxu0 %v2535
    %3324 = vmatprep.subr.mxu0 0.0
    %3325 = vmatpush1.msra.mxu0 %v2536
    %3326 = vmatprep.subr.mxu0 0.0
    %3327 = vmatpush1.msra.mxu0 %v2537
    %3328 = vmatprep.subr.mxu0 0.0
    %3329 = vmatpush1.msra.mxu0 %v2538
    %3330 = vmatprep.subr.mxu0 0.0
    %3331 = vmatpush1.msra.mxu0 %v2539
    %3332 = vmatprep.subr.mxu0 0.0
    %3333 = vmatpush1.msra.mxu0 %v2540
    %3334 = vmatprep.subr.mxu0 0.0
    %3335 = vmatpush1.msra.mxu0 %v2541
    %3336 = vmatprep.subr.mxu0 0.0
    %3337 = vmatpush1.msra.mxu0 %v2542
    %3338 = vmatprep.subr.mxu0 0.0
    %3339 = vmatpush1.msra.mxu0 %v2543
    %3340 = vmatprep.subr.mxu0 0.0
    %3341 = vmatpush1.msra.mxu0 %v2544
    %3342 = vmatprep.subr.mxu0 0.0
    %3343 = vmatpush1.msra.mxu0 %v2545
    %3344 = vmatprep.subr.mxu0 0.0
    %3345 = vmatpush1.msra.mxu0 %v2546
    %3346 = vmatprep.subr.mxu0 0.0
    %3347 = vmatpush1.msra.mxu0 %v2547
    %3348 = vmatprep.mubr.f32.mxu0 %v2927
    %3349 = vmatmul.mubr.f32.gmra.mrb[0].mxu0 %v2925
    %v3350 = vpop.f32.mrb[0].mxu0
    %v3351 = vadd.f32 %v3281, %v3350
    %v3352 = vpop.f32.mrb[0].mxu0
    %3353 = vdwg.mxu0
    %3354 = vmatprep.subr.mxu0 0.0
    %3355 = vmatpush1.msra.mxu0 %v2548
    %3356 = vmatprep.subr.mxu0 0.0
    %3357 = vmatpush1.msra.mxu0 %v2549
    %3358 = vmatprep.subr.mxu0 0.0
    %3359 = vmatpush1.msra.mxu0 %v2550
    %3360 = vmatprep.subr.mxu0 0.0
    %3361 = vmatpush1.msra.mxu0 %v2551
    %3362 = vmatprep.subr.mxu0 0.0
    %3363 = vmatpush1.msra.mxu0 %v2552
    %3364 = vmatprep.subr.mxu0 0.0
    %3365 = vmatpush1.msra.mxu0 %v2553
    %3366 = vmatprep.subr.mxu0 0.0
    %3367 = vmatpush1.msra.mxu0 %v2554
    %3368 = vmatprep.subr.mxu0 0.0
    %3369 = vmatpush1.msra.mxu0 %v2555
    %3370 = vmatprep.subr.mxu0 0.0
    %3371 = vmatpush1.msra.mxu0 %v2556
    %3372 = vmatprep.subr.mxu0 0.0
    %3373 = vmatpush1.msra.mxu0 %v2557
    %3374 = vmatprep.subr.mxu0 0.0
    %3375 = vmatpush1.msra.mxu0 %v2558
    %3376 = vmatprep.subr.mxu0 0.0
    %3377 = vmatpush1.msra.mxu0 %v2559
    %3378 = vmatprep.subr.mxu0 0.0
    %3379 = vmatpush1.msra.mxu0 %v2560
    %3380 = vmatprep.subr.mxu0 0.0
    %3381 = vmatpush1.msra.mxu0 %v2561
    %3382 = vmatprep.subr.mxu0 0.0
    %3383 = vmatpush1.msra.mxu0 %v2562
    %3384 = vmatprep.subr.mxu0 0.0
    %3385 = vmatpush1.msra.mxu0 %v2563
    %3386 = vmatprep.subr.mxu0 0.0
    %3387 = vmatpush1.msra.mxu0 %v2564
    %3388 = vmatprep.subr.mxu0 0.0
    %3389 = vmatpush1.msra.mxu0 %v2565
    %3390 = vmatprep.subr.mxu0 0.0
    %3391 = vmatpush1.msra.mxu0 %v2566
    %3392 = vmatprep.subr.mxu0 0.0
    %3393 = vmatpush1.msra.mxu0 %v2567
    %3394 = vmatprep.subr.mxu0 0.0
    %3395 = vmatpush1.msra.mxu0 %v2568
    %3396 = vmatprep.subr.mxu0 0.0
    %3397 = vmatpush1.msra.mxu0 %v2569
    %3398 = vmatprep.subr.mxu0 0.0
    %3399 = vmatpush1.msra.mxu0 %v2570
    %3400 = vmatprep.subr.mxu0 0.0
    %3401 = vmatpush1.msra.mxu0 %v2571
    %3402 = vmatprep.subr.mxu0 0.0
    %3403 = vmatpush1.msra.mxu0 %v2572
    %3404 = vmatprep.subr.mxu0 0.0
    %3405 = vmatpush1.msra.mxu0 %v2573
    %3406 = vmatprep.subr.mxu0 0.0
    %3407 = vmatpush1.msra.mxu0 %v2574
    %3408 = vmatprep.subr.mxu0 0.0
    %3409 = vmatpush1.msra.mxu0 %v2575
    %3410 = vmatprep.subr.mxu0 0.0
    %3411 = vmatpush1.msra.mxu0 %v2576
    %3412 = vmatprep.subr.mxu0 0.0
    %3413 = vmatpush1.msra.mxu0 %v2577
    %3414 = vmatprep.subr.mxu0 0.0
    %3415 = vmatpush1.msra.mxu0 %v2578
    %3416 = vmatprep.subr.mxu0 0.0
    %3417 = vmatpush1.msra.mxu0 %v2579
    %3418 = vmatprep.mubr.f32.mxu0 %v2931
    %3419 = vmatmul.mubr.f32.gmra.mrb[0].mxu0 %v2929
    %v3420 = vpop.f32.mrb[0].mxu0
    %v3421 = vadd.f32 %v3351, %v3420
    %v3422 = vpop.f32.mrb[0].mxu0
    %3423 = vdwg.mxu0
    %3424 = vmatprep.subr.mxu0 0.0
    %3425 = vmatpush1.msra.mxu0 %v2580
    %3426 = vmatprep.subr.mxu0 0.0
    %3427 = vmatpush1.msra.mxu0 %v2581
    %3428 = vmatprep.subr.mxu0 0.0
    %3429 = vmatpush1.msra.mxu0 %v2582
    %3430 = vmatprep.subr.mxu0 0.0
    %3431 = vmatpush1.msra.mxu0 %v2583
    %3432 = vmatprep.subr.mxu0 0.0
    %3433 = vmatpush1.msra.mxu0 %v2584
    %3434 = vmatprep.subr.mxu0 0.0
    %3435 = vmatpush1.msra.mxu0 %v2585
    %3436 = vmatprep.subr.mxu0 0.0
    %3437 = vmatpush1.msra.mxu0 %v2586
    %3438 = vmatprep.subr.mxu0 0.0
    %3439 = vmatpush1.msra.mxu0 %v2587
    %3440 = vmatprep.subr.mxu0 0.0
    %3441 = vmatpush1.msra.mxu0 %v2588
    %3442 = vmatprep.subr.mxu0 0.0
    %3443 = vmatpush1.msra.mxu0 %v2589
    %3444 = vmatprep.subr.mxu0 0.0
    %3445 = vmatpush1.msra.mxu0 %v2590
    %3446 = vmatprep.subr.mxu0 0.0
    %3447 = vmatpush1.msra.mxu0 %v2591
    %3448 = vmatprep.subr.mxu0 0.0
    %3449 = vmatpush1.msra.mxu0 %v2592
    %3450 = vmatprep.subr.mxu0 0.0
    %3451 = vmatpush1.msra.mxu0 %v2593
    %3452 = vmatprep.subr.mxu0 0.0
    %3453 = vmatpush1.msra.mxu0 %v2594
    %3454 = vmatprep.subr.mxu0 0.0
    %3455 = vmatpush1.msra.mxu0 %v2595
    %3456 = vmatprep.subr.mxu0 0.0
    %3457 = vmatpush1.msra.mxu0 %v2596
    %3458 = vmatprep.subr.mxu0 0.0
    %3459 = vmatpush1.msra.mxu0 %v2597
    %3460 = vmatprep.subr.mxu0 0.0
    %3461 = vmatpush1.msra.mxu0 %v2598
    %3462 = vmatprep.subr.mxu0 0.0
    %3463 = vmatpush1.msra.mxu0 %v2599
    %3464 = vmatprep.subr.mxu0 0.0
    %3465 = vmatpush1.msra.mxu0 %v2600
    %3466 = vmatprep.subr.mxu0 0.0
    %3467 = vmatpush1.msra.mxu0 %v2601
    %3468 = vmatprep.subr.mxu0 0.0
    %3469 = vmatpush1.msra.mxu0 %v2602
    %3470 = vmatprep.subr.mxu0 0.0
    %3471 = vmatpush1.msra.mxu0 %v2603
    %3472 = vmatprep.subr.mxu0 0.0
    %3473 = vmatpush1.msra.mxu0 %v2604
    %3474 = vmatprep.subr.mxu0 0.0
    %3475 = vmatpush1.msra.mxu0 %v2605
    %3476 = vmatprep.subr.mxu0 0.0
    %3477 = vmatpush1.msra.mxu0 %v2606
    %3478 = vmatprep.subr.mxu0 0.0
    %3479 = vmatpush1.msra.mxu0 %v2607
    %3480 = vmatprep.subr.mxu0 0.0
    %3481 = vmatpush1.msra.mxu0 %v2608
    %3482 = vmatprep.subr.mxu0 0.0
    %3483 = vmatpush1.msra.mxu0 %v2609
    %3484 = vmatprep.subr.mxu0 0.0
    %3485 = vmatpush1.msra.mxu0 %v2610
    %3486 = vmatprep.subr.mxu0 0.0
    %3487 = vmatpush1.msra.mxu0 %v2611
    %3488 = vmatprep.mubr.f32.mxu0 %v2935
    %3489 = vmatmul.mubr.f32.gmra.mrb[0].mxu0 %v2933
    %v3490 = vpop.f32.mrb[0].mxu0
    %v3491 = vadd.f32 %v3421, %v3490
    %v3492 = vpop.f32.mrb[0].mxu0
    %3493 = vdwg.mxu0
    %3494 = vmatprep.subr.mxu0 0.0
    %3495 = vmatpush1.msra.mxu0 %v2612
    %3496 = vmatprep.subr.mxu0 0.0
    %3497 = vmatpush1.msra.mxu0 %v2613
    %3498 = vmatprep.subr.mxu0 0.0
    %3499 = vmatpush1.msra.mxu0 %v2614
    %3500 = vmatprep.subr.mxu0 0.0
    %3501 = vmatpush1.msra.mxu0 %v2615
    %3502 = vmatprep.subr.mxu0 0.0
    %3503 = vmatpush1.msra.mxu0 %v2616
    %3504 = vmatprep.subr.mxu0 0.0
    %3505 = vmatpush1.msra.mxu0 %v2617
    %3506 = vmatprep.subr.mxu0 0.0
    %3507 = vmatpush1.msra.mxu0 %v2618
    %3508 = vmatprep.subr.mxu0 0.0
    %3509 = vmatpush1.msra.mxu0 %v2619
    %3510 = vmatprep.subr.mxu0 0.0
    %3511 = vmatpush1.msra.mxu0 %v2620
    %3512 = vmatprep.subr.mxu0 0.0
    %3513 = vmatpush1.msra.mxu0 %v2621
    %3514 = vmatprep.subr.mxu0 0.0
    %3515 = vmatpush1.msra.mxu0 %v2622
    %3516 = vmatprep.subr.mxu0 0.0
    %3517 = vmatpush1.msra.mxu0 %v2623
    %3518 = vmatprep.subr.mxu0 0.0
    %3519 = vmatpush1.msra.mxu0 %v2624
    %3520 = vmatprep.subr.mxu0 0.0
    %3521 = vmatpush1.msra.mxu0 %v2625
    %3522 = vmatprep.subr.mxu0 0.0
    %3523 = vmatpush1.msra.mxu0 %v2626
    %3524 = vmatprep.subr.mxu0 0.0
    %3525 = vmatpush1.msra.mxu0 %v2627
    %3526 = vmatprep.subr.mxu0 0.0
    %3527 = vmatpush1.msra.mxu0 %v2628
    %3528 = vmatprep.subr.mxu0 0.0
    %3529 = vmatpush1.msra.mxu0 %v2629
    %3530 = vmatprep.subr.mxu0 0.0
    %3531 = vmatpush1.msra.mxu0 %v2630
    %3532 = vmatprep.subr.mxu0 0.0
    %3533 = vmatpush1.msra.mxu0 %v2631
    %3534 = vmatprep.subr.mxu0 0.0
    %3535 = vmatpush1.msra.mxu0 %v2632
    %3536 = vmatprep.subr.mxu0 0.0
    %3537 = vmatpush1.msra.mxu0 %v2633
    %3538 = vmatprep.subr.mxu0 0.0
    %3539 = vmatpush1.msra.mxu0 %v2634
    %3540 = vmatprep.subr.mxu0 0.0
    %3541 = vmatpush1.msra.mxu0 %v2635
    %3542 = vmatprep.subr.mxu0 0.0
    %3543 = vmatpush1.msra.mxu0 %v2636
    %3544 = vmatprep.subr.mxu0 0.0
    %3545 = vmatpush1.msra.mxu0 %v2637
    %3546 = vmatprep.subr.mxu0 0.0
    %3547 = vmatpush1.msra.mxu0 %v2638
    %3548 = vmatprep.subr.mxu0 0.0
    %3549 = vmatpush1.msra.mxu0 %v2639
    %3550 = vmatprep.subr.mxu0 0.0
    %3551 = vmatpush1.msra.mxu0 %v2640
    %3552 = vmatprep.subr.mxu0 0.0
    %3553 = vmatpush1.msra.mxu0 %v2641
    %3554 = vmatprep.subr.mxu0 0.0
    %3555 = vmatpush1.msra.mxu0 %v2642
    %3556 = vmatprep.subr.mxu0 0.0
    %3557 = vmatpush1.msra.mxu0 %v2643
    %3558 = vmatprep.mubr.f32.mxu0 %v2939
    %3559 = vmatmul.mubr.f32.gmra.mrb[0].mxu0 %v2937
    %v3560 = vpop.f32.mrb[0].mxu0
    %v3561 = vadd.f32 %v3491, %v3560
    %v3562 = vpop.f32.mrb[0].mxu0
    %3563 = vdwg.mxu0
    %3564 = vmatprep.subr.mxu0 0.0
    %3565 = vmatpush1.msra.mxu0 %v2644
    %3566 = vmatprep.subr.mxu0 0.0
    %3567 = vmatpush1.msra.mxu0 %v2645
    %3568 = vmatprep.subr.mxu0 0.0
    %3569 = vmatpush1.msra.mxu0 %v2646
    %3570 = vmatprep.subr.mxu0 0.0
    %3571 = vmatpush1.msra.mxu0 %v2647
    %3572 = vmatprep.subr.mxu0 0.0
    %3573 = vmatpush1.msra.mxu0 %v2648
    %3574 = vmatprep.subr.mxu0 0.0
    %3575 = vmatpush1.msra.mxu0 %v2649
    %3576 = vmatprep.subr.mxu0 0.0
    %3577 = vmatpush1.msra.mxu0 %v2650
    %3578 = vmatprep.subr.mxu0 0.0
    %3579 = vmatpush1.msra.mxu0 %v2651
    %3580 = vmatprep.subr.mxu0 0.0
    %3581 = vmatpush1.msra.mxu0 %v2652
    %3582 = vmatprep.subr.mxu0 0.0
    %3583 = vmatpush1.msra.mxu0 %v2653
    %3584 = vmatprep.subr.mxu0 0.0
    %3585 = vmatpush1.msra.mxu0 %v2654
    %3586 = vmatprep.subr.mxu0 0.0
    %3587 = vmatpush1.msra.mxu0 %v2655
    %3588 = vmatprep.subr.mxu0 0.0
    %3589 = vmatpush1.msra.mxu0 %v2656
    %3590 = vmatprep.subr.mxu0 0.0
    %3591 = vmatpush1.msra.mxu0 %v2657
    %3592 = vmatprep.subr.mxu0 0.0
    %3593 = vmatpush1.msra.mxu0 %v2658
    %3594 = vmatprep.subr.mxu0 0.0
    %3595 = vmatpush1.msra.mxu0 %v2659
    %3596 = vmatprep.subr.mxu0 0.0
    %3597 = vmatpush1.msra.mxu0 %v2660
    %3598 = vmatprep.subr.mxu0 0.0
    %3599 = vmatpush1.msra.mxu0 %v2661
    %3600 = vmatprep.subr.mxu0 0.0
    %3601 = vmatpush1.msra.mxu0 %v2662
    %3602 = vmatprep.subr.mxu0 0.0
    %3603 = vmatpush1.msra.mxu0 %v2663
    %3604 = vmatprep.subr.mxu0 0.0
    %3605 = vmatpush1.msra.mxu0 %v2664
    %3606 = vmatprep.subr.mxu0 0.0
    %3607 = vmatpush1.msra.mxu0 %v2665
    %3608 = vmatprep.subr.mxu0 0.0
    %3609 = vmatpush1.msra.mxu0 %v2666
    %3610 = vmatprep.subr.mxu0 0.0
    %3611 = vmatpush1.msra.mxu0 %v2667
    %3612 = vmatprep.subr.mxu0 0.0
    %3613 = vmatpush1.msra.mxu0 %v2668
    %3614 = vmatprep.subr.mxu0 0.0
    %3615 = vmatpush1.msra.mxu0 %v2669
    %3616 = vmatprep.subr.mxu0 0.0
    %3617 = vmatpush1.msra.mxu0 %v2670
    %3618 = vmatprep.subr.mxu0 0.0
    %3619 = vmatpush1.msra.mxu0 %v2671
    %3620 = vmatprep.subr.mxu0 0.0
    %3621 = vmatpush1.msra.mxu0 %v2672
    %3622 = vmatprep.subr.mxu0 0.0
    %3623 = vmatpush1.msra.mxu0 %v2673
    %3624 = vmatprep.subr.mxu0 0.0
    %3625 = vmatpush1.msra.mxu0 %v2674
    %3626 = vmatprep.subr.mxu0 0.0
    %3627 = vmatpush1.msra.mxu0 %v2675
    %3628 = vmatprep.mubr.f32.mxu0 %v2943
    %3629 = vmatmul.mubr.f32.gmra.mrb[0].mxu0 %v2941
    %v3630 = vpop.f32.mrb[0].mxu0
    %v3631 = vadd.f32 %v3561, %v3630
    %v3632 = vpop.f32.mrb[0].mxu0
    %3633 = vdwg.mxu0
    %3634 = vmatprep.subr.mxu0 0.0
    %3635 = vmatpush1.msra.mxu0 %v2676
    %3636 = vmatprep.subr.mxu0 0.0
    %3637 = vmatpush1.msra.mxu0 %v2677
    %3638 = vmatprep.subr.mxu0 0.0
    %3639 = vmatpush1.msra.mxu0 %v2678
    %3640 = vmatprep.subr.mxu0 0.0
    %3641 = vmatpush1.msra.mxu0 %v2679
    %3642 = vmatprep.subr.mxu0 0.0
    %3643 = vmatpush1.msra.mxu0 %v2680
    %3644 = vmatprep.subr.mxu0 0.0
    %3645 = vmatpush1.msra.mxu0 %v2681
    %3646 = vmatprep.subr.mxu0 0.0
    %3647 = vmatpush1.msra.mxu0 %v2682
    %3648 = vmatprep.subr.mxu0 0.0
    %3649 = vmatpush1.msra.mxu0 %v2683
    %3650 = vmatprep.subr.mxu0 0.0
    %3651 = vmatpush1.msra.mxu0 %v2684
    %3652 = vmatprep.subr.mxu0 0.0
    %3653 = vmatpush1.msra.mxu0 %v2685
    %3654 = vmatprep.subr.mxu0 0.0
    %3655 = vmatpush1.msra.mxu0 %v2686
    %3656 = vmatprep.subr.mxu0 0.0
    %3657 = vmatpush1.msra.mxu0 %v2687
    %3658 = vmatprep.subr.mxu0 0.0
    %3659 = vmatpush1.msra.mxu0 %v2688
    %3660 = vmatprep.subr.mxu0 0.0
    %3661 = vmatpush1.msra.mxu0 %v2689
    %3662 = vmatprep.subr.mxu0 0.0
    %3663 = vmatpush1.msra.mxu0 %v2690
    %3664 = vmatprep.subr.mxu0 0.0
    %3665 = vmatpush1.msra.mxu0 %v2691
    %3666 = vmatprep.subr.mxu0 0.0
    %3667 = vmatpush1.msra.mxu0 %v2692
    %3668 = vmatprep.subr.mxu0 0.0
    %3669 = vmatpush1.msra.mxu0 %v2693
    %3670 = vmatprep.subr.mxu0 0.0
    %3671 = vmatpush1.msra.mxu0 %v2694
    %3672 = vmatprep.subr.mxu0 0.0
    %3673 = vmatpush1.msra.mxu0 %v2695
    %3674 = vmatprep.subr.mxu0 0.0
    %3675 = vmatpush1.msra.mxu0 %v2696
    %3676 = vmatprep.subr.mxu0 0.0
    %3677 = vmatpush1.msra.mxu0 %v2697
    %3678 = vmatprep.subr.mxu0 0.0
    %3679 = vmatpush1.msra.mxu0 %v2698
    %3680 = vmatprep.subr.mxu0 0.0
    %3681 = vmatpush1.msra.mxu0 %v2699
    %3682 = vmatprep.subr.mxu0 0.0
    %3683 = vmatpush1.msra.mxu0 %v2700
    %3684 = vmatprep.subr.mxu0 0.0
    %3685 = vmatpush1.msra.mxu0 %v2701
    %3686 = vmatprep.subr.mxu0 0.0
    %3687 = vmatpush1.msra.mxu0 %v2702
    %3688 = vmatprep.subr.mxu0 0.0
    %3689 = vmatpush1.msra.mxu0 %v2703
    %3690 = vmatprep.subr.mxu0 0.0
    %3691 = vmatpush1.msra.mxu0 %v2704
    %3692 = vmatprep.subr.mxu0 0.0
    %3693 = vmatpush1.msra.mxu0 %v2705
    %3694 = vmatprep.subr.mxu0 0.0
    %3695 = vmatpush1.msra.mxu0 %v2706
    %3696 = vmatprep.subr.mxu0 0.0
    %3697 = vmatpush1.msra.mxu0 %v2707
    %3698 = vmatprep.mubr.f32.mxu0 %v2947
    %3699 = vmatmul.mubr.f32.gmra.mrb[0].mxu0 %v2945
    %v3700 = vpop.f32.mrb[0].mxu0
    %v3701 = vadd.f32 %v3631, %v3700
    %v3702 = vpop.f32.mrb[0].mxu0
    %3703 = vdwg.mxu0
    %3704 = vmatprep.subr.mxu0 0.0
    %3705 = vmatpush1.msra.mxu0 %v2708
    %3706 = vmatprep.subr.mxu0 0.0
    %3707 = vmatpush1.msra.mxu0 %v2709
    %3708 = vmatprep.subr.mxu0 0.0
    %3709 = vmatpush1.msra.mxu0 %v2710
    %3710 = vmatprep.subr.mxu0 0.0
    %3711 = vmatpush1.msra.mxu0 %v2711
    %3712 = vmatprep.subr.mxu0 0.0
    %3713 = vmatpush1.msra.mxu0 %v2712
    %3714 = vmatprep.subr.mxu0 0.0
    %3715 = vmatpush1.msra.mxu0 %v2713
    %3716 = vmatprep.subr.mxu0 0.0
    %3717 = vmatpush1.msra.mxu0 %v2714
    %3718 = vmatprep.subr.mxu0 0.0
    %3719 = vmatpush1.msra.mxu0 %v2715
    %3720 = vmatprep.subr.mxu0 0.0
    %3721 = vmatpush1.msra.mxu0 %v2716
    %3722 = vmatprep.subr.mxu0 0.0
    %3723 = vmatpush1.msra.mxu0 %v2717
    %3724 = vmatprep.subr.mxu0 0.0
    %3725 = vmatpush1.msra.mxu0 %v2718
    %3726 = vmatprep.subr.mxu0 0.0
    %3727 = vmatpush1.msra.mxu0 %v2719
    %3728 = vmatprep.subr.mxu0 0.0
    %3729 = vmatpush1.msra.mxu0 %v2720
    %3730 = vmatprep.subr.mxu0 0.0
    %3731 = vmatpush1.msra.mxu0 %v2721
    %3732 = vmatprep.subr.mxu0 0.0
    %3733 = vmatpush1.msra.mxu0 %v2722
    %3734 = vmatprep.subr.mxu0 0.0
    %3735 = vmatpush1.msra.mxu0 %v2723
    %3736 = vmatprep.subr.mxu0 0.0
    %3737 = vmatpush1.msra.mxu0 %v2724
    %3738 = vmatprep.subr.mxu0 0.0
    %3739 = vmatpush1.msra.mxu0 %v2725
    %3740 = vmatprep.subr.mxu0 0.0
    %3741 = vmatpush1.msra.mxu0 %v2726
    %3742 = vmatprep.subr.mxu0 0.0
    %3743 = vmatpush1.msra.mxu0 %v2727
    %3744 = vmatprep.subr.mxu0 0.0
    %3745 = vmatpush1.msra.mxu0 %v2728
    %3746 = vmatprep.subr.mxu0 0.0
    %3747 = vmatpush1.msra.mxu0 %v2729
    %3748 = vmatprep.subr.mxu0 0.0
    %3749 = vmatpush1.msra.mxu0 %v2730
    %3750 = vmatprep.subr.mxu0 0.0
    %3751 = vmatpush1.msra.mxu0 %v2731
    %3752 = vmatprep.subr.mxu0 0.0
    %3753 = vmatpush1.msra.mxu0 %v2732
    %3754 = vmatprep.subr.mxu0 0.0
    %3755 = vmatpush1.msra.mxu0 %v2733
    %3756 = vmatprep.subr.mxu0 0.0
    %3757 = vmatpush1.msra.mxu0 %v2734
    %3758 = vmatprep.subr.mxu0 0.0
    %3759 = vmatpush1.msra.mxu0 %v2735
    %3760 = vmatprep.subr.mxu0 0.0
    %3761 = vmatpush1.msra.mxu0 %v2736
    %3762 = vmatprep.subr.mxu0 0.0
    %3763 = vmatpush1.msra.mxu0 %v2737
    %3764 = vmatprep.subr.mxu0 0.0
    %3765 = vmatpush1.msra.mxu0 %v2738
    %3766 = vmatprep.subr.mxu0 0.0
    %3767 = vmatpush1.msra.mxu0 %v2739
    %3768 = vmatprep.mubr.f32.mxu0 %v2951
    %3769 = vmatmul.mubr.f32.gmra.mrb[0].mxu0 %v2949
    %v3770 = vpop.f32.mrb[0].mxu0
    %v3771 = vadd.f32 %v3701, %v3770
    %v3772 = vpop.f32.mrb[0].mxu0
    %3773 = vdwg.mxu0
    %3774 = vmatprep.subr.mxu0 0.0
    %3775 = vmatpush1.msra.mxu0 %v2740
    %3776 = vmatprep.subr.mxu0 0.0
    %3777 = vmatpush1.msra.mxu0 %v2741
    %3778 = vmatprep.subr.mxu0 0.0
    %3779 = vmatpush1.msra.mxu0 %v2742
    %3780 = vmatprep.subr.mxu0 0.0
    %3781 = vmatpush1.msra.mxu0 %v2743
    %3782 = vmatprep.subr.mxu0 0.0
    %3783 = vmatpush1.msra.mxu0 %v2744
    %3784 = vmatprep.subr.mxu0 0.0
    %3785 = vmatpush1.msra.mxu0 %v2745
    %3786 = vmatprep.subr.mxu0 0.0
    %3787 = vmatpush1.msra.mxu0 %v2746
    %3788 = vmatprep.subr.mxu0 0.0
    %3789 = vmatpush1.msra.mxu0 %v2747
    %3790 = vmatprep.subr.mxu0 0.0
    %3791 = vmatpush1.msra.mxu0 %v2748
    %3792 = vmatprep.subr.mxu0 0.0
    %3793 = vmatpush1.msra.mxu0 %v2749
    %3794 = vmatprep.subr.mxu0 0.0
    %3795 = vmatpush1.msra.mxu0 %v2750
    %3796 = vmatprep.subr.mxu0 0.0
    %3797 = vmatpush1.msra.mxu0 %v2751
    %3798 = vmatprep.subr.mxu0 0.0
    %3799 = vmatpush1.msra.mxu0 %v2752
    %3800 = vmatprep.subr.mxu0 0.0
    %3801 = vmatpush1.msra.mxu0 %v2753
    %3802 = vmatprep.subr.mxu0 0.0
    %3803 = vmatpush1.msra.mxu0 %v2754
    %3804 = vmatprep.subr.mxu0 0.0
    %3805 = vmatpush1.msra.mxu0 %v2755
    %3806 = vmatprep.subr.mxu0 0.0
    %3807 = vmatpush1.msra.mxu0 %v2756
    %3808 = vmatprep.subr.mxu0 0.0
    %3809 = vmatpush1.msra.mxu0 %v2757
    %3810 = vmatprep.subr.mxu0 0.0
    %3811 = vmatpush1.msra.mxu0 %v2758
    %3812 = vmatprep.subr.mxu0 0.0
    %3813 = vmatpush1.msra.mxu0 %v2759
    %3814 = vmatprep.subr.mxu0 0.0
    %3815 = vmatpush1.msra.mxu0 %v2760
    %3816 = vmatprep.subr.mxu0 0.0
    %3817 = vmatpush1.msra.mxu0 %v2761
    %3818 = vmatprep.subr.mxu0 0.0
    %3819 = vmatpush1.msra.mxu0 %v2762
    %3820 = vmatprep.subr.mxu0 0.0
    %3821 = vmatpush1.msra.mxu0 %v2763
    %3822 = vmatprep.subr.mxu0 0.0
    %3823 = vmatpush1.msra.mxu0 %v2764
    %3824 = vmatprep.subr.mxu0 0.0
    %3825 = vmatpush1.msra.mxu0 %v2765
    %3826 = vmatprep.subr.mxu0 0.0
    %3827 = vmatpush1.msra.mxu0 %v2766
    %3828 = vmatprep.subr.mxu0 0.0
    %3829 = vmatpush1.msra.mxu0 %v2767
    %3830 = vmatprep.subr.mxu0 0.0
    %3831 = vmatpush1.msra.mxu0 %v2768
    %3832 = vmatprep.subr.mxu0 0.0
    %3833 = vmatpush1.msra.mxu0 %v2769
    %3834 = vmatprep.subr.mxu0 0.0
    %3835 = vmatpush1.msra.mxu0 %v2770
    %3836 = vmatprep.subr.mxu0 0.0
    %3837 = vmatpush1.msra.mxu0 %v2771
    %3838 = vmatprep.mubr.f32.mxu0 %v2955
    %3839 = vmatmul.mubr.f32.gmra.mrb[0].mxu0 %v2953
    %v3840 = vpop.f32.mrb[0].mxu0
    %v3841 = vadd.f32 %v3771, %v3840
    %v3842 = vpop.f32.mrb[0].mxu0
    %3843 = vdwg.mxu0
    %3844 = vmatprep.subr.mxu0 0.0
    %3845 = vmatpush1.msra.mxu0 %v2772
    %3846 = vmatprep.subr.mxu0 0.0
    %3847 = vmatpush1.msra.mxu0 %v2773
    %3848 = vmatprep.subr.mxu0 0.0
    %3849 = vmatpush1.msra.mxu0 %v2774
    %3850 = vmatprep.subr.mxu0 0.0
    %3851 = vmatpush1.msra.mxu0 %v2775
    %3852 = vmatprep.subr.mxu0 0.0
    %3853 = vmatpush1.msra.mxu0 %v2776
    %3854 = vmatprep.subr.mxu0 0.0
    %3855 = vmatpush1.msra.mxu0 %v2777
    %3856 = vmatprep.subr.mxu0 0.0
    %3857 = vmatpush1.msra.mxu0 %v2778
    %3858 = vmatprep.subr.mxu0 0.0
    %3859 = vmatpush1.msra.mxu0 %v2779
    %3860 = vmatprep.subr.mxu0 0.0
    %3861 = vmatpush1.msra.mxu0 %v2780
    %3862 = vmatprep.subr.mxu0 0.0
    %3863 = vmatpush1.msra.mxu0 %v2781
    %3864 = vmatprep.subr.mxu0 0.0
    %3865 = vmatpush1.msra.mxu0 %v2782
    %3866 = vmatprep.subr.mxu0 0.0
    %3867 = vmatpush1.msra.mxu0 %v2783
    %3868 = vmatprep.subr.mxu0 0.0
    %3869 = vmatpush1.msra.mxu0 %v2784
    %3870 = vmatprep.subr.mxu0 0.0
    %3871 = vmatpush1.msra.mxu0 %v2785
    %3872 = vmatprep.subr.mxu0 0.0
    %3873 = vmatpush1.msra.mxu0 %v2786
    %3874 = vmatprep.subr.mxu0 0.0
    %3875 = vmatpush1.msra.mxu0 %v2787
    %3876 = vmatprep.subr.mxu0 0.0
    %3877 = vmatpush1.msra.mxu0 %v2788
    %3878 = vmatprep.subr.mxu0 0.0
    %3879 = vmatpush1.msra.mxu0 %v2789
    %3880 = vmatprep.subr.mxu0 0.0
    %3881 = vmatpush1.msra.mxu0 %v2790
    %3882 = vmatprep.subr.mxu0 0.0
    %3883 = vmatpush1.msra.mxu0 %v2791
    %3884 = vmatprep.subr.mxu0 0.0
    %3885 = vmatpush1.msra.mxu0 %v2792
    %3886 = vmatprep.subr.mxu0 0.0
    %3887 = vmatpush1.msra.mxu0 %v2793
    %3888 = vmatprep.subr.mxu0 0.0
    %3889 = vmatpush1.msra.mxu0 %v2794
    %3890 = vmatprep.subr.mxu0 0.0
    %3891 = vmatpush1.msra.mxu0 %v2795
    %3892 = vmatprep.subr.mxu0 0.0
    %3893 = vmatpush1.msra.mxu0 %v2796
    %3894 = vmatprep.subr.mxu0 0.0
    %3895 = vmatpush1.msra.mxu0 %v2797
    %3896 = vmatprep.subr.mxu0 0.0
    %3897 = vmatpush1.msra.mxu0 %v2798
    %3898 = vmatprep.subr.mxu0 0.0
    %3899 = vmatpush1.msra.mxu0 %v2799
    %3900 = vmatprep.subr.mxu0 0.0
    %3901 = vmatpush1.msra.mxu0 %v2800
    %3902 = vmatprep.subr.mxu0 0.0
    %3903 = vmatpush1.msra.mxu0 %v2801
    %3904 = vmatprep.subr.mxu0 0.0
    %3905 = vmatpush1.msra.mxu0 %v2802
    %3906 = vmatprep.subr.mxu0 0.0
    %3907 = vmatpush1.msra.mxu0 %v2803
    %3908 = vmatprep.mubr.f32.mxu0 %v2959
    %3909 = vmatmul.mubr.f32.gmra.mrb[0].mxu0 %v2957
    %v3910 = vpop.f32.mrb[0].mxu0
    %v3911 = vadd.f32 %v3841, %v3910
    %v3912 = vpop.f32.mrb[0].mxu0
    %3913 = vdwg.mxu0
    %3914 = vmatprep.subr.mxu0 0.0
    %3915 = vmatpush1.msra.mxu0 %v2804
    %3916 = vmatprep.subr.mxu0 0.0
    %3917 = vmatpush1.msra.mxu0 %v2805
    %3918 = vmatprep.subr.mxu0 0.0
    %3919 = vmatpush1.msra.mxu0 %v2806
    %3920 = vmatprep.subr.mxu0 0.0
    %3921 = vmatpush1.msra.mxu0 %v2807
    %3922 = vmatprep.subr.mxu0 0.0
    %3923 = vmatpush1.msra.mxu0 %v2808
    %3924 = vmatprep.subr.mxu0 0.0
    %3925 = vmatpush1.msra.mxu0 %v2809
    %3926 = vmatprep.subr.mxu0 0.0
    %3927 = vmatpush1.msra.mxu0 %v2810
    %3928 = vmatprep.subr.mxu0 0.0
    %3929 = vmatpush1.msra.mxu0 %v2811
    %3930 = vmatprep.subr.mxu0 0.0
    %3931 = vmatpush1.msra.mxu0 %v2812
    %3932 = vmatprep.subr.mxu0 0.0
    %3933 = vmatpush1.msra.mxu0 %v2813
    %3934 = vmatprep.subr.mxu0 0.0
    %3935 = vmatpush1.msra.mxu0 %v2814
    %3936 = vmatprep.subr.mxu0 0.0
    %3937 = vmatpush1.msra.mxu0 %v2815
    %3938 = vmatprep.subr.mxu0 0.0
    %3939 = vmatpush1.msra.mxu0 %v2816
    %3940 = vmatprep.subr.mxu0 0.0
    %3941 = vmatpush1.msra.mxu0 %v2817
    %3942 = vmatprep.subr.mxu0 0.0
    %3943 = vmatpush1.msra.mxu0 %v2818
    %3944 = vmatprep.subr.mxu0 0.0
    %3945 = vmatpush1.msra.mxu0 %v2819
    %3946 = vmatprep.subr.mxu0 0.0
    %3947 = vmatpush1.msra.mxu0 %v2820
    %3948 = vmatprep.subr.mxu0 0.0
    %3949 = vmatpush1.msra.mxu0 %v2821
    %3950 = vmatprep.subr.mxu0 0.0
    %3951 = vmatpush1.msra.mxu0 %v2822
    %3952 = vmatprep.subr.mxu0 0.0
    %3953 = vmatpush1.msra.mxu0 %v2823
    %3954 = vmatprep.subr.mxu0 0.0
    %3955 = vmatpush1.msra.mxu0 %v2824
    %3956 = vmatprep.subr.mxu0 0.0
    %3957 = vmatpush1.msra.mxu0 %v2825
    %3958 = vmatprep.subr.mxu0 0.0
    %3959 = vmatpush1.msra.mxu0 %v2826
    %3960 = vmatprep.subr.mxu0 0.0
    %3961 = vmatpush1.msra.mxu0 %v2827
    %3962 = vmatprep.subr.mxu0 0.0
    %3963 = vmatpush1.msra.mxu0 %v2828
    %3964 = vmatprep.subr.mxu0 0.0
    %3965 = vmatpush1.msra.mxu0 %v2829
    %3966 = vmatprep.subr.mxu0 0.0
    %3967 = vmatpush1.msra.mxu0 %v2830
    %3968 = vmatprep.subr.mxu0 0.0
    %3969 = vmatpush1.msra.mxu0 %v2831
    %3970 = vmatprep.subr.mxu0 0.0
    %3971 = vmatpush1.msra.mxu0 %v2832
    %3972 = vmatprep.subr.mxu0 0.0
    %3973 = vmatpush1.msra.mxu0 %v2833
    %3974 = vmatprep.subr.mxu0 0.0
    %3975 = vmatpush1.msra.mxu0 %v2834
    %3976 = vmatprep.subr.mxu0 0.0
    %3977 = vmatpush1.msra.mxu0 %v2835
    %3978 = vmatprep.mubr.f32.mxu0 %v2963
    %3979 = vmatmul.mubr.f32.gmra.mrb[0].mxu0 %v2961
    %v3980 = vpop.f32.mrb[0].mxu0
    %v3981 = vadd.f32 %v3911, %v3980
    %v3982 = vpop.f32.mrb[0].mxu0
    %3983 = vdwg.mxu0
    %3984 = vmatprep.subr.mxu0 0.0
    %3985 = vmatpush1.msra.mxu0 %v2836
    %3986 = vmatprep.subr.mxu0 0.0
    %3987 = vmatpush1.msra.mxu0 %v2837
    %3988 = vmatprep.subr.mxu0 0.0
    %3989 = vmatpush1.msra.mxu0 %v2838
    %3990 = vmatprep.subr.mxu0 0.0
    %3991 = vmatpush1.msra.mxu0 %v2839
    %3992 = vmatprep.subr.mxu0 0.0
    %3993 = vmatpush1.msra.mxu0 %v2840
    %3994 = vmatprep.subr.mxu0 0.0
    %3995 = vmatpush1.msra.mxu0 %v2841
    %3996 = vmatprep.subr.mxu0 0.0
    %3997 = vmatpush1.msra.mxu0 %v2842
    %3998 = vmatprep.subr.mxu0 0.0
    %3999 = vmatpush1.msra.mxu0 %v2843
    %4000 = vmatprep.subr.mxu0 0.0
    %4001 = vmatpush1.msra.mxu0 %v2844
    %4002 = vmatprep.subr.mxu0 0.0
    %4003 = vmatpush1.msra.mxu0 %v2845
    %4004 = vmatprep.subr.mxu0 0.0
    %4005 = vmatpush1.msra.mxu0 %v2846
    %4006 = vmatprep.subr.mxu0 0.0
    %4007 = vmatpush1.msra.mxu0 %v2847
    %4008 = vmatprep.subr.mxu0 0.0
    %4009 = vmatpush1.msra.mxu0 %v2848
    %4010 = vmatprep.subr.mxu0 0.0
    %4011 = vmatpush1.msra.mxu0 %v2849
    %4012 = vmatprep.subr.mxu0 0.0
    %4013 = vmatpush1.msra.mxu0 %v2850
    %4014 = vmatprep.subr.mxu0 0.0
    %4015 = vmatpush1.msra.mxu0 %v2851
    %4016 = vmatprep.subr.mxu0 0.0
    %4017 = vmatpush1.msra.mxu0 %v2852
    %4018 = vmatprep.subr.mxu0 0.0
    %4019 = vmatpush1.msra.mxu0 %v2853
    %4020 = vmatprep.subr.mxu0 0.0
    %4021 = vmatpush1.msra.mxu0 %v2854
    %4022 = vmatprep.subr.mxu0 0.0
    %4023 = vmatpush1.msra.mxu0 %v2855
    %4024 = vmatprep.subr.mxu0 0.0
    %4025 = vmatpush1.msra.mxu0 %v2856
    %4026 = vmatprep.subr.mxu0 0.0
    %4027 = vmatpush1.msra.mxu0 %v2857
    %4028 = vmatprep.subr.mxu0 0.0
    %4029 = vmatpush1.msra.mxu0 %v2858
    %4030 = vmatprep.subr.mxu0 0.0
    %4031 = vmatpush1.msra.mxu0 %v2859
    %4032 = vmatprep.subr.mxu0 0.0
    %4033 = vmatpush1.msra.mxu0 %v2860
    %4034 = vmatprep.subr.mxu0 0.0
    %4035 = vmatpush1.msra.mxu0 %v2861
    %4036 = vmatprep.subr.mxu0 0.0
    %4037 = vmatpush1.msra.mxu0 %v2862
    %4038 = vmatprep.subr.mxu0 0.0
    %4039 = vmatpush1.msra.mxu0 %v2863
    %4040 = vmatprep.subr.mxu0 0.0
    %4041 = vmatpush1.msra.mxu0 %v2864
    %4042 = vmatprep.subr.mxu0 0.0
    %4043 = vmatpush1.msra.mxu0 %v2865
    %4044 = vmatprep.subr.mxu0 0.0
    %4045 = vmatpush1.msra.mxu0 %v2866
    %4046 = vmatprep.subr.mxu0 0.0
    %4047 = vmatpush1.msra.mxu0 %v2867
    %4048 = vmatprep.mubr.f32.mxu0 %v2967
    %4049 = vmatmul.mubr.f32.gmra.mrb[0].mxu0 %v2965
    %v4050 = vpop.f32.mrb[0].mxu0
    %v4051 = vadd.f32 %v3981, %v4050
    %v4052 = vpop.f32.mrb[0].mxu0
    %4053 = vdwg.mxu0
    %4054 = vmatprep.subr.mxu0 0.0
    %4055 = vmatpush1.msra.mxu0 %v2868
    %4056 = vmatprep.subr.mxu0 0.0
    %4057 = vmatpush1.msra.mxu0 %v2869
    %4058 = vmatprep.subr.mxu0 0.0
    %4059 = vmatpush1.msra.mxu0 %v2870
    %4060 = vmatprep.subr.mxu0 0.0
    %4061 = vmatpush1.msra.mxu0 %v2871
    %4062 = vmatprep.subr.mxu0 0.0
    %4063 = vmatpush1.msra.mxu0 %v2872
    %4064 = vmatprep.subr.mxu0 0.0
    %4065 = vmatpush1.msra.mxu0 %v2873
    %4066 = vmatprep.subr.mxu0 0.0
    %4067 = vmatpush1.msra.mxu0 %v2874
    %4068 = vmatprep.subr.mxu0 0.0
    %4069 = vmatpush1.msra.mxu0 %v2875
    %4070 = vmatprep.subr.mxu0 0.0
    %4071 = vmatpush1.msra.mxu0 %v2876
    %4072 = vmatprep.subr.mxu0 0.0
    %4073 = vmatpush1.msra.mxu0 %v2877
    %4074 = vmatprep.subr.mxu0 0.0
    %4075 = vmatpush1.msra.mxu0 %v2878
    %4076 = vmatprep.subr.mxu0 0.0
    %4077 = vmatpush1.msra.mxu0 %v2879
    %4078 = vmatprep.subr.mxu0 0.0
    %4079 = vmatpush1.msra.mxu0 %v2880
    %4080 = vmatprep.subr.mxu0 0.0
    %4081 = vmatpush1.msra.mxu0 %v2881
    %4082 = vmatprep.subr.mxu0 0.0
    %4083 = vmatpush1.msra.mxu0 %v2882
    %4084 = vmatprep.subr.mxu0 0.0
    %4085 = vmatpush1.msra.mxu0 %v2883
    %4086 = vmatprep.subr.mxu0 0.0
    %4087 = vmatpush1.msra.mxu0 %v2884
    %4088 = vmatprep.subr.mxu0 0.0
    %4089 = vmatpush1.msra.mxu0 %v2885
    %4090 = vmatprep.subr.mxu0 0.0
    %4091 = vmatpush1.msra.mxu0 %v2886
    %4092 = vmatprep.subr.mxu0 0.0
    %4093 = vmatpush1.msra.mxu0 %v2887
    %4094 = vmatprep.subr.mxu0 0.0
    %4095 = vmatpush1.msra.mxu0 %v2888
    %4096 = vmatprep.subr.mxu0 0.0
    %4097 = vmatpush1.msra.mxu0 %v2889
    %4098 = vmatprep.subr.mxu0 0.0
    %4099 = vmatpush1.msra.mxu0 %v2890
    %4100 = vmatprep.subr.mxu0 0.0
    %4101 = vmatpush1.msra.mxu0 %v2891
    %4102 = vmatprep.subr.mxu0 0.0
    %4103 = vmatpush1.msra.mxu0 %v2892
    %4104 = vmatprep.subr.mxu0 0.0
    %4105 = vmatpush1.msra.mxu0 %v2893
    %4106 = vmatprep.subr.mxu0 0.0
    %4107 = vmatpush1.msra.mxu0 %v2894
    %4108 = vmatprep.subr.mxu0 0.0
    %4109 = vmatpush1.msra.mxu0 %v2895
    %4110 = vmatprep.subr.mxu0 0.0
    %4111 = vmatpush1.msra.mxu0 %v2896
    %4112 = vmatprep.subr.mxu0 0.0
    %4113 = vmatpush1.msra.mxu0 %v2897
    %4114 = vmatprep.subr.mxu0 0.0
    %4115 = vmatpush1.msra.mxu0 %v2898
    %4116 = vmatprep.subr.mxu0 0.0
    %4117 = vmatpush1.msra.mxu0 %v2899
    %4118 = vmatprep.mubr.f32.mxu0 %v2971
    %4119 = vmatmul.mubr.f32.gmra.mrb[0].mxu0 %v2969
    %v4120 = vpop.f32.mrb[0].mxu0
    %v4121 = vadd.f32 %v4051, %v4120
    %v4122 = vpop.f32.mrb[0].mxu0
    %4123 = vdwg.mxu0
    %v4124 = vmax.f32 %v4121, 0.0
    %v4125 = vld [vmem:[%s7] sm:$0xff]
    %v4126 = vld [vmem:[%s7 + $0x8] sm:$0xff]
    %v4127 = vld [vmem:[%s7 + $0x10] sm:$0xff]
    %v4128 = vld [vmem:[%s7 + $0x18] sm:$0xff]
    %v4129 = vld [vmem:[%s7 + $0x20] sm:$0xff]
    %v4130 = vld [vmem:[%s7 + $0x28] sm:$0xff]
    %v4131 = vld [vmem:[%s7 + $0x30] sm:$0xff]
    %v4132 = vld [vmem:[%s7 + $0x38] sm:$0xff]
    %v4133 = vld [vmem:[%s7 + $0x40] sm:$0xff]
    %v4134 = vld [vmem:[%s7 + $0x48] sm:$0xff]
    %v4135 = vld [vmem:[%s7 + $0x50] sm:$0xff]
    %v4136 = vld [vmem:[%s7 + $0x58] sm:$0xff]
    %v4137 = vld [vmem:[%s7 + $0x60] sm:$0xff]
    %v4138 = vld [vmem:[%s7 + $0x68] sm:$0xff]
    %v4139 = vld [vmem:[%s7 + $0x70] sm:$0xff]
    %v4140 = vld [vmem:[%s7 + $0x78] sm:$0xff]
    %v4141 = vld [vmem:[#allocation13] sm:$0x1]
    %v4143 = vlaneseq
    %v4144 = vshrl.u32 %v4143, 7
    %v4145 = vsub.s32 0, %v4144
    %v4146 = vrot.slane %v4141, %v4145
    %4148 = vmatprep.subr.mxu0 0.0
    %4149 = vmatpush1.msra.mxu0 %v4125
    %4150 = vmatprep.subr.mxu0 0.0
    %4151 = vmatpush1.msra.mxu0 %v4126
    %4152 = vmatprep.subr.mxu0 0.0
    %4153 = vmatpush1.msra.mxu0 %v4127
    %4154 = vmatprep.subr.mxu0 0.0
    %4155 = vmatpush1.msra.mxu0 %v4128
    %4156 = vmatprep.subr.mxu0 0.0
    %4157 = vmatpush1.msra.mxu0 %v4129
    %4158 = vmatprep.subr.mxu0 0.0
    %4159 = vmatpush1.msra.mxu0 %v4130
    %4160 = vmatprep.subr.mxu0 0.0
    %4161 = vmatpush1.msra.mxu0 %v4131
    %4162 = vmatprep.subr.mxu0 0.0
    %4163 = vmatpush1.msra.mxu0 %v4132
    %4164 = vmatprep.subr.mxu0 0.0
    %4165 = vmatpush1.msra.mxu0 %v4133
    %4166 = vmatprep.subr.mxu0 0.0
    %4167 = vmatpush1.msra.mxu0 %v4134
    %4168 = vmatprep.subr.mxu0 0.0
    %4169 = vmatpush1.msra.mxu0 %v4135
    %4170 = vmatprep.subr.mxu0 0.0
    %4171 = vmatpush1.msra.mxu0 %v4136
    %4172 = vmatprep.subr.mxu0 0.0
    %4173 = vmatpush1.msra.mxu0 %v4137
    %4174 = vmatprep.subr.mxu0 0.0
    %4175 = vmatpush1.msra.mxu0 %v4138
    %4176 = vmatprep.subr.mxu0 0.0
    %4177 = vmatpush1.msra.mxu0 %v4139
    %4178 = vmatprep.subr.mxu0 0.0
    %4179 = vmatpush1.msra.mxu0 %v4140
    %4180 = vmatprep.subr.mxu0 0.0
    %4181 = vmatpush1.msra.mxu0 0.0
    %4182 = vmatprep.subr.mxu0 0.0
    %4183 = vmatpush1.msra.mxu0 0.0
    %4184 = vmatprep.subr.mxu0 0.0
    %4185 = vmatpush1.msra.mxu0 0.0
    %4186 = vmatprep.subr.mxu0 0.0
    %4187 = vmatpush1.msra.mxu0 0.0
    %4188 = vmatprep.subr.mxu0 0.0
    %4189 = vmatpush1.msra.mxu0 0.0
    %4190 = vmatprep.subr.mxu0 0.0
    %4191 = vmatpush1.msra.mxu0 0.0
    %4192 = vmatprep.subr.mxu0 0.0
    %4193 = vmatpush1.msra.mxu0 0.0
    %4194 = vmatprep.subr.mxu0 0.0
    %4195 = vmatpush1.msra.mxu0 0.0
    %4196 = vmatprep.subr.mxu0 0.0
    %4197 = vmatpush1.msra.mxu0 0.0
    %4198 = vmatprep.subr.mxu0 0.0
    %4199 = vmatpush1.msra.mxu0 0.0
    %4200 = vmatprep.subr.mxu0 0.0
    %4201 = vmatpush1.msra.mxu0 0.0
    %4202 = vmatprep.subr.mxu0 0.0
    %4203 = vmatpush1.msra.mxu0 0.0
    %4204 = vmatprep.subr.mxu0 0.0
    %4205 = vmatpush1.msra.mxu0 0.0
    %4206 = vmatprep.subr.mxu0 0.0
    %4207 = vmatpush1.msra.mxu0 0.0
    %4208 = vmatprep.subr.mxu0 0.0
    %4209 = vmatpush1.msra.mxu0 0.0
    %4210 = vmatprep.subr.mxu0 0.0
    %4211 = vmatpush1.msra.mxu0 0.0
    %4212 = vmatprep.mubr.f32.mxu0 0.0
    %4213 = vmatmul.mubr.f32.gmra.mrb[0].mxu0 %v4124
    %v4214 = vpop.f32.mrb[0].mxu0
    %v4215 = vadd.f32 %v4146, %v4214
    %v4216 = vpop.f32.mrb[0].mxu0
    %4217 = vdwg.mxu0
    %vm4218 = vcmask 25600
    %4219 = vst.msk [vmem:[#allocation15] sm:$0x3] %vm4218, %v4215
    // Predicated region
    $region62: #{pallas_forward.1} parent=1 // pred_check
      _
    $region63: #{pallas_forward.1} parent=1 // pred_check_branch
      %4221 = sbr.rel (0) target = $region65
    $region64: #{pallas_forward.1} parent=1 // pred_region
      %s4223 = ssub.s32 32, 32
      %4224 = vsyncadd [#allocation6], %s4223
      %s4226 = sshll.u32 [#allocation15], 4
      %s4227 = int_to_ptr.vmem [resolvable:$true] %s4226
      %4229 = dma.vmem_to_hbm [thread:$0]  %s4227, 32, %s9, [#allocation6]
    $region65: #{pallas_forward.1} parent=1 // pred_fallthru
      _
    // Predicated region
    $region66: #{pallas_forward.1} parent=1 // pred_check
      _
    $region67: #{pallas_forward.1} parent=1 // pred_check_branch
      %4231 = sbr.rel (0) target = $region69
    $region68: #{pallas_forward.1} parent=1 // pred_region
      %4232 = dma.done [#allocation6], 32
    $region69: #{pallas_forward.1} parent=1 // pred_fallthru
      _
    %4233 = vsyncpa [#allocation5], 1
    %4234 = vsyncpa [#allocation8], 1
    %4235 = vsyncpa [#allocation11], 1
    %4236 = vsyncpa [#allocation14], 1
    %4237 = vsyncpa [#allocation6], 1

</llo_original>
